<compile_context>
chip_gen: v6e
topology: v6e:2x2x1
jax: 0.10.0
libtpu: 0.0.40
codegen_flags: <defaults>
</compile_context>

<pallas_src>
import math
import functools

import jax
import jax.numpy as jnp
from jax.experimental import pallas as pl
from jax.experimental.pallas import tpu as pltpu


# ----------------------------------------------------------------------------
# Small helpers
# ----------------------------------------------------------------------------

def _round_up(x, m):
    return ((x + m - 1) // m) * m


def _dim_tiles(d, cap, align):
    """(padded_size, tile): small dims stay full-extent, large dims tile by cap."""
    if d <= cap:
        p = _round_up(d, align)
        return p, p
    return _round_up(d, cap), cap


# ----------------------------------------------------------------------------
# Tiled linear (only used for the final vocab projection).
# Weights pre-packed at init (bf16, N padded to a 128 multiple);
# activations arrive already cast to bf16.
# ----------------------------------------------------------------------------

def _matmul_kernel(x_ref, w_ref, b_ref, o_ref, acc_ref, *, activation):
    @pl.when(pl.program_id(2) == 0)
    def _init():
        acc_ref[...] = jnp.zeros_like(acc_ref)

    acc_ref[...] += jnp.dot(x_ref[...], w_ref[...],
                            preferred_element_type=jnp.float32)

    @pl.when(pl.program_id(2) == pl.num_programs(2) - 1)
    def _finalize():
        y = acc_ref[...] + b_ref[...]
        if activation == "relu":
            y = jnp.maximum(y, 0.0)
        o_ref[...] = y.astype(o_ref.dtype)


def linear(x2d_bf16, w_packed, b_packed, activation=None):
    """x2d_bf16: (M, K) bf16, w_packed: (K, Np) bf16, b_packed: (1, Np) f32."""
    M, K = x2d_bf16.shape
    Kw, Np = w_packed.shape
    assert K == Kw, (K, Kw)

    Mp, tm = _dim_tiles(M, 512, 8)
    # K is the x-lane dim and the bf16-weight sublane dim: full extent if small,
    # otherwise 128-aligned tiles (weights are packed to 128-multiple K at init).
    if K <= 512:
        tk = K
    else:
        tk = 512 if K % 512 == 0 else 128
        assert K % tk == 0, "pack weights to a 128-multiple K at init"
    # Np is a 128 multiple by construction -> lane-dense output blocks.
    if Np <= 512:
        tn = Np
    else:
        tn = 512 if Np % 512 == 0 else 128

    x_p = x2d_bf16 if Mp == M else jnp.pad(x2d_bf16, ((0, Mp - M), (0, 0)))

    kern = functools.partial(_matmul_kernel, activation=activation)
    out = pl.pallas_call(
        kern,
        out_shape=jax.ShapeDtypeStruct((Mp, Np), jnp.float32),
        grid=(Mp // tm, Np // tn, K // tk),
        in_specs=[
            pl.BlockSpec((tm, tk), lambda i, j, k: (i, k)),
            pl.BlockSpec((tk, tn), lambda i, j, k: (k, j)),
            pl.BlockSpec((1, tn), lambda i, j, k: (0, j)),
        ],
        out_specs=pl.BlockSpec((tm, tn), lambda i, j, k: (i, j)),
        scratch_shapes=[pltpu.VMEM((tm, tn), jnp.float32)],
        compiler_params=pltpu.CompilerParams(
            dimension_semantics=("parallel", "parallel", "arbitrary")),
    )(x_p, w_packed, b_packed)
    return out[:M] if Mp != M else out


# ----------------------------------------------------------------------------
# Fused decoder layer: one pallas_call per layer, one grid step per batch elem.
# ----------------------------------------------------------------------------

def _ln(x, g, b, eps):
    mean = jnp.mean(x, axis=-1, keepdims=True)
    var = jnp.mean(jnp.square(x - mean), axis=-1, keepdims=True)
    return (x - mean) * jax.lax.rsqrt(var + eps) * g + b


def _mha(q, k, v, bias, num_head):
    """q: (S, E) f32 (already scaled), k/v: (L, E) f32, bias: (S, L) f32 or None.

    Heads are lane-slices of E; the dh-sized contractions stay tiny so we let
    the compiler pick VPU/MXU lowering (no dh padding, no head transposes)."""
    E = q.shape[-1]
    dh = E // num_head
    outs = []
    for h in range(num_head):
        lo, hi = h * dh, (h + 1) * dh
        qh, kh, vh = q[:, lo:hi], k[:, lo:hi], v[:, lo:hi]
        s = jax.lax.dot_general(qh, kh, (((1,), (1,)), ((), ())),
                                preferred_element_type=jnp.float32)
        if bias is not None:
            s = s + bias
        m = jnp.max(s, axis=-1, keepdims=True)
        p = jnp.exp(s - m)
        denom = jnp.sum(p, axis=-1, keepdims=True)
        p = p * pl.reciprocal(denom, approx=True)
        outs.append(jnp.dot(p, vh, preferred_element_type=jnp.float32))
    return jnp.concatenate(outs, axis=-1)  # (S, E)


def _decoder_layer_kernel(x_ref, mem_ref, sb_ref,
                          wqkv_ref, bqkv_ref, wos_ref, bos_ref,
                          wqc_ref, bqc_ref, wkvc_ref, bkvc_ref, woc_ref, boc_ref,
                          w1_ref, b1_ref, w2_ref, b2_ref,
                          lng_ref, lnb_ref,
                          o_ref, *, num_head, eps):
    x = x_ref[0]          # (S, E) f32
    mem = mem_ref[0]      # (L, E) f32
    sbias = sb_ref[0]     # (S, S) f32 additive mask (causal + key padding)
    E = x.shape[-1]
    ln_g = lng_ref[...]   # (3, E)
    ln_b = lnb_ref[...]

    # ---- self attention (fused QKV, softmax scale pre-folded into Q weights) ----
    qkv = jnp.dot(x.astype(jnp.bfloat16), wqkv_ref[...],
                  preferred_element_type=jnp.float32) + bqkv_ref[...]
    attn = _mha(qkv[:, :E], qkv[:, E:2 * E], qkv[:, 2 * E:], sbias, num_head)
    sa = jnp.dot(attn.astype(jnp.bfloat16), wos_ref[...],
                 preferred_element_type=jnp.float32) + bos_ref[...]
    x = _ln(x + sa, ln_g[0:1, :], ln_b[0:1, :], eps)

    # ---- cross attention (fused K/V of memory; the reference module never
    #      passes memory masks, so no bias here) ----
    qc = jnp.dot(x.astype(jnp.bfloat16), wqc_ref[...],
                 preferred_element_type=jnp.float32) + bqc_ref[...]
    kvc = jnp.dot(mem.astype(jnp.bfloat16), wkvc_ref[...],
                  preferred_element_type=jnp.float32) + bkvc_ref[...]
    attn_c = _mha(qc, kvc[:, :E], kvc[:, E:], None, num_head)
    ca = jnp.dot(attn_c.astype(jnp.bfloat16), woc_ref[...],
                 preferred_element_type=jnp.float32) + boc_ref[...]
    x = _ln(x + ca, ln_g[1:2, :], ln_b[1:2, :], eps)

    # ---- feed-forward (relu) ----
    h = jnp.maximum(
        jnp.dot(x.astype(jnp.bfloat16), w1_ref[...],
                preferred_element_type=jnp.float32) + b1_ref[...], 0.0)
    f = jnp.dot(h.astype(jnp.bfloat16), w2_ref[...],
                preferred_element_type=jnp.float32) + b2_ref[...]
    x = _ln(x + f, ln_g[2:3, :], ln_b[2:3, :], eps)

    o_ref[0] = x


def decoder_layer(x, memory, self_bias, lp, num_head, eps=1e-5):
    """One post-norm nn.TransformerDecoderLayer (eval mode) as a single kernel."""
    B, S, E = x.shape
    L = memory.shape[1]
    F = lp["ff_w1"].shape[1]

    # All per-layer weights must be VMEM-resident (~24 KB at these shapes).
    per_layer_bytes = 2 * (3 * E * E + 4 * E * E + 2 * E * E + 2 * E * F)
    assert per_layer_bytes < 8 * 1024 * 1024, \
        "layer weights exceed the fused-kernel VMEM budget; use tiled linears"

    def rep(shape):  # weight/bias specs: full-extent block, constant index
        return pl.BlockSpec(shape, lambda b, _n=len(shape): (0,) * _n)

    kern = functools.partial(_decoder_layer_kernel, num_head=num_head, eps=eps)
    return pl.pallas_call(
        kern,
        out_shape=jax.ShapeDtypeStruct((B, S, E), jnp.float32),
        grid=(B,),
        in_specs=[
            pl.BlockSpec((1, S, E), lambda b: (b, 0, 0)),   # x
            pl.BlockSpec((1, L, E), lambda b: (b, 0, 0)),   # memory
            pl.BlockSpec((1, S, S), lambda b: (b, 0, 0)),   # self-attn bias
            rep((E, 3 * E)), rep((1, 3 * E)),               # w_qkv, b_qkv
            rep((E, E)), rep((1, E)),                       # wo_s, bo_s
            rep((E, E)), rep((1, E)),                       # wq_c, bq_c
            rep((E, 2 * E)), rep((1, 2 * E)),               # w_kv_c, b_kv_c
            rep((E, E)), rep((1, E)),                       # wo_c, bo_c
            rep((E, F)), rep((1, F)),                       # ff_w1, ff_b1
            rep((F, E)), rep((1, E)),                       # ff_w2, ff_b2
            rep((3, E)), rep((3, E)),                       # ln gammas, ln betas
        ],
        out_specs=pl.BlockSpec((1, S, E), lambda b: (b, 0, 0)),
        compiler_params=pltpu.CompilerParams(
            dimension_semantics=("parallel",)),   # v7x: 2 TCs split the batch
    )(x, memory, self_bias,
      lp["w_qkv"], lp["b_qkv"], lp["wo_s"], lp["bo_s"],
      lp["wq_c"], lp["bq_c"], lp["w_kv_c"], lp["b_kv_c"], lp["wo_c"], lp["bo_c"],
      lp["ff_w1"], lp["ff_b1"], lp["ff_w2"], lp["ff_b2"],
      lp["ln_g"], lp["ln_b"])


# ----------------------------------------------------------------------------
# Model glue
# ----------------------------------------------------------------------------

def sinusoidal_pe(max_len, d_model):
    position = jnp.arange(max_len, dtype=jnp.float32)[:, None]
    div_term = jnp.exp(
        jnp.arange(0, d_model, 2, dtype=jnp.float32) * (-math.log(10000.0) / d_model))
    pe = jnp.zeros((max_len, d_model), jnp.float32)
    pe = pe.at[:, 0::2].set(jnp.sin(position * div_term))
    pe = pe.at[:, 1::2].set(jnp.cos(position * div_term))
    return pe


def transformer_decoder_forward(params, img_encoded, text,
                                text_key_padding_mask=None, text_mask=None):
    """
    img_encoded: (B, L_mem, E) float32
    text:        (B, S)        int32 token ids
    text_key_padding_mask: optional (B, S) bool, True = pad
    text_mask:   optional (S, S) float additive attention mask
    returns:     (B, S, vocab_size) float32 logits
    """
    num_head = params["num_head"]
    B, S = text.shape
    E = params["embedding"].shape[1]

    # Embedding lookup + positional encoding (dropout identity in eval).
    x = jnp.take(params["embedding"], text, axis=0)           # (B, S, E)
    x = x + params["pe"][:S][None, :, :]

    # Additive self-attention bias (causal mask + key padding folded together).
    self_bias = jnp.zeros((B, S, S), jnp.float32)
    if text_mask is not None:
        self_bias = self_bias + text_mask[None, :, :]
    if text_key_padding_mask is not None:
        pad = jnp.where(text_key_padding_mask, -1e30, 0.0).astype(jnp.float32)
        self_bias = self_bias + pad[:, None, :]

    for lp in params["layers"]:
        x = decoder_layer(x, img_encoded, self_bias, lp, num_head)

    logits = linear(x.reshape(B * S, E).astype(jnp.bfloat16),
                    params["fc_w"], params["fc_b"])
    return logits[:, :params["vocab_size"]].reshape(B, S, -1)


# ----------------------------------------------------------------------------
# Deterministic parameter init + one-time weight packing
# ----------------------------------------------------------------------------

def _pack_linear(w, b, n_align=128):
    K, N = w.shape
    Np = _round_up(N, n_align)
    if Np != N:
        w = jnp.pad(w, ((0, 0), (0, Np - N)))
        b = jnp.pad(b, (0, Np - N))
    return w.astype(jnp.bfloat16), b.reshape(1, Np).astype(jnp.float32)


def init_params(key, vocab_size, embed_size, num_head, num_decoder_layer, dim_ff):
    E, F = embed_size, dim_ff
    dh = E // num_head
    scale = 1.0 / math.sqrt(dh)
    keys = iter(jax.random.split(key, 2 + 10 * num_decoder_layer))

    def w(shape, s=0.02):
        return (s * jax.random.normal(next(keys), shape)).astype(jnp.float32)

    layers = []
    for _ in range(num_decoder_layer):
        wq, wk, wv, wo = w((E, E)), w((E, E)), w((E, E)), w((E, E))
        wq_c, wk_c, wv_c, wo_c = w((E, E)), w((E, E)), w((E, E)), w((E, E))
        w1, w2 = w((E, F)), w((F, E))
        layers.append({
            # self-attn: fused QKV, softmax scale folded into the Q slice
            "w_qkv": jnp.concatenate([wq * scale, wk, wv], axis=1).astype(jnp.bfloat16),
            "b_qkv": jnp.zeros((1, 3 * E), jnp.float32),
            "wo_s": wo.astype(jnp.bfloat16), "bo_s": jnp.zeros((1, E), jnp.float32),
            # cross-attn: pre-scaled Q, fused K/V of memory
            "wq_c": (wq_c * scale).astype(jnp.bfloat16),
            "bq_c": jnp.zeros((1, E), jnp.float32),
            "w_kv_c": jnp.concatenate([wk_c, wv_c], axis=1).astype(jnp.bfloat16),
            "b_kv_c": jnp.zeros((1, 2 * E), jnp.float32),
            "wo_c": wo_c.astype(jnp.bfloat16), "bo_c": jnp.zeros((1, E), jnp.float32),
            # FFN
            "ff_w1": w1.astype(jnp.bfloat16), "ff_b1": jnp.zeros((1, F), jnp.float32),
            "ff_w2": w2.astype(jnp.bfloat16), "ff_b2": jnp.zeros((1, E), jnp.float32),
            # LayerNorms (rows 0/1/2 = after self-attn / cross-attn / FFN)
            "ln_g": jnp.ones((3, E), jnp.float32),
            "ln_b": jnp.zeros((3, E), jnp.float32),
        })

    embedding = w((vocab_size, E), 1.0 / math.sqrt(E))
    fc_w, fc_b = _pack_linear(w((E, vocab_size)), jnp.zeros((vocab_size,), jnp.float32))

    return {
        "num_head": num_head,
        "vocab_size": vocab_size,
        "embedding": embedding,
        "pe": sinusoidal_pe(100, E),
        "layers": layers,
        "fc_w": fc_w,
        "fc_b": fc_b,
    }


# ----------------------------------------------------------------------------
# Main
# ----------------------------------------------------------------------------

if __name__ == "__main__":
    vocab_size = 50
    embed_size = 32
    num_head = 4
    num_decoder_layer = 2
    dim_ff = 64
    B, S, L_mem = 2, 8, 16

    root = jax.random.PRNGKey(0)
    k_param, k_img, k_text = jax.random.split(root, 3)

    params = init_params(k_param, vocab_size, embed_size, num_head,
                         num_decoder_layer, dim_ff)

    img_encoded = (0.1 * jax.random.normal(k_img, (B, L_mem, embed_size))).astype(jnp.float32)
    text = jax.random.randint(k_text, (B, S), 0, vocab_size, dtype=jnp.int32)

    # Causal mask (same convention as torch generate_square_subsequent_mask).
    idx = jnp.arange(S)
    text_mask = jnp.where(idx[None, :] > idx[:, None], -1e30, 0.0).astype(jnp.float32)
    # Key padding mask: True = pad. Pad the last position of batch element 1.
    text_key_padding_mask = jnp.zeros((B, S), jnp.bool_).at[1, S - 1].set(True)

    out = transformer_decoder_forward(params, img_encoded, text,
                                      text_key_padding_mask=text_key_padding_mask,
                                      text_mask=text_mask)
    out = jax.block_until_ready(out)
    assert out.shape == (B, S, vocab_size), out.shape
    assert bool(jnp.all(jnp.isfinite(out)))
    print("KERNEL_OK")
</pallas_src>

<mosaic_0001>
module attributes {stable_mosaic.version = 11 : i64} {
  func.func @_decoder_layer_kernel(%arg0: i32, %arg1: memref<1x8x32xf32, #tpu.memory_space<vmem>>, %arg2: memref<1x16x32xf32, #tpu.memory_space<vmem>>, %arg3: memref<1x8x8xf32, #tpu.memory_space<vmem>>, %arg4: memref<32x96xbf16, #tpu.memory_space<vmem>>, %arg5: memref<1x96xf32, #tpu.memory_space<vmem>>, %arg6: memref<32x32xbf16, #tpu.memory_space<vmem>>, %arg7: memref<1x32xf32, #tpu.memory_space<vmem>>, %arg8: memref<32x32xbf16, #tpu.memory_space<vmem>>, %arg9: memref<1x32xf32, #tpu.memory_space<vmem>>, %arg10: memref<32x64xbf16, #tpu.memory_space<vmem>>, %arg11: memref<1x64xf32, #tpu.memory_space<vmem>>, %arg12: memref<32x32xbf16, #tpu.memory_space<vmem>>, %arg13: memref<1x32xf32, #tpu.memory_space<vmem>>, %arg14: memref<32x64xbf16, #tpu.memory_space<vmem>>, %arg15: memref<1x64xf32, #tpu.memory_space<vmem>>, %arg16: memref<64x32xbf16, #tpu.memory_space<vmem>>, %arg17: memref<1x32xf32, #tpu.memory_space<vmem>>, %arg18: memref<3x32xf32, #tpu.memory_space<vmem>>, %arg19: memref<3x32xf32, #tpu.memory_space<vmem>>, %arg20: memref<1x8x32xf32, #tpu.memory_space<vmem>>) attributes {dimension_semantics = [#tpu.dimension_semantics<parallel>], iteration_bounds = array<i64: 2>, scalar_prefetch = 0 : i64, scratch_operands = 0 : i64, tpu.core_type = #tpu.core_type<tc>, window_params = [{transform_indices = @transform_0, window_bounds = array<i64: 1, 8, 32>}, {transform_indices = @transform_1, window_bounds = array<i64: 1, 16, 32>}, {transform_indices = @transform_2, window_bounds = array<i64: 1, 8, 8>}, {pipeline_mode = #tpu.pipeline_mode<synchronous>, transform_indices = @transform_3, window_bounds = array<i64: 32, 96>}, {pipeline_mode = #tpu.pipeline_mode<synchronous>, transform_indices = @transform_4, window_bounds = array<i64: 1, 96>}, {pipeline_mode = #tpu.pipeline_mode<synchronous>, transform_indices = @transform_5, window_bounds = array<i64: 32, 32>}, {pipeline_mode = #tpu.pipeline_mode<synchronous>, transform_indices = @transform_6, window_bounds = array<i64: 1, 32>}, {pipeline_mode = #tpu.pipeline_mode<synchronous>, transform_indices = @transform_7, window_bounds = array<i64: 32, 32>}, {pipeline_mode = #tpu.pipeline_mode<synchronous>, transform_indices = @transform_8, window_bounds = array<i64: 1, 32>}, {pipeline_mode = #tpu.pipeline_mode<synchronous>, transform_indices = @transform_9, window_bounds = array<i64: 32, 64>}, {pipeline_mode = #tpu.pipeline_mode<synchronous>, transform_indices = @transform_10, window_bounds = array<i64: 1, 64>}, {pipeline_mode = #tpu.pipeline_mode<synchronous>, transform_indices = @transform_11, window_bounds = array<i64: 32, 32>}, {pipeline_mode = #tpu.pipeline_mode<synchronous>, transform_indices = @transform_12, window_bounds = array<i64: 1, 32>}, {pipeline_mode = #tpu.pipeline_mode<synchronous>, transform_indices = @transform_13, window_bounds = array<i64: 32, 64>}, {pipeline_mode = #tpu.pipeline_mode<synchronous>, transform_indices = @transform_14, window_bounds = array<i64: 1, 64>}, {pipeline_mode = #tpu.pipeline_mode<synchronous>, transform_indices = @transform_15, window_bounds = array<i64: 64, 32>}, {pipeline_mode = #tpu.pipeline_mode<synchronous>, transform_indices = @transform_16, window_bounds = array<i64: 1, 32>}, {pipeline_mode = #tpu.pipeline_mode<synchronous>, transform_indices = @transform_17, window_bounds = array<i64: 3, 32>}, {pipeline_mode = #tpu.pipeline_mode<synchronous>, transform_indices = @transform_18, window_bounds = array<i64: 3, 32>}, {transform_indices = @transform_19, window_bounds = array<i64: 1, 8, 32>}]} {
    %c0 = arith.constant 0 : index
    %c0_0 = arith.constant 0 : index
    %c0_1 = arith.constant 0 : index
    %0 = vector.load %arg1[%c0, %c0_0, %c0_1] : memref<1x8x32xf32, #tpu.memory_space<vmem>>, vector<1x8x32xf32>
    %1 = vector.shape_cast %0 : vector<1x8x32xf32> to vector<8x32xf32>
    %c0_2 = arith.constant 0 : index
    %c0_3 = arith.constant 0 : index
    %c0_4 = arith.constant 0 : index
    %2 = vector.load %arg2[%c0_2, %c0_3, %c0_4] : memref<1x16x32xf32, #tpu.memory_space<vmem>>, vector<1x16x32xf32>
    %3 = vector.shape_cast %2 : vector<1x16x32xf32> to vector<16x32xf32>
    %c0_5 = arith.constant 0 : index
    %c0_6 = arith.constant 0 : index
    %c0_7 = arith.constant 0 : index
    %4 = vector.load %arg3[%c0_5, %c0_6, %c0_7] : memref<1x8x8xf32, #tpu.memory_space<vmem>>, vector<1x8x8xf32>
    %5 = vector.shape_cast %4 : vector<1x8x8xf32> to vector<8x8xf32>
    %c0_8 = arith.constant 0 : index
    %c0_9 = arith.constant 0 : index
    %6 = vector.load %arg18[%c0_8, %c0_9] : memref<3x32xf32, #tpu.memory_space<vmem>>, vector<3x32xf32>
    %c0_10 = arith.constant 0 : index
    %c0_11 = arith.constant 0 : index
    %7 = vector.load %arg19[%c0_10, %c0_11] : memref<3x32xf32, #tpu.memory_space<vmem>>, vector<3x32xf32>
    %8 = arith.truncf %1 : vector<8x32xf32> to vector<8x32xbf16>
    %c0_12 = arith.constant 0 : index
    %c0_13 = arith.constant 0 : index
    %9 = vector.load %arg4[%c0_12, %c0_13] : memref<32x96xbf16, #tpu.memory_space<vmem>>, vector<32x96xbf16>
    %cst = arith.constant dense<0.000000e+00> : vector<8x96xf32>
    %10 = tpu.matmul %8, %9, %cst {dimension_numbers = #tpu.dot_dimension_numbers<[1], [0], [0], [1], [0, 0, 1, 1], [], []>} : vector<8x32xbf16>, vector<32x96xbf16>, vector<8x96xf32> -> vector<8x96xf32>
    %c0_14 = arith.constant 0 : index
    %c0_15 = arith.constant 0 : index
    %11 = vector.load %arg5[%c0_14, %c0_15] : memref<1x96xf32, #tpu.memory_space<vmem>>, vector<1x96xf32>
    %12 = vector.broadcast %11 : vector<1x96xf32> to vector<8x96xf32>
    %13 = arith.addf %10, %12 : vector<8x96xf32>
    %14 = vector.extract_strided_slice %13 {offsets = [0, 0], sizes = [8, 32], strides = [1, 1]} : vector<8x96xf32> to vector<8x32xf32>
    %15 = vector.extract_strided_slice %13 {offsets = [0, 32], sizes = [8, 32], strides = [1, 1]} : vector<8x96xf32> to vector<8x32xf32>
    %16 = vector.extract_strided_slice %13 {offsets = [0, 64], sizes = [8, 32], strides = [1, 1]} : vector<8x96xf32> to vector<8x32xf32>
    %17 = vector.extract_strided_slice %14 {offsets = [0, 0], sizes = [8, 8], strides = [1, 1]} : vector<8x32xf32> to vector<8x8xf32>
    %18 = vector.extract_strided_slice %15 {offsets = [0, 0], sizes = [8, 8], strides = [1, 1]} : vector<8x32xf32> to vector<8x8xf32>
    %19 = vector.extract_strided_slice %16 {offsets = [0, 0], sizes = [8, 8], strides = [1, 1]} : vector<8x32xf32> to vector<8x8xf32>
    %cst_16 = arith.constant dense<0.000000e+00> : vector<8x8xf32>
    %20 = tpu.matmul %17, %18, %cst_16 {dimension_numbers = #tpu.dot_dimension_numbers<[1], [1], [0], [0], [0, 0, 1, 0], [], []>} : vector<8x8xf32>, vector<8x8xf32>, vector<8x8xf32> -> vector<8x8xf32>
    %21 = arith.addf %20, %5 : vector<8x8xf32>
    %cst_17 = arith.constant dense<0xFF800000> : vector<8xf32>
    %22 = vector.multi_reduction <maximumf>, %21, %cst_17 [1] : vector<8x8xf32> to vector<8xf32>
    %23 = vector.shape_cast %22 : vector<8xf32> to vector<8x1xf32>
    %24 = vector.broadcast %23 : vector<8x1xf32> to vector<8x8xf32>
    %25 = arith.subf %21, %24 : vector<8x8xf32>
    %26 = math.exp %25 : vector<8x8xf32>
    %cst_18 = arith.constant dense<0.000000e+00> : vector<8xf32>
    %27 = vector.multi_reduction <add>, %26, %cst_18 [1] : vector<8x8xf32> to vector<8xf32>
    %28 = vector.shape_cast %27 : vector<8xf32> to vector<8x1xf32>
    %29 = tpu.reciprocal %28 {approx = true} : vector<8x1xf32> -> vector<8x1xf32>
    %30 = vector.broadcast %29 : vector<8x1xf32> to vector<8x8xf32>
    %31 = arith.mulf %26, %30 : vector<8x8xf32>
    %cst_19 = arith.constant dense<0.000000e+00> : vector<8x8xf32>
    %32 = tpu.matmul %31, %19, %cst_19 {dimension_numbers = #tpu.dot_dimension_numbers<[1], [0], [0], [1], [0, 0, 1, 1], [], []>} : vector<8x8xf32>, vector<8x8xf32>, vector<8x8xf32> -> vector<8x8xf32>
    %33 = vector.extract_strided_slice %14 {offsets = [0, 8], sizes = [8, 8], strides = [1, 1]} : vector<8x32xf32> to vector<8x8xf32>
    %34 = vector.extract_strided_slice %15 {offsets = [0, 8], sizes = [8, 8], strides = [1, 1]} : vector<8x32xf32> to vector<8x8xf32>
    %35 = vector.extract_strided_slice %16 {offsets = [0, 8], sizes = [8, 8], strides = [1, 1]} : vector<8x32xf32> to vector<8x8xf32>
    %cst_20 = arith.constant dense<0.000000e+00> : vector<8x8xf32>
    %36 = tpu.matmul %33, %34, %cst_20 {dimension_numbers = #tpu.dot_dimension_numbers<[1], [1], [0], [0], [0, 0, 1, 0], [], []>} : vector<8x8xf32>, vector<8x8xf32>, vector<8x8xf32> -> vector<8x8xf32>
    %37 = arith.addf %36, %5 : vector<8x8xf32>
    %cst_21 = arith.constant dense<0xFF800000> : vector<8xf32>
    %38 = vector.multi_reduction <maximumf>, %37, %cst_21 [1] : vector<8x8xf32> to vector<8xf32>
    %39 = vector.shape_cast %38 : vector<8xf32> to vector<8x1xf32>
    %40 = vector.broadcast %39 : vector<8x1xf32> to vector<8x8xf32>
    %41 = arith.subf %37, %40 : vector<8x8xf32>
    %42 = math.exp %41 : vector<8x8xf32>
    %cst_22 = arith.constant dense<0.000000e+00> : vector<8xf32>
    %43 = vector.multi_reduction <add>, %42, %cst_22 [1] : vector<8x8xf32> to vector<8xf32>
    %44 = vector.shape_cast %43 : vector<8xf32> to vector<8x1xf32>
    %45 = tpu.reciprocal %44 {approx = true} : vector<8x1xf32> -> vector<8x1xf32>
    %46 = vector.broadcast %45 : vector<8x1xf32> to vector<8x8xf32>
    %47 = arith.mulf %42, %46 : vector<8x8xf32>
    %cst_23 = arith.constant dense<0.000000e+00> : vector<8x8xf32>
    %48 = tpu.matmul %47, %35, %cst_23 {dimension_numbers = #tpu.dot_dimension_numbers<[1], [0], [0], [1], [0, 0, 1, 1], [], []>} : vector<8x8xf32>, vector<8x8xf32>, vector<8x8xf32> -> vector<8x8xf32>
    %49 = vector.extract_strided_slice %14 {offsets = [0, 16], sizes = [8, 8], strides = [1, 1]} : vector<8x32xf32> to vector<8x8xf32>
    %50 = vector.extract_strided_slice %15 {offsets = [0, 16], sizes = [8, 8], strides = [1, 1]} : vector<8x32xf32> to vector<8x8xf32>
    %51 = vector.extract_strided_slice %16 {offsets = [0, 16], sizes = [8, 8], strides = [1, 1]} : vector<8x32xf32> to vector<8x8xf32>
    %cst_24 = arith.constant dense<0.000000e+00> : vector<8x8xf32>
    %52 = tpu.matmul %49, %50, %cst_24 {dimension_numbers = #tpu.dot_dimension_numbers<[1], [1], [0], [0], [0, 0, 1, 0], [], []>} : vector<8x8xf32>, vector<8x8xf32>, vector<8x8xf32> -> vector<8x8xf32>
    %53 = arith.addf %52, %5 : vector<8x8xf32>
    %cst_25 = arith.constant dense<0xFF800000> : vector<8xf32>
    %54 = vector.multi_reduction <maximumf>, %53, %cst_25 [1] : vector<8x8xf32> to vector<8xf32>
    %55 = vector.shape_cast %54 : vector<8xf32> to vector<8x1xf32>
    %56 = vector.broadcast %55 : vector<8x1xf32> to vector<8x8xf32>
    %57 = arith.subf %53, %56 : vector<8x8xf32>
    %58 = math.exp %57 : vector<8x8xf32>
    %cst_26 = arith.constant dense<0.000000e+00> : vector<8xf32>
    %59 = vector.multi_reduction <add>, %58, %cst_26 [1] : vector<8x8xf32> to vector<8xf32>
    %60 = vector.shape_cast %59 : vector<8xf32> to vector<8x1xf32>
    %61 = tpu.reciprocal %60 {approx = true} : vector<8x1xf32> -> vector<8x1xf32>
    %62 = vector.broadcast %61 : vector<8x1xf32> to vector<8x8xf32>
    %63 = arith.mulf %58, %62 : vector<8x8xf32>
    %cst_27 = arith.constant dense<0.000000e+00> : vector<8x8xf32>
    %64 = tpu.matmul %63, %51, %cst_27 {dimension_numbers = #tpu.dot_dimension_numbers<[1], [0], [0], [1], [0, 0, 1, 1], [], []>} : vector<8x8xf32>, vector<8x8xf32>, vector<8x8xf32> -> vector<8x8xf32>
    %65 = vector.extract_strided_slice %14 {offsets = [0, 24], sizes = [8, 8], strides = [1, 1]} : vector<8x32xf32> to vector<8x8xf32>
    %66 = vector.extract_strided_slice %15 {offsets = [0, 24], sizes = [8, 8], strides = [1, 1]} : vector<8x32xf32> to vector<8x8xf32>
    %67 = vector.extract_strided_slice %16 {offsets = [0, 24], sizes = [8, 8], strides = [1, 1]} : vector<8x32xf32> to vector<8x8xf32>
    %cst_28 = arith.constant dense<0.000000e+00> : vector<8x8xf32>
    %68 = tpu.matmul %65, %66, %cst_28 {dimension_numbers = #tpu.dot_dimension_numbers<[1], [1], [0], [0], [0, 0, 1, 0], [], []>} : vector<8x8xf32>, vector<8x8xf32>, vector<8x8xf32> -> vector<8x8xf32>
    %69 = arith.addf %68, %5 : vector<8x8xf32>
    %cst_29 = arith.constant dense<0xFF800000> : vector<8xf32>
    %70 = vector.multi_reduction <maximumf>, %69, %cst_29 [1] : vector<8x8xf32> to vector<8xf32>
    %71 = vector.shape_cast %70 : vector<8xf32> to vector<8x1xf32>
    %72 = vector.broadcast %71 : vector<8x1xf32> to vector<8x8xf32>
    %73 = arith.subf %69, %72 : vector<8x8xf32>
    %74 = math.exp %73 : vector<8x8xf32>
    %cst_30 = arith.constant dense<0.000000e+00> : vector<8xf32>
    %75 = vector.multi_reduction <add>, %74, %cst_30 [1] : vector<8x8xf32> to vector<8xf32>
    %76 = vector.shape_cast %75 : vector<8xf32> to vector<8x1xf32>
    %77 = tpu.reciprocal %76 {approx = true} : vector<8x1xf32> -> vector<8x1xf32>
    %78 = vector.broadcast %77 : vector<8x1xf32> to vector<8x8xf32>
    %79 = arith.mulf %74, %78 : vector<8x8xf32>
    %cst_31 = arith.constant dense<0.000000e+00> : vector<8x8xf32>
    %80 = tpu.matmul %79, %67, %cst_31 {dimension_numbers = #tpu.dot_dimension_numbers<[1], [0], [0], [1], [0, 0, 1, 1], [], []>} : vector<8x8xf32>, vector<8x8xf32>, vector<8x8xf32> -> vector<8x8xf32>
    %81 = tpu.concatenate %32, %48, %64, %80 in 1 : vector<8x8xf32>, vector<8x8xf32>, vector<8x8xf32>, vector<8x8xf32> -> vector<8x32xf32>
    %82 = arith.truncf %81 : vector<8x32xf32> to vector<8x32xbf16>
    %c0_32 = arith.constant 0 : index
    %c0_33 = arith.constant 0 : index
    %83 = vector.load %arg6[%c0_32, %c0_33] : memref<32x32xbf16, #tpu.memory_space<vmem>>, vector<32x32xbf16>
    %cst_34 = arith.constant dense<0.000000e+00> : vector<8x32xf32>
    %84 = tpu.matmul %82, %83, %cst_34 {dimension_numbers = #tpu.dot_dimension_numbers<[1], [0], [0], [1], [0, 0, 1, 1], [], []>} : vector<8x32xbf16>, vector<32x32xbf16>, vector<8x32xf32> -> vector<8x32xf32>
    %c0_35 = arith.constant 0 : index
    %c0_36 = arith.constant 0 : index
    %85 = vector.load %arg7[%c0_35, %c0_36] : memref<1x32xf32, #tpu.memory_space<vmem>>, vector<1x32xf32>
    %86 = vector.broadcast %85 : vector<1x32xf32> to vector<8x32xf32>
    %87 = arith.addf %84, %86 : vector<8x32xf32>
    %88 = arith.addf %1, %87 : vector<8x32xf32>
    %89 = vector.extract_strided_slice %6 {offsets = [0, 0], sizes = [1, 32], strides = [1, 1]} : vector<3x32xf32> to vector<1x32xf32>
    %90 = vector.extract_strided_slice %7 {offsets = [0, 0], sizes = [1, 32], strides = [1, 1]} : vector<3x32xf32> to vector<1x32xf32>
    %cst_37 = arith.constant dense<0.000000e+00> : vector<8xf32>
    %91 = vector.multi_reduction <add>, %88, %cst_37 [1] : vector<8x32xf32> to vector<8xf32>
    %92 = vector.shape_cast %91 : vector<8xf32> to vector<8x1xf32>
    %cst_38 = arith.constant 3.200000e+01 : f32
    %93 = vector.broadcast %cst_38 : f32 to vector<8x1xf32>
    %94 = arith.divf %92, %93 : vector<8x1xf32>
    %95 = vector.broadcast %94 : vector<8x1xf32> to vector<8x32xf32>
    %96 = arith.subf %88, %95 : vector<8x32xf32>
    %97 = arith.mulf %96, %96 : vector<8x32xf32>
    %cst_39 = arith.constant dense<0.000000e+00> : vector<8xf32>
    %98 = vector.multi_reduction <add>, %97, %cst_39 [1] : vector<8x32xf32> to vector<8xf32>
    %99 = vector.shape_cast %98 : vector<8xf32> to vector<8x1xf32>
    %cst_40 = arith.constant 3.200000e+01 : f32
    %100 = vector.broadcast %cst_40 : f32 to vector<8x1xf32>
    %101 = arith.divf %99, %100 : vector<8x1xf32>
    %102 = vector.broadcast %94 : vector<8x1xf32> to vector<8x32xf32>
    %103 = arith.subf %88, %102 : vector<8x32xf32>
    %cst_41 = arith.constant 9.99999974E-6 : f32
    %104 = vector.broadcast %cst_41 : f32 to vector<8x1xf32>
    %105 = arith.addf %101, %104 : vector<8x1xf32>
    %106 = math.rsqrt %105 : vector<8x1xf32>
    %107 = vector.broadcast %106 : vector<8x1xf32> to vector<8x32xf32>
    %108 = arith.mulf %103, %107 : vector<8x32xf32>
    %109 = vector.broadcast %89 : vector<1x32xf32> to vector<8x32xf32>
    %110 = arith.mulf %108, %109 : vector<8x32xf32>
    %111 = vector.broadcast %90 : vector<1x32xf32> to vector<8x32xf32>
    %112 = arith.addf %110, %111 : vector<8x32xf32>
    %113 = arith.truncf %112 : vector<8x32xf32> to vector<8x32xbf16>
    %c0_42 = arith.constant 0 : index
    %c0_43 = arith.constant 0 : index
    %114 = vector.load %arg8[%c0_42, %c0_43] : memref<32x32xbf16, #tpu.memory_space<vmem>>, vector<32x32xbf16>
    %cst_44 = arith.constant dense<0.000000e+00> : vector<8x32xf32>
    %115 = tpu.matmul %113, %114, %cst_44 {dimension_numbers = #tpu.dot_dimension_numbers<[1], [0], [0], [1], [0, 0, 1, 1], [], []>} : vector<8x32xbf16>, vector<32x32xbf16>, vector<8x32xf32> -> vector<8x32xf32>
    %c0_45 = arith.constant 0 : index
    %c0_46 = arith.constant 0 : index
    %116 = vector.load %arg9[%c0_45, %c0_46] : memref<1x32xf32, #tpu.memory_space<vmem>>, vector<1x32xf32>
    %117 = vector.broadcast %116 : vector<1x32xf32> to vector<8x32xf32>
    %118 = arith.addf %115, %117 : vector<8x32xf32>
    %119 = arith.truncf %3 : vector<16x32xf32> to vector<16x32xbf16>
    %c0_47 = arith.constant 0 : index
    %c0_48 = arith.constant 0 : index
    %120 = vector.load %arg10[%c0_47, %c0_48] : memref<32x64xbf16, #tpu.memory_space<vmem>>, vector<32x64xbf16>
    %cst_49 = arith.constant dense<0.000000e+00> : vector<16x64xf32>
    %121 = tpu.matmul %119, %120, %cst_49 {dimension_numbers = #tpu.dot_dimension_numbers<[1], [0], [0], [1], [0, 0, 1, 1], [], []>} : vector<16x32xbf16>, vector<32x64xbf16>, vector<16x64xf32> -> vector<16x64xf32>
    %c0_50 = arith.constant 0 : index
    %c0_51 = arith.constant 0 : index
    %122 = vector.load %arg11[%c0_50, %c0_51] : memref<1x64xf32, #tpu.memory_space<vmem>>, vector<1x64xf32>
    %123 = vector.broadcast %122 : vector<1x64xf32> to vector<16x64xf32>
    %124 = arith.addf %121, %123 : vector<16x64xf32>
    %125 = vector.extract_strided_slice %124 {offsets = [0, 0], sizes = [16, 32], strides = [1, 1]} : vector<16x64xf32> to vector<16x32xf32>
    %126 = vector.extract_strided_slice %124 {offsets = [0, 32], sizes = [16, 32], strides = [1, 1]} : vector<16x64xf32> to vector<16x32xf32>
    %127 = vector.extract_strided_slice %118 {offsets = [0, 0], sizes = [8, 8], strides = [1, 1]} : vector<8x32xf32> to vector<8x8xf32>
    %128 = vector.extract_strided_slice %125 {offsets = [0, 0], sizes = [16, 8], strides = [1, 1]} : vector<16x32xf32> to vector<16x8xf32>
    %129 = vector.extract_strided_slice %126 {offsets = [0, 0], sizes = [16, 8], strides = [1, 1]} : vector<16x32xf32> to vector<16x8xf32>
    %cst_52 = arith.constant dense<0.000000e+00> : vector<8x16xf32>
    %130 = tpu.matmul %127, %128, %cst_52 {dimension_numbers = #tpu.dot_dimension_numbers<[1], [1], [0], [0], [0, 0, 1, 0], [], []>} : vector<8x8xf32>, vector<16x8xf32>, vector<8x16xf32> -> vector<8x16xf32>
    %cst_53 = arith.constant dense<0xFF800000> : vector<8xf32>
    %131 = vector.multi_reduction <maximumf>, %130, %cst_53 [1] : vector<8x16xf32> to vector<8xf32>
    %132 = vector.shape_cast %131 : vector<8xf32> to vector<8x1xf32>
    %133 = vector.broadcast %132 : vector<8x1xf32> to vector<8x16xf32>
    %134 = arith.subf %130, %133 : vector<8x16xf32>
    %135 = math.exp %134 : vector<8x16xf32>
    %cst_54 = arith.constant dense<0.000000e+00> : vector<8xf32>
    %136 = vector.multi_reduction <add>, %135, %cst_54 [1] : vector<8x16xf32> to vector<8xf32>
    %137 = vector.shape_cast %136 : vector<8xf32> to vector<8x1xf32>
    %138 = tpu.reciprocal %137 {approx = true} : vector<8x1xf32> -> vector<8x1xf32>
    %139 = vector.broadcast %138 : vector<8x1xf32> to vector<8x16xf32>
    %140 = arith.mulf %135, %139 : vector<8x16xf32>
    %cst_55 = arith.constant dense<0.000000e+00> : vector<8x8xf32>
    %141 = tpu.matmul %140, %129, %cst_55 {dimension_numbers = #tpu.dot_dimension_numbers<[1], [0], [0], [1], [0, 0, 1, 1], [], []>} : vector<8x16xf32>, vector<16x8xf32>, vector<8x8xf32> -> vector<8x8xf32>
    %142 = vector.extract_strided_slice %118 {offsets = [0, 8], sizes = [8, 8], strides = [1, 1]} : vector<8x32xf32> to vector<8x8xf32>
    %143 = vector.extract_strided_slice %125 {offsets = [0, 8], sizes = [16, 8], strides = [1, 1]} : vector<16x32xf32> to vector<16x8xf32>
    %144 = vector.extract_strided_slice %126 {offsets = [0, 8], sizes = [16, 8], strides = [1, 1]} : vector<16x32xf32> to vector<16x8xf32>
    %cst_56 = arith.constant dense<0.000000e+00> : vector<8x16xf32>
    %145 = tpu.matmul %142, %143, %cst_56 {dimension_numbers = #tpu.dot_dimension_numbers<[1], [1], [0], [0], [0, 0, 1, 0], [], []>} : vector<8x8xf32>, vector<16x8xf32>, vector<8x16xf32> -> vector<8x16xf32>
    %cst_57 = arith.constant dense<0xFF800000> : vector<8xf32>
    %146 = vector.multi_reduction <maximumf>, %145, %cst_57 [1] : vector<8x16xf32> to vector<8xf32>
    %147 = vector.shape_cast %146 : vector<8xf32> to vector<8x1xf32>
    %148 = vector.broadcast %147 : vector<8x1xf32> to vector<8x16xf32>
    %149 = arith.subf %145, %148 : vector<8x16xf32>
    %150 = math.exp %149 : vector<8x16xf32>
    %cst_58 = arith.constant dense<0.000000e+00> : vector<8xf32>
    %151 = vector.multi_reduction <add>, %150, %cst_58 [1] : vector<8x16xf32> to vector<8xf32>
    %152 = vector.shape_cast %151 : vector<8xf32> to vector<8x1xf32>
    %153 = tpu.reciprocal %152 {approx = true} : vector<8x1xf32> -> vector<8x1xf32>
    %154 = vector.broadcast %153 : vector<8x1xf32> to vector<8x16xf32>
    %155 = arith.mulf %150, %154 : vector<8x16xf32>
    %cst_59 = arith.constant dense<0.000000e+00> : vector<8x8xf32>
    %156 = tpu.matmul %155, %144, %cst_59 {dimension_numbers = #tpu.dot_dimension_numbers<[1], [0], [0], [1], [0, 0, 1, 1], [], []>} : vector<8x16xf32>, vector<16x8xf32>, vector<8x8xf32> -> vector<8x8xf32>
    %157 = vector.extract_strided_slice %118 {offsets = [0, 16], sizes = [8, 8], strides = [1, 1]} : vector<8x32xf32> to vector<8x8xf32>
    %158 = vector.extract_strided_slice %125 {offsets = [0, 16], sizes = [16, 8], strides = [1, 1]} : vector<16x32xf32> to vector<16x8xf32>
    %159 = vector.extract_strided_slice %126 {offsets = [0, 16], sizes = [16, 8], strides = [1, 1]} : vector<16x32xf32> to vector<16x8xf32>
    %cst_60 = arith.constant dense<0.000000e+00> : vector<8x16xf32>
    %160 = tpu.matmul %157, %158, %cst_60 {dimension_numbers = #tpu.dot_dimension_numbers<[1], [1], [0], [0], [0, 0, 1, 0], [], []>} : vector<8x8xf32>, vector<16x8xf32>, vector<8x16xf32> -> vector<8x16xf32>
    %cst_61 = arith.constant dense<0xFF800000> : vector<8xf32>
    %161 = vector.multi_reduction <maximumf>, %160, %cst_61 [1] : vector<8x16xf32> to vector<8xf32>
    %162 = vector.shape_cast %161 : vector<8xf32> to vector<8x1xf32>
    %163 = vector.broadcast %162 : vector<8x1xf32> to vector<8x16xf32>
    %164 = arith.subf %160, %163 : vector<8x16xf32>
    %165 = math.exp %164 : vector<8x16xf32>
    %cst_62 = arith.constant dense<0.000000e+00> : vector<8xf32>
    %166 = vector.multi_reduction <add>, %165, %cst_62 [1] : vector<8x16xf32> to vector<8xf32>
    %167 = vector.shape_cast %166 : vector<8xf32> to vector<8x1xf32>
    %168 = tpu.reciprocal %167 {approx = true} : vector<8x1xf32> -> vector<8x1xf32>
    %169 = vector.broadcast %168 : vector<8x1xf32> to vector<8x16xf32>
    %170 = arith.mulf %165, %169 : vector<8x16xf32>
    %cst_63 = arith.constant dense<0.000000e+00> : vector<8x8xf32>
    %171 = tpu.matmul %170, %159, %cst_63 {dimension_numbers = #tpu.dot_dimension_numbers<[1], [0], [0], [1], [0, 0, 1, 1], [], []>} : vector<8x16xf32>, vector<16x8xf32>, vector<8x8xf32> -> vector<8x8xf32>
    %172 = vector.extract_strided_slice %118 {offsets = [0, 24], sizes = [8, 8], strides = [1, 1]} : vector<8x32xf32> to vector<8x8xf32>
    %173 = vector.extract_strided_slice %125 {offsets = [0, 24], sizes = [16, 8], strides = [1, 1]} : vector<16x32xf32> to vector<16x8xf32>
    %174 = vector.extract_strided_slice %126 {offsets = [0, 24], sizes = [16, 8], strides = [1, 1]} : vector<16x32xf32> to vector<16x8xf32>
    %cst_64 = arith.constant dense<0.000000e+00> : vector<8x16xf32>
    %175 = tpu.matmul %172, %173, %cst_64 {dimension_numbers = #tpu.dot_dimension_numbers<[1], [1], [0], [0], [0, 0, 1, 0], [], []>} : vector<8x8xf32>, vector<16x8xf32>, vector<8x16xf32> -> vector<8x16xf32>
    %cst_65 = arith.constant dense<0xFF800000> : vector<8xf32>
    %176 = vector.multi_reduction <maximumf>, %175, %cst_65 [1] : vector<8x16xf32> to vector<8xf32>
    %177 = vector.shape_cast %176 : vector<8xf32> to vector<8x1xf32>
    %178 = vector.broadcast %177 : vector<8x1xf32> to vector<8x16xf32>
    %179 = arith.subf %175, %178 : vector<8x16xf32>
    %180 = math.exp %179 : vector<8x16xf32>
    %cst_66 = arith.constant dense<0.000000e+00> : vector<8xf32>
    %181 = vector.multi_reduction <add>, %180, %cst_66 [1] : vector<8x16xf32> to vector<8xf32>
    %182 = vector.shape_cast %181 : vector<8xf32> to vector<8x1xf32>
    %183 = tpu.reciprocal %182 {approx = true} : vector<8x1xf32> -> vector<8x1xf32>
    %184 = vector.broadcast %183 : vector<8x1xf32> to vector<8x16xf32>
    %185 = arith.mulf %180, %184 : vector<8x16xf32>
    %cst_67 = arith.constant dense<0.000000e+00> : vector<8x8xf32>
    %186 = tpu.matmul %185, %174, %cst_67 {dimension_numbers = #tpu.dot_dimension_numbers<[1], [0], [0], [1], [0, 0, 1, 1], [], []>} : vector<8x16xf32>, vector<16x8xf32>, vector<8x8xf32> -> vector<8x8xf32>
    %187 = tpu.concatenate %141, %156, %171, %186 in 1 : vector<8x8xf32>, vector<8x8xf32>, vector<8x8xf32>, vector<8x8xf32> -> vector<8x32xf32>
    %188 = arith.truncf %187 : vector<8x32xf32> to vector<8x32xbf16>
    %c0_68 = arith.constant 0 : index
    %c0_69 = arith.constant 0 : index
    %189 = vector.load %arg12[%c0_68, %c0_69] : memref<32x32xbf16, #tpu.memory_space<vmem>>, vector<32x32xbf16>
    %cst_70 = arith.constant dense<0.000000e+00> : vector<8x32xf32>
    %190 = tpu.matmul %188, %189, %cst_70 {dimension_numbers = #tpu.dot_dimension_numbers<[1], [0], [0], [1], [0, 0, 1, 1], [], []>} : vector<8x32xbf16>, vector<32x32xbf16>, vector<8x32xf32> -> vector<8x32xf32>
    %c0_71 = arith.constant 0 : index
    %c0_72 = arith.constant 0 : index
    %191 = vector.load %arg13[%c0_71, %c0_72] : memref<1x32xf32, #tpu.memory_space<vmem>>, vector<1x32xf32>
    %192 = vector.broadcast %191 : vector<1x32xf32> to vector<8x32xf32>
    %193 = arith.addf %190, %192 : vector<8x32xf32>
    %194 = arith.addf %112, %193 : vector<8x32xf32>
    %195 = vector.extract_strided_slice %6 {offsets = [1, 0], sizes = [1, 32], strides = [1, 1]} : vector<3x32xf32> to vector<1x32xf32>
    %196 = vector.extract_strided_slice %7 {offsets = [1, 0], sizes = [1, 32], strides = [1, 1]} : vector<3x32xf32> to vector<1x32xf32>
    %cst_73 = arith.constant dense<0.000000e+00> : vector<8xf32>
    %197 = vector.multi_reduction <add>, %194, %cst_73 [1] : vector<8x32xf32> to vector<8xf32>
    %198 = vector.shape_cast %197 : vector<8xf32> to vector<8x1xf32>
    %cst_74 = arith.constant 3.200000e+01 : f32
    %199 = vector.broadcast %cst_74 : f32 to vector<8x1xf32>
    %200 = arith.divf %198, %199 : vector<8x1xf32>
    %201 = vector.broadcast %200 : vector<8x1xf32> to vector<8x32xf32>
    %202 = arith.subf %194, %201 : vector<8x32xf32>
    %203 = arith.mulf %202, %202 : vector<8x32xf32>
    %cst_75 = arith.constant dense<0.000000e+00> : vector<8xf32>
    %204 = vector.multi_reduction <add>, %203, %cst_75 [1] : vector<8x32xf32> to vector<8xf32>
    %205 = vector.shape_cast %204 : vector<8xf32> to vector<8x1xf32>
    %cst_76 = arith.constant 3.200000e+01 : f32
    %206 = vector.broadcast %cst_76 : f32 to vector<8x1xf32>
    %207 = arith.divf %205, %206 : vector<8x1xf32>
    %208 = vector.broadcast %200 : vector<8x1xf32> to vector<8x32xf32>
    %209 = arith.subf %194, %208 : vector<8x32xf32>
    %cst_77 = arith.constant 9.99999974E-6 : f32
    %210 = vector.broadcast %cst_77 : f32 to vector<8x1xf32>
    %211 = arith.addf %207, %210 : vector<8x1xf32>
    %212 = math.rsqrt %211 : vector<8x1xf32>
    %213 = vector.broadcast %212 : vector<8x1xf32> to vector<8x32xf32>
    %214 = arith.mulf %209, %213 : vector<8x32xf32>
    %215 = vector.broadcast %195 : vector<1x32xf32> to vector<8x32xf32>
    %216 = arith.mulf %214, %215 : vector<8x32xf32>
    %217 = vector.broadcast %196 : vector<1x32xf32> to vector<8x32xf32>
    %218 = arith.addf %216, %217 : vector<8x32xf32>
    %219 = arith.truncf %218 : vector<8x32xf32> to vector<8x32xbf16>
    %c0_78 = arith.constant 0 : index
    %c0_79 = arith.constant 0 : index
    %220 = vector.load %arg14[%c0_78, %c0_79] : memref<32x64xbf16, #tpu.memory_space<vmem>>, vector<32x64xbf16>
    %cst_80 = arith.constant dense<0.000000e+00> : vector<8x64xf32>
    %221 = tpu.matmul %219, %220, %cst_80 {dimension_numbers = #tpu.dot_dimension_numbers<[1], [0], [0], [1], [0, 0, 1, 1], [], []>} : vector<8x32xbf16>, vector<32x64xbf16>, vector<8x64xf32> -> vector<8x64xf32>
    %c0_81 = arith.constant 0 : index
    %c0_82 = arith.constant 0 : index
    %222 = vector.load %arg15[%c0_81, %c0_82] : memref<1x64xf32, #tpu.memory_space<vmem>>, vector<1x64xf32>
    %223 = vector.broadcast %222 : vector<1x64xf32> to vector<8x64xf32>
    %224 = arith.addf %221, %223 : vector<8x64xf32>
    %cst_83 = arith.constant 0.000000e+00 : f32
    %225 = vector.broadcast %cst_83 : f32 to vector<8x64xf32>
    %226 = arith.maximumf %224, %225 : vector<8x64xf32>
    %227 = arith.truncf %226 : vector<8x64xf32> to vector<8x64xbf16>
    %c0_84 = arith.constant 0 : index
    %c0_85 = arith.constant 0 : index
    %228 = vector.load %arg16[%c0_84, %c0_85] : memref<64x32xbf16, #tpu.memory_space<vmem>>, vector<64x32xbf16>
    %cst_86 = arith.constant dense<0.000000e+00> : vector<8x32xf32>
    %229 = tpu.matmul %227, %228, %cst_86 {dimension_numbers = #tpu.dot_dimension_numbers<[1], [0], [0], [1], [0, 0, 1, 1], [], []>} : vector<8x64xbf16>, vector<64x32xbf16>, vector<8x32xf32> -> vector<8x32xf32>
    %c0_87 = arith.constant 0 : index
    %c0_88 = arith.constant 0 : index
    %230 = vector.load %arg17[%c0_87, %c0_88] : memref<1x32xf32, #tpu.memory_space<vmem>>, vector<1x32xf32>
    %231 = vector.broadcast %230 : vector<1x32xf32> to vector<8x32xf32>
    %232 = arith.addf %229, %231 : vector<8x32xf32>
    %233 = arith.addf %218, %232 : vector<8x32xf32>
    %234 = vector.extract_strided_slice %6 {offsets = [2, 0], sizes = [1, 32], strides = [1, 1]} : vector<3x32xf32> to vector<1x32xf32>
    %235 = vector.extract_strided_slice %7 {offsets = [2, 0], sizes = [1, 32], strides = [1, 1]} : vector<3x32xf32> to vector<1x32xf32>
    %cst_89 = arith.constant dense<0.000000e+00> : vector<8xf32>
    %236 = vector.multi_reduction <add>, %233, %cst_89 [1] : vector<8x32xf32> to vector<8xf32>
    %237 = vector.shape_cast %236 : vector<8xf32> to vector<8x1xf32>
    %cst_90 = arith.constant 3.200000e+01 : f32
    %238 = vector.broadcast %cst_90 : f32 to vector<8x1xf32>
    %239 = arith.divf %237, %238 : vector<8x1xf32>
    %240 = vector.broadcast %239 : vector<8x1xf32> to vector<8x32xf32>
    %241 = arith.subf %233, %240 : vector<8x32xf32>
    %242 = arith.mulf %241, %241 : vector<8x32xf32>
    %cst_91 = arith.constant dense<0.000000e+00> : vector<8xf32>
    %243 = vector.multi_reduction <add>, %242, %cst_91 [1] : vector<8x32xf32> to vector<8xf32>
    %244 = vector.shape_cast %243 : vector<8xf32> to vector<8x1xf32>
    %cst_92 = arith.constant 3.200000e+01 : f32
    %245 = vector.broadcast %cst_92 : f32 to vector<8x1xf32>
    %246 = arith.divf %244, %245 : vector<8x1xf32>
    %247 = vector.broadcast %239 : vector<8x1xf32> to vector<8x32xf32>
    %248 = arith.subf %233, %247 : vector<8x32xf32>
    %cst_93 = arith.constant 9.99999974E-6 : f32
    %249 = vector.broadcast %cst_93 : f32 to vector<8x1xf32>
    %250 = arith.addf %246, %249 : vector<8x1xf32>
    %251 = math.rsqrt %250 : vector<8x1xf32>
    %252 = vector.broadcast %251 : vector<8x1xf32> to vector<8x32xf32>
    %253 = arith.mulf %248, %252 : vector<8x32xf32>
    %254 = vector.broadcast %234 : vector<1x32xf32> to vector<8x32xf32>
    %255 = arith.mulf %253, %254 : vector<8x32xf32>
    %256 = vector.broadcast %235 : vector<1x32xf32> to vector<8x32xf32>
    %257 = arith.addf %255, %256 : vector<8x32xf32>
    %c0_94 = arith.constant 0 : index
    %c0_95 = arith.constant 0 : index
    %c0_96 = arith.constant 0 : index
    %258 = vector.load %arg20[%c0_94, %c0_95, %c0_96] : memref<1x8x32xf32, #tpu.memory_space<vmem>>, vector<1x8x32xf32>
    %259 = vector.shape_cast %258 : vector<1x8x32xf32> to vector<8x32xf32>
    %260 = vector.shape_cast %257 : vector<8x32xf32> to vector<1x8x32xf32>
    tpu.vector_store %arg20[%c0_94, %c0_95, %c0_96], %260 {strides = array<i32>} : memref<1x8x32xf32, #tpu.memory_space<vmem>>, vector<1x8x32xf32>,
    return
  }
  func.func @transform_0(%arg0: i32) -> (i32, i32, i32) {
    %c0_i32 = arith.constant 0 : i32
    %c0_i32_0 = arith.constant 0 : i32
    %c0_i32_1 = arith.constant 0 : i32
    return %arg0, %c0_i32, %c0_i32_0 : i32, i32, i32
  }
  func.func @transform_1(%arg0: i32) -> (i32, i32, i32) {
    %c0_i32 = arith.constant 0 : i32
    %c0_i32_0 = arith.constant 0 : i32
    %c0_i32_1 = arith.constant 0 : i32
    return %arg0, %c0_i32, %c0_i32_0 : i32, i32, i32
  }
  func.func @transform_2(%arg0: i32) -> (i32, i32, i32) {
    %c0_i32 = arith.constant 0 : i32
    %c0_i32_0 = arith.constant 0 : i32
    %c0_i32_1 = arith.constant 0 : i32
    return %arg0, %c0_i32, %c0_i32_0 : i32, i32, i32
  }
  func.func @transform_3(%arg0: i32) -> (i32, i32) {
    %c0_i32 = arith.constant 0 : i32
    %c0_i32_0 = arith.constant 0 : i32
    %c0_i32_1 = arith.constant 0 : i32
    return %c0_i32, %c0_i32_0 : i32, i32
  }
  func.func @transform_4(%arg0: i32) -> (i32, i32) {
    %c0_i32 = arith.constant 0 : i32
    %c0_i32_0 = arith.constant 0 : i32
    %c0_i32_1 = arith.constant 0 : i32
    return %c0_i32, %c0_i32_0 : i32, i32
  }
  func.func @transform_5(%arg0: i32) -> (i32, i32) {
    %c0_i32 = arith.constant 0 : i32
    %c0_i32_0 = arith.constant 0 : i32
    %c0_i32_1 = arith.constant 0 : i32
    return %c0_i32, %c0_i32_0 : i32, i32
  }
  func.func @transform_6(%arg0: i32) -> (i32, i32) {
    %c0_i32 = arith.constant 0 : i32
    %c0_i32_0 = arith.constant 0 : i32
    %c0_i32_1 = arith.constant 0 : i32
    return %c0_i32, %c0_i32_0 : i32, i32
  }
  func.func @transform_7(%arg0: i32) -> (i32, i32) {
    %c0_i32 = arith.constant 0 : i32
    %c0_i32_0 = arith.constant 0 : i32
    %c0_i32_1 = arith.constant 0 : i32
    return %c0_i32, %c0_i32_0 : i32, i32
  }
  func.func @transform_8(%arg0: i32) -> (i32, i32) {
    %c0_i32 = arith.constant 0 : i32
    %c0_i32_0 = arith.constant 0 : i32
    %c0_i32_1 = arith.constant 0 : i32
    return %c0_i32, %c0_i32_0 : i32, i32
  }
  func.func @transform_9(%arg0: i32) -> (i32, i32) {
    %c0_i32 = arith.constant 0 : i32
    %c0_i32_0 = arith.constant 0 : i32
    %c0_i32_1 = arith.constant 0 : i32
    return %c0_i32, %c0_i32_0 : i32, i32
  }
  func.func @transform_10(%arg0: i32) -> (i32, i32) {
    %c0_i32 = arith.constant 0 : i32
    %c0_i32_0 = arith.constant 0 : i32
    %c0_i32_1 = arith.constant 0 : i32
    return %c0_i32, %c0_i32_0 : i32, i32
  }
  func.func @transform_11(%arg0: i32) -> (i32, i32) {
    %c0_i32 = arith.constant 0 : i32
    %c0_i32_0 = arith.constant 0 : i32
    %c0_i32_1 = arith.constant 0 : i32
    return %c0_i32, %c0_i32_0 : i32, i32
  }
  func.func @transform_12(%arg0: i32) -> (i32, i32) {
    %c0_i32 = arith.constant 0 : i32
    %c0_i32_0 = arith.constant 0 : i32
    %c0_i32_1 = arith.constant 0 : i32
    return %c0_i32, %c0_i32_0 : i32, i32
  }
  func.func @transform_13(%arg0: i32) -> (i32, i32) {
    %c0_i32 = arith.constant 0 : i32
    %c0_i32_0 = arith.constant 0 : i32
    %c0_i32_1 = arith.constant 0 : i32
    return %c0_i32, %c0_i32_0 : i32, i32
  }
  func.func @transform_14(%arg0: i32) -> (i32, i32) {
    %c0_i32 = arith.constant 0 : i32
    %c0_i32_0 = arith.constant 0 : i32
    %c0_i32_1 = arith.constant 0 : i32
    return %c0_i32, %c0_i32_0 : i32, i32
  }
  func.func @transform_15(%arg0: i32) -> (i32, i32) {
    %c0_i32 = arith.constant 0 : i32
    %c0_i32_0 = arith.constant 0 : i32
    %c0_i32_1 = arith.constant 0 : i32
    return %c0_i32, %c0_i32_0 : i32, i32
  }
  func.func @transform_16(%arg0: i32) -> (i32, i32) {
    %c0_i32 = arith.constant 0 : i32
    %c0_i32_0 = arith.constant 0 : i32
    %c0_i32_1 = arith.constant 0 : i32
    return %c0_i32, %c0_i32_0 : i32, i32
  }
  func.func @transform_17(%arg0: i32) -> (i32, i32) {
    %c0_i32 = arith.constant 0 : i32
    %c0_i32_0 = arith.constant 0 : i32
    %c0_i32_1 = arith.constant 0 : i32
    return %c0_i32, %c0_i32_0 : i32, i32
  }
  func.func @transform_18(%arg0: i32) -> (i32, i32) {
    %c0_i32 = arith.constant 0 : i32
    %c0_i32_0 = arith.constant 0 : i32
    %c0_i32_1 = arith.constant 0 : i32
    return %c0_i32, %c0_i32_0 : i32, i32
  }
  func.func @transform_19(%arg0: i32) -> (i32, i32, i32) {
    %c0_i32 = arith.constant 0 : i32
    %c0_i32_0 = arith.constant 0 : i32
    %c0_i32_1 = arith.constant 0 : i32
    return %arg0, %c0_i32, %c0_i32_0 : i32, i32, i32
  }
}

</mosaic_0001>

<llo_original>
// kernel: tpu_custom_call.1
$region0: #{tpu_custom_call.1}
  #allocation0 [shape = 'u32[]', space=smem, size = 0x4, offset = 0x4, fixed_abs, tag = 'smem constant byte address 0x4 - core index']
  #allocation1 [shape = 'u32[144,128]{1,0:T(1,128)}', space=vmem, size = 0x12000, scoped, tag = 'internal scratch']
  %s0 = inlined_call_operand.vmem [shape: f32[2,8,32], index: 0, kind: input, shape index: {}]
  %s1 = inlined_call_operand.vmem [shape: f32[2,16,32], index: 1, kind: input, shape index: {}]
  %s2 = inlined_call_operand.hbm [shape: f32[2,8,8], index: 2, kind: input, shape index: {}]
  %s3 = inlined_call_operand.hbm [shape: bf16[32,96], index: 3, kind: input, shape index: {}]
  %s4 = inlined_call_operand.hbm [shape: f32[1,96], index: 4, kind: input, shape index: {}]
  %s5 = inlined_call_operand.hbm [shape: bf16[32,32], index: 5, kind: input, shape index: {}]
  %s6 = inlined_call_operand.hbm [shape: f32[1,32], index: 6, kind: input, shape index: {}]
  %s7 = inlined_call_operand.hbm [shape: bf16[32,32], index: 7, kind: input, shape index: {}]
  %s8 = inlined_call_operand.hbm [shape: f32[1,32], index: 8, kind: input, shape index: {}]
  %s9 = inlined_call_operand.vmem [shape: bf16[32,64], index: 9, kind: input, shape index: {}]
  %s10 = inlined_call_operand.hbm [shape: f32[1,64], index: 10, kind: input, shape index: {}]
  %s11 = inlined_call_operand.hbm [shape: bf16[32,32], index: 11, kind: input, shape index: {}]
  %s12 = inlined_call_operand.vmem [shape: f32[1,32], index: 12, kind: input, shape index: {}]
  %s13 = inlined_call_operand.hbm [shape: bf16[32,64], index: 13, kind: input, shape index: {}]
  %s14 = inlined_call_operand.hbm [shape: f32[1,64], index: 14, kind: input, shape index: {}]
  %s15 = inlined_call_operand.vmem [shape: bf16[64,32], index: 15, kind: input, shape index: {}]
  %s16 = inlined_call_operand.vmem [shape: f32[1,32], index: 16, kind: input, shape index: {}]
  %s17 = inlined_call_operand.vmem [shape: f32[3,32], index: 17, kind: input, shape index: {}]
  %s18 = inlined_call_operand.vmem [shape: f32[3,32], index: 18, kind: input, shape index: {}]
  %s19 = inlined_call_operand.hbm [shape: f32[2,8,32], index: 19, kind: output, shape index: {}]
  %s20 = sld [smem:[#allocation0]]
  $region153: #{tpu_custom_call.1} parent=0
    _
  %s22 = ssub.s32 1, %s20
  %s23 = scalar_select 0, %s22, %s20
  $region1: #{tpu_custom_call.1} parent=0
    #allocation2 [shape = 'u8[8192]{0}', space=vmem, size = 0x2000, scoped, tag = 'input window, operand 2']
    #allocation3 [shape = 's32[2]{0}', space=sflag, size = 0x8, scoped, tag = 'scoped memory for tpu_custom_call.1']
    #allocation4 [shape = 's32[2]{0}', space=sflag, size = 0x8, scoped, tag = 'scoped memory for tpu_custom_call.1']
    #allocation5 [shape = 'u8[8192]{0}', space=vmem, size = 0x2000, scoped, tag = 'input window, operand 3, single buffered']
    #allocation6 [shape = 's32[1]{0}', space=sflag, size = 0x4, scoped, tag = 'scoped memory for tpu_custom_call.1']
    #allocation7 [shape = 'u8[512]{0}', space=vmem, size = 0x400, scoped, tag = 'input window, operand 4, single buffered']
    #allocation8 [shape = 'u8[8192]{0}', space=vmem, size = 0x2000, scoped, tag = 'input window, operand 5, single buffered']
    #allocation9 [shape = 's32[1]{0}', space=sflag, size = 0x4, scoped, tag = 'scoped memory for tpu_custom_call.1']
    #allocation10 [shape = 'u8[512]{0}', space=vmem, size = 0x400, scoped, tag = 'input window, operand 6, single buffered']
    #allocation11 [shape = 'u8[8192]{0}', space=vmem, size = 0x2000, scoped, tag = 'input window, operand 7, single buffered']
    #allocation12 [shape = 's32[1]{0}', space=sflag, size = 0x4, scoped, tag = 'scoped memory for tpu_custom_call.1']
    #allocation13 [shape = 'u8[512]{0}', space=vmem, size = 0x400, scoped, tag = 'input window, operand 8, single buffered']
    #allocation14 [shape = 'u8[512]{0}', space=vmem, size = 0x400, scoped, tag = 'input window, operand 10, single buffered']
    #allocation15 [shape = 's32[1]{0}', space=sflag, size = 0x4, scoped, tag = 'scoped memory for tpu_custom_call.1']
    #allocation16 [shape = 'u8[8192]{0}', space=vmem, size = 0x2000, scoped, tag = 'input window, operand 11, single buffered']
    #allocation17 [shape = 'u8[8192]{0}', space=vmem, size = 0x2000, scoped, tag = 'input window, operand 13, single buffered']
    #allocation18 [shape = 's32[1]{0}', space=sflag, size = 0x4, scoped, tag = 'scoped memory for tpu_custom_call.1']
    #allocation19 [shape = 'u8[512]{0}', space=vmem, size = 0x400, scoped, tag = 'input window, operand 14, single buffered']
    #allocation20 [shape = 'u8[8192]{0}', space=vmem, size = 0x2000, scoped, tag = 'output window, operand 0']
    %24 = vsyncpa [#allocation3], 0
    %s25 = scalar_lea.sflag [#allocation3], 1
    %26 = vsyncpa %s25, 0
    %27 = vsyncpa [#allocation6], 0
    %28 = vsyncpa [#allocation9], 0
    %29 = vsyncpa [#allocation12], 0
    %30 = vsyncpa [#allocation15], 0
    %31 = vsyncpa [#allocation18], 0
    %32 = vsyncpa [#allocation4], 0
    %s33 = scalar_lea.sflag [#allocation4], 1
    %34 = vsyncpa %s33, 0
    loop: start=0, step=1, limit=4
    $region2: #{tpu_custom_call.1} parent=1 // loop_pre_header
      _
    $region3: #{tpu_custom_call.1} parent=1 // loop_header
      %s36 = sphi 0, %s40
      %p37 = scmp.ge.s32.totalorder %s36, 4
      %s46 = sphi 0, %s48
      %s49 = sphi 0, %s46
      %s50 = sphi 0, %s49
      %s66 = sphi 0, %s50
      %s72 = sphi 0, %s74
      %s75 = sphi 0, %s72
      %s76 = sphi 0, %s75
      %s92 = sphi 0, %s76
      %s98 = sphi 0, %s100
      %s101 = sphi 0, %s98
      %s102 = sphi 0, %s101
      %s118 = sphi 0, %s102
      %s122 = sphi 0, %s122
      %s124 = sphi 0, %s122
      %s125 = sphi 0, %s124
      %s139 = sphi 0, %s125
      %s143 = sphi 0, %s143
      %s145 = sphi 0, %s143
      %s146 = sphi 0, %s145
      %s160 = sphi 0, %s146
      %s164 = sphi 0, %s164
      %s166 = sphi 0, %s164
      %s167 = sphi 0, %s166
      %s181 = sphi 0, %s167
      %s185 = sphi 0, %s185
      %s187 = sphi 0, %s185
      %s188 = sphi 0, %s187
      %s202 = sphi 0, %s188
      %s206 = sphi 0, %s206
      %s208 = sphi 0, %s206
      %s209 = sphi 0, %s208
      %s223 = sphi 0, %s209
      %s227 = sphi 0, %s227
      %s229 = sphi 0, %s227
      %s230 = sphi 0, %s229
      %s244 = sphi 0, %s230
      %s248 = sphi 0, %s248
      %s250 = sphi 0, %s248
      %s251 = sphi 0, %s250
      %s265 = sphi 0, %s251
      %s269 = sphi 0, %s269
      %s271 = sphi 0, %s269
      %s272 = sphi 0, %s271
      %s286 = sphi 0, %s272
      %s290 = sphi 0, %s290
      %s292 = sphi 0, %s290
      %s293 = sphi 0, %s292
      %s307 = sphi 0, %s293
      %s311 = sphi 0, %s311
      %s313 = sphi 0, %s311
      %s314 = sphi 0, %s313
      %s328 = sphi 0, %s314
      %s332 = sphi 0, %s332
      %s334 = sphi 0, %s332
      %s335 = sphi 0, %s334
      %s349 = sphi 0, %s335
      %s353 = sphi 0, %s353
      %s355 = sphi 0, %s353
      %s356 = sphi 0, %s355
      %s370 = sphi 0, %s356
      %s374 = sphi 0, %s374
      %s376 = sphi 0, %s374
      %s377 = sphi 0, %s376
      %s391 = sphi 0, %s377
      %s395 = sphi 0, %s395
      %s397 = sphi 0, %s395
      %s398 = sphi 0, %s397
      %s412 = sphi 0, %s398
      %s416 = sphi 0, %s416
      %s418 = sphi 0, %s416
      %s419 = sphi 0, %s418
      %s433 = sphi 0, %s419
      %s437 = sphi 0, %s437
      %s439 = sphi 0, %s437
      %s440 = sphi 0, %s439
      %s454 = sphi 0, %s440
      %s460 = sphi 0, %s462
      %s463 = sphi 0, %s460
      %s464 = sphi 0, %s463
      %s480 = sphi 0, %s464
    $region4: #{tpu_custom_call.1} parent=1 // loop_header_branch
      %39 = sbr.rel (%p37) target = $region8
    $region5: #{tpu_custom_call.1} parent=1 // loop_body
      %s41 = ssub.s32 %s36, 1
      %s42 = ssub.s32 %s36, 2
      %s43 = sadd.s32 %s36, 1
      %s44 = ssub.s32 %s36, %s43
      %p45 = scmp.eq.s32.totalorder %s44, 0
      %s47 = sadd.s32 %s46, 1
      %s48 = scalar_select %p45, %s46, %s47
      %p51 = pneg %p45
      %p52 = scmp.eq.s32.totalorder %s36, 1
      %p53 = por %p51, %p52
      %p54 = scmp.ne.s32.totalorder %s46, %s49
      %p55 = scmp.eq.s32.totalorder %s36, 0
      %p56 = por %p54, %p55
      %p57 = scmp.ne.s32.totalorder %s46, %s49
      %p58 = scmp.eq.s32.totalorder %s41, 1
      %p59 = por %p57, %p58
      %p60 = scmp.ne.s32.totalorder %s49, %s50
      %p61 = scmp.eq.s32.totalorder %s41, 0
      %p62 = por %p60, %p61
      %p63 = scmp.ne.s32.totalorder %s49, %s50
      %p64 = scmp.eq.s32.totalorder %s42, 1
      %p65 = por %p63, %p64
      %p67 = scmp.ne.s32.totalorder %s50, %s66
      %p68 = scmp.eq.s32.totalorder %s42, 0
      %p69 = por %p67, %p68
      %s70 = ssub.s32 %s36, %s43
      %p71 = scmp.eq.s32.totalorder %s70, 0
      %s73 = sadd.s32 %s72, 1
      %s74 = scalar_select %p71, %s72, %s73
      %p77 = pneg %p71
      %p78 = scmp.eq.s32.totalorder %s36, 1
      %p79 = por %p77, %p78
      %p80 = scmp.ne.s32.totalorder %s72, %s75
      %p81 = scmp.eq.s32.totalorder %s36, 0
      %p82 = por %p80, %p81
      %p83 = scmp.ne.s32.totalorder %s72, %s75
      %p84 = scmp.eq.s32.totalorder %s41, 1
      %p85 = por %p83, %p84
      %p86 = scmp.ne.s32.totalorder %s75, %s76
      %p87 = scmp.eq.s32.totalorder %s41, 0
      %p88 = por %p86, %p87
      %p89 = scmp.ne.s32.totalorder %s75, %s76
      %p90 = scmp.eq.s32.totalorder %s42, 1
      %p91 = por %p89, %p90
      %p93 = scmp.ne.s32.totalorder %s76, %s92
      %p94 = scmp.eq.s32.totalorder %s42, 0
      %p95 = por %p93, %p94
      %s96 = ssub.s32 %s36, %s43
      %p97 = scmp.eq.s32.totalorder %s96, 0
      %s99 = sadd.s32 %s98, 1
      %s100 = scalar_select %p97, %s98, %s99
      %p103 = pneg %p97
      %p104 = scmp.eq.s32.totalorder %s36, 1
      %p105 = por %p103, %p104
      %p106 = scmp.ne.s32.totalorder %s98, %s101
      %p107 = scmp.eq.s32.totalorder %s36, 0
      %p108 = por %p106, %p107
      %p109 = scmp.ne.s32.totalorder %s98, %s101
      %p110 = scmp.eq.s32.totalorder %s41, 1
      %p111 = por %p109, %p110
      %p112 = scmp.ne.s32.totalorder %s101, %s102
      %p113 = scmp.eq.s32.totalorder %s41, 0
      %p114 = por %p112, %p113
      %p115 = scmp.ne.s32.totalorder %s101, %s102
      %p116 = scmp.eq.s32.totalorder %s42, 1
      %p117 = por %p115, %p116
      %p119 = scmp.ne.s32.totalorder %s102, %s118
      %p120 = scmp.eq.s32.totalorder %s42, 0
      %p121 = por %p119, %p120
      %s123 = sadd.s32 %s122, 1
      %p126 = scmp.eq.s32.totalorder %s36, 1
      %p127 = scmp.ne.s32.totalorder %s122, %s124
      %p128 = scmp.eq.s32.totalorder %s36, 0
      %p129 = por %p127, %p128
      %p130 = scmp.ne.s32.totalorder %s122, %s124
      %p131 = scmp.eq.s32.totalorder %s41, 1
      %p132 = por %p130, %p131
      %p133 = scmp.ne.s32.totalorder %s124, %s125
      %p134 = scmp.eq.s32.totalorder %s41, 0
      %p135 = por %p133, %p134
      %p136 = scmp.ne.s32.totalorder %s124, %s125
      %p137 = scmp.eq.s32.totalorder %s42, 1
      %p138 = por %p136, %p137
      %p140 = scmp.ne.s32.totalorder %s125, %s139
      %p141 = scmp.eq.s32.totalorder %s42, 0
      %p142 = por %p140, %p141
      %s144 = sadd.s32 %s143, 1
      %p147 = scmp.eq.s32.totalorder %s36, 1
      %p148 = scmp.ne.s32.totalorder %s143, %s145
      %p149 = scmp.eq.s32.totalorder %s36, 0
      %p150 = por %p148, %p149
      %p151 = scmp.ne.s32.totalorder %s143, %s145
      %p152 = scmp.eq.s32.totalorder %s41, 1
      %p153 = por %p151, %p152
      %p154 = scmp.ne.s32.totalorder %s145, %s146
      %p155 = scmp.eq.s32.totalorder %s41, 0
      %p156 = por %p154, %p155
      %p157 = scmp.ne.s32.totalorder %s145, %s146
      %p158 = scmp.eq.s32.totalorder %s42, 1
      %p159 = por %p157, %p158
      %p161 = scmp.ne.s32.totalorder %s146, %s160
      %p162 = scmp.eq.s32.totalorder %s42, 0
      %p163 = por %p161, %p162
      %s165 = sadd.s32 %s164, 1
      %p168 = scmp.eq.s32.totalorder %s36, 1
      %p169 = scmp.ne.s32.totalorder %s164, %s166
      %p170 = scmp.eq.s32.totalorder %s36, 0
      %p171 = por %p169, %p170
      %p172 = scmp.ne.s32.totalorder %s164, %s166
      %p173 = scmp.eq.s32.totalorder %s41, 1
      %p174 = por %p172, %p173
      %p175 = scmp.ne.s32.totalorder %s166, %s167
      %p176 = scmp.eq.s32.totalorder %s41, 0
      %p177 = por %p175, %p176
      %p178 = scmp.ne.s32.totalorder %s166, %s167
      %p179 = scmp.eq.s32.totalorder %s42, 1
      %p180 = por %p178, %p179
      %p182 = scmp.ne.s32.totalorder %s167, %s181
      %p183 = scmp.eq.s32.totalorder %s42, 0
      %p184 = por %p182, %p183
      %s186 = sadd.s32 %s185, 1
      %p189 = scmp.eq.s32.totalorder %s36, 1
      %p190 = scmp.ne.s32.totalorder %s185, %s187
      %p191 = scmp.eq.s32.totalorder %s36, 0
      %p192 = por %p190, %p191
      %p193 = scmp.ne.s32.totalorder %s185, %s187
      %p194 = scmp.eq.s32.totalorder %s41, 1
      %p195 = por %p193, %p194
      %p196 = scmp.ne.s32.totalorder %s187, %s188
      %p197 = scmp.eq.s32.totalorder %s41, 0
      %p198 = por %p196, %p197
      %p199 = scmp.ne.s32.totalorder %s187, %s188
      %p200 = scmp.eq.s32.totalorder %s42, 1
      %p201 = por %p199, %p200
      %p203 = scmp.ne.s32.totalorder %s188, %s202
      %p204 = scmp.eq.s32.totalorder %s42, 0
      %p205 = por %p203, %p204
      %s207 = sadd.s32 %s206, 1
      %p210 = scmp.eq.s32.totalorder %s36, 1
      %p211 = scmp.ne.s32.totalorder %s206, %s208
      %p212 = scmp.eq.s32.totalorder %s36, 0
      %p213 = por %p211, %p212
      %p214 = scmp.ne.s32.totalorder %s206, %s208
      %p215 = scmp.eq.s32.totalorder %s41, 1
      %p216 = por %p214, %p215
      %p217 = scmp.ne.s32.totalorder %s208, %s209
      %p218 = scmp.eq.s32.totalorder %s41, 0
      %p219 = por %p217, %p218
      %p220 = scmp.ne.s32.totalorder %s208, %s209
      %p221 = scmp.eq.s32.totalorder %s42, 1
      %p222 = por %p220, %p221
      %p224 = scmp.ne.s32.totalorder %s209, %s223
      %p225 = scmp.eq.s32.totalorder %s42, 0
      %p226 = por %p224, %p225
      %s228 = sadd.s32 %s227, 1
      %p231 = scmp.eq.s32.totalorder %s36, 1
      %p232 = scmp.ne.s32.totalorder %s227, %s229
      %p233 = scmp.eq.s32.totalorder %s36, 0
      %p234 = por %p232, %p233
      %p235 = scmp.ne.s32.totalorder %s227, %s229
      %p236 = scmp.eq.s32.totalorder %s41, 1
      %p237 = por %p235, %p236
      %p238 = scmp.ne.s32.totalorder %s229, %s230
      %p239 = scmp.eq.s32.totalorder %s41, 0
      %p240 = por %p238, %p239
      %p241 = scmp.ne.s32.totalorder %s229, %s230
      %p242 = scmp.eq.s32.totalorder %s42, 1
      %p243 = por %p241, %p242
      %p245 = scmp.ne.s32.totalorder %s230, %s244
      %p246 = scmp.eq.s32.totalorder %s42, 0
      %p247 = por %p245, %p246
      %s249 = sadd.s32 %s248, 1
      %p252 = scmp.eq.s32.totalorder %s36, 1
      %p253 = scmp.ne.s32.totalorder %s248, %s250
      %p254 = scmp.eq.s32.totalorder %s36, 0
      %p255 = por %p253, %p254
      %p256 = scmp.ne.s32.totalorder %s248, %s250
      %p257 = scmp.eq.s32.totalorder %s41, 1
      %p258 = por %p256, %p257
      %p259 = scmp.ne.s32.totalorder %s250, %s251
      %p260 = scmp.eq.s32.totalorder %s41, 0
      %p261 = por %p259, %p260
      %p262 = scmp.ne.s32.totalorder %s250, %s251
      %p263 = scmp.eq.s32.totalorder %s42, 1
      %p264 = por %p262, %p263
      %p266 = scmp.ne.s32.totalorder %s251, %s265
      %p267 = scmp.eq.s32.totalorder %s42, 0
      %p268 = por %p266, %p267
      %s270 = sadd.s32 %s269, 1
      %p273 = scmp.eq.s32.totalorder %s36, 1
      %p274 = scmp.ne.s32.totalorder %s269, %s271
      %p275 = scmp.eq.s32.totalorder %s36, 0
      %p276 = por %p274, %p275
      %p277 = scmp.ne.s32.totalorder %s269, %s271
      %p278 = scmp.eq.s32.totalorder %s41, 1
      %p279 = por %p277, %p278
      %p280 = scmp.ne.s32.totalorder %s271, %s272
      %p281 = scmp.eq.s32.totalorder %s41, 0
      %p282 = por %p280, %p281
      %p283 = scmp.ne.s32.totalorder %s271, %s272
      %p284 = scmp.eq.s32.totalorder %s42, 1
      %p285 = por %p283, %p284
      %p287 = scmp.ne.s32.totalorder %s272, %s286
      %p288 = scmp.eq.s32.totalorder %s42, 0
      %p289 = por %p287, %p288
      %s291 = sadd.s32 %s290, 1
      %p294 = scmp.eq.s32.totalorder %s36, 1
      %p295 = scmp.ne.s32.totalorder %s290, %s292
      %p296 = scmp.eq.s32.totalorder %s36, 0
      %p297 = por %p295, %p296
      %p298 = scmp.ne.s32.totalorder %s290, %s292
      %p299 = scmp.eq.s32.totalorder %s41, 1
      %p300 = por %p298, %p299
      %p301 = scmp.ne.s32.totalorder %s292, %s293
      %p302 = scmp.eq.s32.totalorder %s41, 0
      %p303 = por %p301, %p302
      %p304 = scmp.ne.s32.totalorder %s292, %s293
      %p305 = scmp.eq.s32.totalorder %s42, 1
      %p306 = por %p304, %p305
      %p308 = scmp.ne.s32.totalorder %s293, %s307
      %p309 = scmp.eq.s32.totalorder %s42, 0
      %p310 = por %p308, %p309
      %s312 = sadd.s32 %s311, 1
      %p315 = scmp.eq.s32.totalorder %s36, 1
      %p316 = scmp.ne.s32.totalorder %s311, %s313
      %p317 = scmp.eq.s32.totalorder %s36, 0
      %p318 = por %p316, %p317
      %p319 = scmp.ne.s32.totalorder %s311, %s313
      %p320 = scmp.eq.s32.totalorder %s41, 1
      %p321 = por %p319, %p320
      %p322 = scmp.ne.s32.totalorder %s313, %s314
      %p323 = scmp.eq.s32.totalorder %s41, 0
      %p324 = por %p322, %p323
      %p325 = scmp.ne.s32.totalorder %s313, %s314
      %p326 = scmp.eq.s32.totalorder %s42, 1
      %p327 = por %p325, %p326
      %p329 = scmp.ne.s32.totalorder %s314, %s328
      %p330 = scmp.eq.s32.totalorder %s42, 0
      %p331 = por %p329, %p330
      %s333 = sadd.s32 %s332, 1
      %p336 = scmp.eq.s32.totalorder %s36, 1
      %p337 = scmp.ne.s32.totalorder %s332, %s334
      %p338 = scmp.eq.s32.totalorder %s36, 0
      %p339 = por %p337, %p338
      %p340 = scmp.ne.s32.totalorder %s332, %s334
      %p341 = scmp.eq.s32.totalorder %s41, 1
      %p342 = por %p340, %p341
      %p343 = scmp.ne.s32.totalorder %s334, %s335
      %p344 = scmp.eq.s32.totalorder %s41, 0
      %p345 = por %p343, %p344
      %p346 = scmp.ne.s32.totalorder %s334, %s335
      %p347 = scmp.eq.s32.totalorder %s42, 1
      %p348 = por %p346, %p347
      %p350 = scmp.ne.s32.totalorder %s335, %s349
      %p351 = scmp.eq.s32.totalorder %s42, 0
      %p352 = por %p350, %p351
      %s354 = sadd.s32 %s353, 1
      %p357 = scmp.eq.s32.totalorder %s36, 1
      %p358 = scmp.ne.s32.totalorder %s353, %s355
      %p359 = scmp.eq.s32.totalorder %s36, 0
      %p360 = por %p358, %p359
      %p361 = scmp.ne.s32.totalorder %s353, %s355
      %p362 = scmp.eq.s32.totalorder %s41, 1
      %p363 = por %p361, %p362
      %p364 = scmp.ne.s32.totalorder %s355, %s356
      %p365 = scmp.eq.s32.totalorder %s41, 0
      %p366 = por %p364, %p365
      %p367 = scmp.ne.s32.totalorder %s355, %s356
      %p368 = scmp.eq.s32.totalorder %s42, 1
      %p369 = por %p367, %p368
      %p371 = scmp.ne.s32.totalorder %s356, %s370
      %p372 = scmp.eq.s32.totalorder %s42, 0
      %p373 = por %p371, %p372
      %s375 = sadd.s32 %s374, 1
      %p378 = scmp.eq.s32.totalorder %s36, 1
      %p379 = scmp.ne.s32.totalorder %s374, %s376
      %p380 = scmp.eq.s32.totalorder %s36, 0
      %p381 = por %p379, %p380
      %p382 = scmp.ne.s32.totalorder %s374, %s376
      %p383 = scmp.eq.s32.totalorder %s41, 1
      %p384 = por %p382, %p383
      %p385 = scmp.ne.s32.totalorder %s376, %s377
      %p386 = scmp.eq.s32.totalorder %s41, 0
      %p387 = por %p385, %p386
      %p388 = scmp.ne.s32.totalorder %s376, %s377
      %p389 = scmp.eq.s32.totalorder %s42, 1
      %p390 = por %p388, %p389
      %p392 = scmp.ne.s32.totalorder %s377, %s391
      %p393 = scmp.eq.s32.totalorder %s42, 0
      %p394 = por %p392, %p393
      %s396 = sadd.s32 %s395, 1
      %p399 = scmp.eq.s32.totalorder %s36, 1
      %p400 = scmp.ne.s32.totalorder %s395, %s397
      %p401 = scmp.eq.s32.totalorder %s36, 0
      %p402 = por %p400, %p401
      %p403 = scmp.ne.s32.totalorder %s395, %s397
      %p404 = scmp.eq.s32.totalorder %s41, 1
      %p405 = por %p403, %p404
      %p406 = scmp.ne.s32.totalorder %s397, %s398
      %p407 = scmp.eq.s32.totalorder %s41, 0
      %p408 = por %p406, %p407
      %p409 = scmp.ne.s32.totalorder %s397, %s398
      %p410 = scmp.eq.s32.totalorder %s42, 1
      %p411 = por %p409, %p410
      %p413 = scmp.ne.s32.totalorder %s398, %s412
      %p414 = scmp.eq.s32.totalorder %s42, 0
      %p415 = por %p413, %p414
      %s417 = sadd.s32 %s416, 1
      %p420 = scmp.eq.s32.totalorder %s36, 1
      %p421 = scmp.ne.s32.totalorder %s416, %s418
      %p422 = scmp.eq.s32.totalorder %s36, 0
      %p423 = por %p421, %p422
      %p424 = scmp.ne.s32.totalorder %s416, %s418
      %p425 = scmp.eq.s32.totalorder %s41, 1
      %p426 = por %p424, %p425
      %p427 = scmp.ne.s32.totalorder %s418, %s419
      %p428 = scmp.eq.s32.totalorder %s41, 0
      %p429 = por %p427, %p428
      %p430 = scmp.ne.s32.totalorder %s418, %s419
      %p431 = scmp.eq.s32.totalorder %s42, 1
      %p432 = por %p430, %p431
      %p434 = scmp.ne.s32.totalorder %s419, %s433
      %p435 = scmp.eq.s32.totalorder %s42, 0
      %p436 = por %p434, %p435
      %s438 = sadd.s32 %s437, 1
      %p441 = scmp.eq.s32.totalorder %s36, 1
      %p442 = scmp.ne.s32.totalorder %s437, %s439
      %p443 = scmp.eq.s32.totalorder %s36, 0
      %p444 = por %p442, %p443
      %p445 = scmp.ne.s32.totalorder %s437, %s439
      %p446 = scmp.eq.s32.totalorder %s41, 1
      %p447 = por %p445, %p446
      %p448 = scmp.ne.s32.totalorder %s439, %s440
      %p449 = scmp.eq.s32.totalorder %s41, 0
      %p450 = por %p448, %p449
      %p451 = scmp.ne.s32.totalorder %s439, %s440
      %p452 = scmp.eq.s32.totalorder %s42, 1
      %p453 = por %p451, %p452
      %p455 = scmp.ne.s32.totalorder %s440, %s454
      %p456 = scmp.eq.s32.totalorder %s42, 0
      %p457 = por %p455, %p456
      %s458 = ssub.s32 %s36, %s43
      %p459 = scmp.eq.s32.totalorder %s458, 0
      %s461 = sadd.s32 %s460, 1
      %s462 = scalar_select %p459, %s460, %s461
      %p465 = pneg %p459
      %p466 = scmp.eq.s32.totalorder %s36, 1
      %p467 = por %p465, %p466
      %p468 = scmp.ne.s32.totalorder %s460, %s463
      %p469 = scmp.eq.s32.totalorder %s36, 0
      %p470 = por %p468, %p469
      %p471 = scmp.ne.s32.totalorder %s460, %s463
      %p472 = scmp.eq.s32.totalorder %s41, 1
      %p473 = por %p471, %p472
      %p474 = scmp.ne.s32.totalorder %s463, %s464
      %p475 = scmp.eq.s32.totalorder %s41, 0
      %p476 = por %p474, %p475
      %p477 = scmp.ne.s32.totalorder %s463, %s464
      %p478 = scmp.eq.s32.totalorder %s42, 1
      %p479 = por %p477, %p478
      %p481 = scmp.ne.s32.totalorder %s464, %s480
      %p482 = scmp.eq.s32.totalorder %s42, 0
      %p483 = por %p481, %p482
      %p484 = scmp.le.s32.totalorder 1, %s36
      %p485 = scmp.lt.s32.totalorder %s36, 3
      %p486 = pnand %p484, %p485
      %p487 = pneg %p486
      // Predicated region
      $region9: #{tpu_custom_call.1} parent=5 // pred_check
        _
      $region10: #{tpu_custom_call.1} parent=5 // pred_check_branch
        %489 = sbr.rel (%p486) target = $region12
      $region11: #{tpu_custom_call.1} parent=5 // pred_region
        %s490 = ssub.s32 %s36, 1
        // Predicated region
        $region13: #{tpu_custom_call.1} parent=11 // pred_check
          %p491 = pneg %p135
        $region14: #{tpu_custom_call.1} parent=11 // pred_check_branch
          %493 = sbr.rel (%p491) target = $region16
        $region15: #{tpu_custom_call.1} parent=11 // pred_region
          %s495 = ssub.s32 256, 256
          %496 = vsyncadd [#allocation6], %s495
          %s497 = sshll.u32 [#allocation5], 4
          %s498 = int_to_ptr.vmem [resolvable:$true] %s497
          %503 = dma.hbm_to_vmem [thread:$0]  %s3, 256, %s498, [#allocation6], 64, 64, 4
        $region16: #{tpu_custom_call.1} parent=11 // pred_fallthru
          _
        // Predicated region
        $region17: #{tpu_custom_call.1} parent=11 // pred_check
          %p504 = pneg %p156
        $region18: #{tpu_custom_call.1} parent=11 // pred_check_branch
          %506 = sbr.rel (%p504) target = $region20
        $region19: #{tpu_custom_call.1} parent=11 // pred_region
          %s508 = ssub.s32 16, 16
          %509 = vsyncadd [#allocation6], %s508
          %s511 = sshll.u32 [#allocation7], 4
          %s512 = int_to_ptr.vmem [resolvable:$true] %s511
          %514 = dma.hbm_to_vmem [thread:$0]  %s4, 16, %s512, [#allocation6]
        $region20: #{tpu_custom_call.1} parent=11 // pred_fallthru
          _
        // Predicated region
        $region21: #{tpu_custom_call.1} parent=11 // pred_check
          %p515 = pneg %p177
        $region22: #{tpu_custom_call.1} parent=11 // pred_check_branch
          %517 = sbr.rel (%p515) target = $region24
        $region23: #{tpu_custom_call.1} parent=11 // pred_region
          %s519 = ssub.s32 256, 256
          %520 = vsyncadd [#allocation9], %s519
          %s521 = sshll.u32 [#allocation8], 4
          %s522 = int_to_ptr.vmem [resolvable:$true] %s521
          %527 = dma.hbm_to_vmem [thread:$0]  %s5, 256, %s522, [#allocation9], 64, 64, 4
        $region24: #{tpu_custom_call.1} parent=11 // pred_fallthru
          _
        // Predicated region
        $region25: #{tpu_custom_call.1} parent=11 // pred_check
          %p528 = pneg %p198
        $region26: #{tpu_custom_call.1} parent=11 // pred_check_branch
          %530 = sbr.rel (%p528) target = $region28
        $region27: #{tpu_custom_call.1} parent=11 // pred_region
          %s532 = ssub.s32 16, 16
          %533 = vsyncadd [#allocation9], %s532
          %s535 = sshll.u32 [#allocation10], 4
          %s536 = int_to_ptr.vmem [resolvable:$true] %s535
          %538 = dma.hbm_to_vmem [thread:$0]  %s6, 16, %s536, [#allocation9]
        $region28: #{tpu_custom_call.1} parent=11 // pred_fallthru
          _
        // Predicated region
        $region29: #{tpu_custom_call.1} parent=11 // pred_check
          %p539 = pneg %p219
        $region30: #{tpu_custom_call.1} parent=11 // pred_check_branch
          %541 = sbr.rel (%p539) target = $region32
        $region31: #{tpu_custom_call.1} parent=11 // pred_region
          %s543 = ssub.s32 256, 256
          %544 = vsyncadd [#allocation12], %s543
          %s545 = sshll.u32 [#allocation11], 4
          %s546 = int_to_ptr.vmem [resolvable:$true] %s545
          %551 = dma.hbm_to_vmem [thread:$0]  %s7, 256, %s546, [#allocation12], 64, 64, 4
        $region32: #{tpu_custom_call.1} parent=11 // pred_fallthru
          _
        // Predicated region
        $region33: #{tpu_custom_call.1} parent=11 // pred_check
          %p552 = pneg %p240
        $region34: #{tpu_custom_call.1} parent=11 // pred_check_branch
          %554 = sbr.rel (%p552) target = $region36
        $region35: #{tpu_custom_call.1} parent=11 // pred_region
          %s556 = ssub.s32 16, 16
          %557 = vsyncadd [#allocation12], %s556
          %s559 = sshll.u32 [#allocation13], 4
          %s560 = int_to_ptr.vmem [resolvable:$true] %s559
          %562 = dma.hbm_to_vmem [thread:$0]  %s8, 16, %s560, [#allocation12]
        $region36: #{tpu_custom_call.1} parent=11 // pred_fallthru
          _
        // Predicated region
        $region37: #{tpu_custom_call.1} parent=11 // pred_check
          %p563 = pneg %p261
        $region38: #{tpu_custom_call.1} parent=11 // pred_check_branch
          %565 = sbr.rel (%p563) target = $region40
        $region39: #{tpu_custom_call.1} parent=11 // pred_region
          _
        $region40: #{tpu_custom_call.1} parent=11 // pred_fallthru
          _
        // Predicated region
        $region41: #{tpu_custom_call.1} parent=11 // pred_check
          %p566 = pneg %p282
        $region42: #{tpu_custom_call.1} parent=11 // pred_check_branch
          %568 = sbr.rel (%p566) target = $region44
        $region43: #{tpu_custom_call.1} parent=11 // pred_region
          %s570 = ssub.s32 16, 16
          %571 = vsyncadd [#allocation15], %s570
          %s573 = sshll.u32 [#allocation14], 4
          %s574 = int_to_ptr.vmem [resolvable:$true] %s573
          %576 = dma.hbm_to_vmem [thread:$0]  %s10, 16, %s574, [#allocation15]
        $region44: #{tpu_custom_call.1} parent=11 // pred_fallthru
          _
        // Predicated region
        $region45: #{tpu_custom_call.1} parent=11 // pred_check
          %p577 = pneg %p303
        $region46: #{tpu_custom_call.1} parent=11 // pred_check_branch
          %579 = sbr.rel (%p577) target = $region48
        $region47: #{tpu_custom_call.1} parent=11 // pred_region
          %s581 = ssub.s32 256, 256
          %582 = vsyncadd [#allocation15], %s581
          %s583 = sshll.u32 [#allocation16], 4
          %s584 = int_to_ptr.vmem [resolvable:$true] %s583
          %589 = dma.hbm_to_vmem [thread:$0]  %s11, 256, %s584, [#allocation15], 64, 64, 4
        $region48: #{tpu_custom_call.1} parent=11 // pred_fallthru
          _
        // Predicated region
        $region49: #{tpu_custom_call.1} parent=11 // pred_check
          %p590 = pneg %p324
        $region50: #{tpu_custom_call.1} parent=11 // pred_check_branch
          %592 = sbr.rel (%p590) target = $region52
        $region51: #{tpu_custom_call.1} parent=11 // pred_region
          _
        $region52: #{tpu_custom_call.1} parent=11 // pred_fallthru
          _
        // Predicated region
        $region53: #{tpu_custom_call.1} parent=11 // pred_check
          %p593 = pneg %p345
        $region54: #{tpu_custom_call.1} parent=11 // pred_check_branch
          %595 = sbr.rel (%p593) target = $region56
        $region55: #{tpu_custom_call.1} parent=11 // pred_region
          %s597 = ssub.s32 256, 256
          %598 = vsyncadd [#allocation18], %s597
          %s599 = sshll.u32 [#allocation17], 4
          %s600 = int_to_ptr.vmem [resolvable:$true] %s599
          %605 = dma.hbm_to_vmem [thread:$0]  %s13, 256, %s600, [#allocation18], 64, 64, 4
        $region56: #{tpu_custom_call.1} parent=11 // pred_fallthru
          _
        // Predicated region
        $region57: #{tpu_custom_call.1} parent=11 // pred_check
          %p606 = pneg %p366
        $region58: #{tpu_custom_call.1} parent=11 // pred_check_branch
          %608 = sbr.rel (%p606) target = $region60
        $region59: #{tpu_custom_call.1} parent=11 // pred_region
          %s610 = ssub.s32 16, 16
          %611 = vsyncadd [#allocation18], %s610
          %s613 = sshll.u32 [#allocation19], 4
          %s614 = int_to_ptr.vmem [resolvable:$true] %s613
          %616 = dma.hbm_to_vmem [thread:$0]  %s14, 16, %s614, [#allocation18]
        $region60: #{tpu_custom_call.1} parent=11 // pred_fallthru
          _
        // Predicated region
        $region61: #{tpu_custom_call.1} parent=11 // pred_check
          %p617 = pneg %p387
        $region62: #{tpu_custom_call.1} parent=11 // pred_check_branch
          %619 = sbr.rel (%p617) target = $region64
        $region63: #{tpu_custom_call.1} parent=11 // pred_region
          _
        $region64: #{tpu_custom_call.1} parent=11 // pred_fallthru
          _
        // Predicated region
        $region65: #{tpu_custom_call.1} parent=11 // pred_check
          %p620 = pneg %p408
        $region66: #{tpu_custom_call.1} parent=11 // pred_check_branch
          %622 = sbr.rel (%p620) target = $region68
        $region67: #{tpu_custom_call.1} parent=11 // pred_region
          _
        $region68: #{tpu_custom_call.1} parent=11 // pred_fallthru
          _
        // Predicated region
        $region69: #{tpu_custom_call.1} parent=11 // pred_check
          %p623 = pneg %p429
        $region70: #{tpu_custom_call.1} parent=11 // pred_check_branch
          %625 = sbr.rel (%p623) target = $region72
        $region71: #{tpu_custom_call.1} parent=11 // pred_region
          _
        $region72: #{tpu_custom_call.1} parent=11 // pred_fallthru
          _
        // Predicated region
        $region73: #{tpu_custom_call.1} parent=11 // pred_check
          %p626 = pneg %p450
        $region74: #{tpu_custom_call.1} parent=11 // pred_check_branch
          %628 = sbr.rel (%p626) target = $region76
        $region75: #{tpu_custom_call.1} parent=11 // pred_region
          _
        $region76: #{tpu_custom_call.1} parent=11 // pred_fallthru
          _
      $region12: #{tpu_custom_call.1} parent=5 // pred_fallthru
        _
      %p629 = scmp.lt.s32.totalorder %s36, 2
      // Predicated region
      $region77: #{tpu_custom_call.1} parent=5 // pred_check
        %p630 = pneg %p629
      $region78: #{tpu_custom_call.1} parent=5 // pred_check_branch
        %632 = sbr.rel (%p630) target = $region80
      $region79: #{tpu_custom_call.1} parent=5 // pred_region
        // Predicated region
        $region81: #{tpu_custom_call.1} parent=79 // pred_check
          %p633 = pneg %p56
        $region82: #{tpu_custom_call.1} parent=79 // pred_check_branch
          %635 = sbr.rel (%p633) target = $region84
        $region83: #{tpu_custom_call.1} parent=79 // pred_region
          %p636 = scmp.lt.s32.totalorder %s36, 1
          %s637 = scalar_select %p636, %s36, 1
          %s638 = smul.addr %s637, 8
          %s639 = scalar_lea.vmem %s0, %s638
        $region84: #{tpu_custom_call.1} parent=79 // pred_fallthru
          _
        // Predicated region
        $region85: #{tpu_custom_call.1} parent=79 // pred_check
          %p640 = pneg %p82
        $region86: #{tpu_custom_call.1} parent=79 // pred_check_branch
          %642 = sbr.rel (%p640) target = $region88
        $region87: #{tpu_custom_call.1} parent=79 // pred_region
          %p643 = scmp.lt.s32.totalorder %s36, 1
          %s644 = scalar_select %p643, %s36, 1
          %s645 = smul.addr %s644, 2
          %s646 = smul.addr %s645, 8
          %s647 = scalar_lea.vmem %s1, %s646
        $region88: #{tpu_custom_call.1} parent=79 // pred_fallthru
          _
        // Predicated region
        $region89: #{tpu_custom_call.1} parent=79 // pred_check
          %p648 = pneg %p108
        $region90: #{tpu_custom_call.1} parent=79 // pred_check_branch
          %650 = sbr.rel (%p648) target = $region92
        $region91: #{tpu_custom_call.1} parent=79 // pred_region
          %s651 = sand.u32 %s98, 1
          %s652 = scalar_lea.sflag [#allocation3], %s651
          %s653 = sand.u32 %s98, 1
          %s654 = smul.addr %s653, 8
          %s655 = scalar_lea.vmem [#allocation2], %s654
          %s657 = ssub.s32 128, 128
          %658 = vsyncadd %s652, %s657
          %s659 = smul.addr %s36, 128
          %s660 = scalar_lea.hbm %s2, %s659
          %s662 = sshll.u32 %s655, 4
          %s663 = int_to_ptr.vmem [resolvable:$true] %s662
          %665 = dma.hbm_to_vmem [thread:$0]  %s660, 128, %s663, %s652
        $region92: #{tpu_custom_call.1} parent=79 // pred_fallthru
          _
      $region80: #{tpu_custom_call.1} parent=5 // pred_fallthru
        _
      %p666 = scmp.le.s32.totalorder 1, %s36
      %p667 = scmp.lt.s32.totalorder %s36, 3
      %p668 = pnand %p666, %p667
      %p669 = pneg %p668
      // Predicated region
      $region93: #{tpu_custom_call.1} parent=5 // pred_check
        _
      $region94: #{tpu_custom_call.1} parent=5 // pred_check_branch
        %671 = sbr.rel (%p668) target = $region96
      $region95: #{tpu_custom_call.1} parent=5 // pred_region
        %s672 = ssub.s32 %s36, 1
        %s673 = sand.u32 %s101, 1
        %s674 = scalar_lea.sflag [#allocation3], %s673
        %s675 = sand.u32 %s101, 1
        %s676 = smul.addr %s675, 8
        %s677 = scalar_lea.vmem [#allocation2], %s676
        // Predicated region
        $region97: #{tpu_custom_call.1} parent=95 // pred_check
          %p678 = pneg %p114
        $region98: #{tpu_custom_call.1} parent=95 // pred_check_branch
          %680 = sbr.rel (%p678) target = $region100
        $region99: #{tpu_custom_call.1} parent=95 // pred_region
          %681 = dma.done %s674, 128
        $region100: #{tpu_custom_call.1} parent=95 // pred_fallthru
          _
        // Predicated region
        $region101: #{tpu_custom_call.1} parent=95 // pred_check
          %p682 = pneg %p135
        $region102: #{tpu_custom_call.1} parent=95 // pred_check_branch
          %684 = sbr.rel (%p682) target = $region104
        $region103: #{tpu_custom_call.1} parent=95 // pred_region
          %685 = dma.done [#allocation6], 256
        $region104: #{tpu_custom_call.1} parent=95 // pred_fallthru
          _
        // Predicated region
        $region105: #{tpu_custom_call.1} parent=95 // pred_check
          %p686 = pneg %p156
        $region106: #{tpu_custom_call.1} parent=95 // pred_check_branch
          %688 = sbr.rel (%p686) target = $region108
        $region107: #{tpu_custom_call.1} parent=95 // pred_region
          %689 = dma.done [#allocation6], 16
        $region108: #{tpu_custom_call.1} parent=95 // pred_fallthru
          _
        // Predicated region
        $region109: #{tpu_custom_call.1} parent=95 // pred_check
          %p690 = pneg %p177
        $region110: #{tpu_custom_call.1} parent=95 // pred_check_branch
          %692 = sbr.rel (%p690) target = $region112
        $region111: #{tpu_custom_call.1} parent=95 // pred_region
          %693 = dma.done [#allocation9], 256
        $region112: #{tpu_custom_call.1} parent=95 // pred_fallthru
          _
        // Predicated region
        $region113: #{tpu_custom_call.1} parent=95 // pred_check
          %p694 = pneg %p198
        $region114: #{tpu_custom_call.1} parent=95 // pred_check_branch
          %696 = sbr.rel (%p694) target = $region116
        $region115: #{tpu_custom_call.1} parent=95 // pred_region
          %697 = dma.done [#allocation9], 16
        $region116: #{tpu_custom_call.1} parent=95 // pred_fallthru
          _
        // Predicated region
        $region117: #{tpu_custom_call.1} parent=95 // pred_check
          %p698 = pneg %p219
        $region118: #{tpu_custom_call.1} parent=95 // pred_check_branch
          %700 = sbr.rel (%p698) target = $region120
        $region119: #{tpu_custom_call.1} parent=95 // pred_region
          %701 = dma.done [#allocation12], 256
        $region120: #{tpu_custom_call.1} parent=95 // pred_fallthru
          _
        // Predicated region
        $region121: #{tpu_custom_call.1} parent=95 // pred_check
          %p702 = pneg %p240
        $region122: #{tpu_custom_call.1} parent=95 // pred_check_branch
          %704 = sbr.rel (%p702) target = $region124
        $region123: #{tpu_custom_call.1} parent=95 // pred_region
          %705 = dma.done [#allocation12], 16
        $region124: #{tpu_custom_call.1} parent=95 // pred_fallthru
          _
        // Predicated region
        $region125: #{tpu_custom_call.1} parent=95 // pred_check
          %p706 = pneg %p282
        $region126: #{tpu_custom_call.1} parent=95 // pred_check_branch
          %708 = sbr.rel (%p706) target = $region128
        $region127: #{tpu_custom_call.1} parent=95 // pred_region
          %709 = dma.done [#allocation15], 16
        $region128: #{tpu_custom_call.1} parent=95 // pred_fallthru
          _
        // Predicated region
        $region129: #{tpu_custom_call.1} parent=95 // pred_check
          %p710 = pneg %p303
        $region130: #{tpu_custom_call.1} parent=95 // pred_check_branch
          %712 = sbr.rel (%p710) target = $region132
        $region131: #{tpu_custom_call.1} parent=95 // pred_region
          %713 = dma.done [#allocation15], 256
        $region132: #{tpu_custom_call.1} parent=95 // pred_fallthru
          _
        // Predicated region
        $region133: #{tpu_custom_call.1} parent=95 // pred_check
          %p714 = pneg %p345
        $region134: #{tpu_custom_call.1} parent=95 // pred_check_branch
          %716 = sbr.rel (%p714) target = $region136
        $region135: #{tpu_custom_call.1} parent=95 // pred_region
          %717 = dma.done [#allocation18], 256
        $region136: #{tpu_custom_call.1} parent=95 // pred_fallthru
          _
        // Predicated region
        $region137: #{tpu_custom_call.1} parent=95 // pred_check
          %p718 = pneg %p366
        $region138: #{tpu_custom_call.1} parent=95 // pred_check_branch
          %720 = sbr.rel (%p718) target = $region140
        $region139: #{tpu_custom_call.1} parent=95 // pred_region
          %721 = dma.done [#allocation18], 16
        $region140: #{tpu_custom_call.1} parent=95 // pred_fallthru
          _
        %p722 = scmp.lt.s32.totalorder %s41, 1
        %s723 = scalar_select %p722, %s41, 1
        %s724 = smul.addr %s723, 8
        %s725 = scalar_lea.vmem %s0, %s724
        %p726 = pneg %p62
        %p727 = pneg %p59
        %p728 = scmp.lt.s32.totalorder %s41, 1
        %s729 = scalar_select %p728, %s41, 1
        %s730 = smul.addr %s729, 2
        %s731 = smul.addr %s730, 8
        %s732 = scalar_lea.vmem %s1, %s731
        %p733 = pneg %p88
        %p734 = pneg %p85
        %s735 = sand.u32 %s101, 1
        %s736 = scalar_lea.sflag [#allocation3], %s735
        %s737 = sand.u32 %s101, 1
        %s738 = smul.addr %s737, 8
        %s739 = scalar_lea.vmem [#allocation2], %s738
        %p740 = pneg %p114
        %p741 = pneg %p111
        %p742 = pneg %p135
        %p743 = pneg %p132
        %p744 = pneg %p156
        %p745 = pneg %p153
        %p746 = pneg %p177
        %p747 = pneg %p174
        %p748 = pneg %p198
        %p749 = pneg %p195
        %p750 = pneg %p219
        %p751 = pneg %p216
        %p752 = pneg %p240
        %p753 = pneg %p237
        %p754 = pneg %p261
        %p755 = pneg %p258
        %p756 = pneg %p282
        %p757 = pneg %p279
        %p758 = pneg %p303
        %p759 = pneg %p300
        %p760 = pneg %p324
        %p761 = pneg %p321
        %p762 = pneg %p345
        %p763 = pneg %p342
        %p764 = pneg %p366
        %p765 = pneg %p363
        %p766 = pneg %p387
        %p767 = pneg %p384
        %p768 = pneg %p408
        %p769 = pneg %p405
        %p770 = pneg %p429
        %p771 = pneg %p426
        %p772 = pneg %p450
        %p773 = pneg %p447
        %p774 = pneg %p476
        %p775 = pneg %p473
        %s776 = sand.u32 %s463, 1
        %s777 = scalar_lea.sflag [#allocation4], %s776
        %s778 = sand.u32 %s463, 1
        %s779 = smul.addr %s778, 8
        %s780 = scalar_lea.vmem [#allocation20], %s779
        %p781 = scmp.lt.s32.totalorder %s41, 1
        %s782 = scalar_select %p781, %s41, 1
        %s783 = smul.addr %s782, 8
        %s784 = scalar_lea.vmem %s0, %s783
        %p785 = scmp.lt.s32.totalorder %s41, 1
        %s786 = scalar_select %p785, %s41, 1
        %s787 = smul.addr %s786, 2
        %s788 = smul.addr %s787, 8
        %s789 = scalar_lea.vmem %s1, %s788
        %v791 = vld [vmem:[%s784] sm:$0xff]
        %v792 = vld [vmem:[%s789] sm:$0xff]
        %v793 = vld [vmem:[%s789 + $0x8] sm:$0xff]
        %v794 = vld [vmem:[%s677] sm:$0xff]
        %v795 = vld [vmem:[%s17] sm:$0x7]
        %v796 = vld [vmem:[%s18] sm:$0x7]
        %v797 = vpack.c.bf16 %v791, %v791
        %v798 = vld [vmem:[#allocation5] sm:$0xf]
        %v799 = vld [vmem:[#allocation5 + $0x4] sm:$0xf]
        %v800 = vld [vmem:[#allocation5 + $0x8] sm:$0xf]
        %v801 = vld [vmem:[#allocation5 + $0xc] sm:$0xf]
        %v802 = vld [vmem:[#allocation7] sm:$0x1]
        %v804 = vlaneseq
        %v805 = vshrl.u32 %v804, 7
        %v806 = vsub.s32 0, %v805
        %v807 = vrot.slane %v802, %v806
        %v813 = vunpack.c.l.b16 %v798
        %v814 = vunpack.c.l.b16 %v799
        %v815 = vunpack.c.l.b16 %v800
        %v816 = vunpack.c.l.b16 %v801
        %v817 = vpack.c.b16 %v814, %v813
        %v818 = vpack.c.b16 %v816, %v815
        %vm821 = vcmask 261120
        %v823 = vsel %vm821, %v797, 0
        %825 = vmatprep.subr.bf16.mxu0 0
        %826 = vmatpush1.bf16.msra.mxu0 0
        %827 = vmatprep.subr.bf16.mxu0 0
        %828 = vmatpush1.bf16.msra.mxu0 0
        %829 = vmatprep.subr.bf16.mxu0 0
        %830 = vmatpush1.bf16.msra.mxu0 0
        %831 = vmatprep.subr.bf16.mxu0 0
        %832 = vmatpush1.bf16.msra.mxu0 0
        %833 = vmatprep.subr.bf16.mxu0 0
        %834 = vmatpush1.bf16.msra.mxu0 0
        %835 = vmatprep.subr.bf16.mxu0 0
        %836 = vmatpush1.bf16.msra.mxu0 0
        %837 = vmatprep.subr.bf16.mxu0 0
        %838 = vmatpush1.bf16.msra.mxu0 %v818
        %839 = vmatprep.subr.bf16.mxu0 0
        %840 = vmatpush1.bf16.msra.mxu0 %v817
        %841 = vmatprep.subr.bf16.mxu0 0
        %842 = vmatpush2.bf16.msra.mxu0 0
        %843 = vmatprep.subr.bf16.mxu0 0
        %844 = vmatpush2.bf16.msra.mxu0 0
        %845 = vmatprep.subr.bf16.mxu0 0
        %846 = vmatpush2.bf16.msra.mxu0 0
        %847 = vmatprep.subr.bf16.mxu0 0
        %848 = vmatpush2.bf16.msra.mxu0 0
        %849 = vmatprep.subr.bf16.mxu0 0
        %850 = vmatpush2.bf16.msra.mxu0 0
        %851 = vmatprep.subr.bf16.mxu0 0
        %852 = vmatpush2.bf16.msra.mxu0 0
        %853 = vmatprep.subr.bf16.mxu0 0
        %854 = vmatpush2.bf16.msra.mxu0 0
        %855 = vmatprep.subr.bf16.mxu0 0
        %856 = vmatpush2.bf16.msra.mxu0 0
        %857 = vmatprep.mubr.bf16.mxu0 0
        %858 = vmatmul.mubr.bf16.gmra.mxu0 %v823
        %v859 = vpop.f32.mrf.mxu0
        %v860 = vadd.f32 %v807, %v859
        %v861 = vpop.f32.mrf.mxu0
        %v862 = vpop.f32.mrf.mxu0
        %v863 = vpop.f32.mrf.mxu0
        %864 = vdwg.mxu0
        %866 = vrot.lane.b32.xlu0 %v860, 96
        %v867 = vpop.permute.xlu0 %866
        %vm868 = vcmask 64512
        %v869 = vsel %vm868, %v860, 0
        %v871 = vsel %vm868, %v867, 0
        %873 = vmatprep.subr.mxu0 0.0
        %874 = vmatpush1.xpose.msra.mxu0 0.0
        %875 = vmatprep.subr.mxu0 0.0
        %876 = vmatpush1.xpose.msra.mxu0 0.0
        %877 = vmatprep.subr.mxu0 0.0
        %878 = vmatpush1.xpose.msra.mxu0 0.0
        %879 = vmatprep.subr.mxu0 0.0
        %880 = vmatpush1.xpose.msra.mxu0 0.0
        %881 = vmatprep.subr.mxu0 0.0
        %882 = vmatpush1.xpose.msra.mxu0 0.0
        %883 = vmatprep.subr.mxu0 0.0
        %884 = vmatpush1.xpose.msra.mxu0 0.0
        %885 = vmatprep.subr.mxu0 0.0
        %886 = vmatpush1.xpose.msra.mxu0 0.0
        %887 = vmatprep.subr.mxu0 0.0
        %888 = vmatpush1.xpose.msra.mxu0 0.0
        %889 = vmatprep.subr.mxu0 0.0
        %890 = vmatpush1.xpose.msra.mxu0 0.0
        %891 = vmatprep.subr.mxu0 0.0
        %892 = vmatpush1.xpose.msra.mxu0 0.0
        %893 = vmatprep.subr.mxu0 0.0
        %894 = vmatpush1.xpose.msra.mxu0 0.0
        %895 = vmatprep.subr.mxu0 0.0
        %896 = vmatpush1.xpose.msra.mxu0 0.0
        %897 = vmatprep.subr.mxu0 0.0
        %898 = vmatpush1.xpose.msra.mxu0 0.0
        %899 = vmatprep.subr.mxu0 0.0
        %900 = vmatpush1.xpose.msra.mxu0 0.0
        %901 = vmatprep.subr.mxu0 0.0
        %902 = vmatpush1.xpose.msra.mxu0 0.0
        %903 = vmatprep.subr.mxu0 0.0
        %904 = vmatpush1.xpose.msra.mxu0 %v871
        %905 = vmatprep.subr.mxu0 0.0
        %906 = vmatpush2.xpose.msra.mxu0 0.0
        %907 = vmatprep.subr.mxu0 0.0
        %908 = vmatpush2.xpose.msra.mxu0 0.0
        %909 = vmatprep.subr.mxu0 0.0
        %910 = vmatpush2.xpose.msra.mxu0 0.0
        %911 = vmatprep.subr.mxu0 0.0
        %912 = vmatpush2.xpose.msra.mxu0 0.0
        %913 = vmatprep.subr.mxu0 0.0
        %914 = vmatpush2.xpose.msra.mxu0 0.0
        %915 = vmatprep.subr.mxu0 0.0
        %916 = vmatpush2.xpose.msra.mxu0 0.0
        %917 = vmatprep.subr.mxu0 0.0
        %918 = vmatpush2.xpose.msra.mxu0 0.0
        %919 = vmatprep.subr.mxu0 0.0
        %920 = vmatpush2.xpose.msra.mxu0 0.0
        %921 = vmatprep.subr.mxu0 0.0
        %922 = vmatpush2.xpose.msra.mxu0 0.0
        %923 = vmatprep.subr.mxu0 0.0
        %924 = vmatpush2.xpose.msra.mxu0 0.0
        %925 = vmatprep.subr.mxu0 0.0
        %926 = vmatpush2.xpose.msra.mxu0 0.0
        %927 = vmatprep.subr.mxu0 0.0
        %928 = vmatpush2.xpose.msra.mxu0 0.0
        %929 = vmatprep.subr.mxu0 0.0
        %930 = vmatpush2.xpose.msra.mxu0 0.0
        %931 = vmatprep.subr.mxu0 0.0
        %932 = vmatpush2.xpose.msra.mxu0 0.0
        %933 = vmatprep.subr.mxu0 0.0
        %934 = vmatpush2.xpose.msra.mxu0 0.0
        %935 = vmatprep.subr.mxu0 0.0
        %936 = vmatpush2.xpose.msra.mxu0 0.0
        %937 = vmatprep.mubr.f32.mxu0 0.0
        %938 = vmatmul.mubr.f32.gmra.mxu0 %v869
        %v939 = vpop.f32.mrf.mxu0
        %v940 = vadd.f32 %v794, %v939
        %v941 = vpop.f32.mrf.mxu0
        %942 = vdwg.mxu0
        %v943 = vsel %vm868, %v940, -inf
        %944 = vmax.xlane.f32.xlu0 %v943
        %v945 = vpop.xlane.xlu0 %944
        %v946 = vsub.f32 %v940, %v945
        %v947 = vmul.f32 %v946, 1.442695
        %v948 = vpow.pop %v947
        %v949 = vsel %vm868, %v948, 0.0
        %950 = vadd.xlane.f32.xlu0 %v949
        %v951 = vpop.xlane.xlu0 %950
        %v952 = vrcp.pop %v951
        %v953 = vmul.f32 %v948, %v952
        %954 = vrot.lane.b32.xlu0 %v860, 64
        %v955 = vpop.permute.xlu0 %954
        %v958 = vsel %vm868, %v953, 0
        %960 = vmatprep.subr.mxu0 0.0
        %961 = vmatpush1.msra.mxu0 0.0
        %962 = vmatprep.subr.mxu0 0.0
        %963 = vmatpush1.msra.mxu0 0.0
        %964 = vmatprep.subr.mxu0 0.0
        %965 = vmatpush1.msra.mxu0 0.0
        %966 = vmatprep.subr.mxu0 0.0
        %967 = vmatpush1.msra.mxu0 0.0
        %968 = vmatprep.subr.mxu0 0.0
        %969 = vmatpush1.msra.mxu0 0.0
        %970 = vmatprep.subr.mxu0 0.0
        %971 = vmatpush1.msra.mxu0 0.0
        %972 = vmatprep.subr.mxu0 0.0
        %973 = vmatpush1.msra.mxu0 0.0
        %974 = vmatprep.subr.mxu0 0.0
        %975 = vmatpush1.msra.mxu0 0.0
        %976 = vmatprep.subr.mxu0 0.0
        %977 = vmatpush1.msra.mxu0 0.0
        %978 = vmatprep.subr.mxu0 0.0
        %979 = vmatpush1.msra.mxu0 0.0
        %980 = vmatprep.subr.mxu0 0.0
        %981 = vmatpush1.msra.mxu0 0.0
        %982 = vmatprep.subr.mxu0 0.0
        %983 = vmatpush1.msra.mxu0 0.0
        %984 = vmatprep.subr.mxu0 0.0
        %985 = vmatpush1.msra.mxu0 0.0
        %986 = vmatprep.subr.mxu0 0.0
        %987 = vmatpush1.msra.mxu0 0.0
        %988 = vmatprep.subr.mxu0 0.0
        %989 = vmatpush1.msra.mxu0 0.0
        %990 = vmatprep.subr.mxu0 0.0
        %991 = vmatpush1.msra.mxu0 %v955
        %992 = vmatprep.subr.mxu0 0.0
        %993 = vmatpush2.msra.mxu0 0.0
        %994 = vmatprep.subr.mxu0 0.0
        %995 = vmatpush2.msra.mxu0 0.0
        %996 = vmatprep.subr.mxu0 0.0
        %997 = vmatpush2.msra.mxu0 0.0
        %998 = vmatprep.subr.mxu0 0.0
        %999 = vmatpush2.msra.mxu0 0.0
        %1000 = vmatprep.subr.mxu0 0.0
        %1001 = vmatpush2.msra.mxu0 0.0
        %1002 = vmatprep.subr.mxu0 0.0
        %1003 = vmatpush2.msra.mxu0 0.0
        %1004 = vmatprep.subr.mxu0 0.0
        %1005 = vmatpush2.msra.mxu0 0.0
        %1006 = vmatprep.subr.mxu0 0.0
        %1007 = vmatpush2.msra.mxu0 0.0
        %1008 = vmatprep.subr.mxu0 0.0
        %1009 = vmatpush2.msra.mxu0 0.0
        %1010 = vmatprep.subr.mxu0 0.0
        %1011 = vmatpush2.msra.mxu0 0.0
        %1012 = vmatprep.subr.mxu0 0.0
        %1013 = vmatpush2.msra.mxu0 0.0
        %1014 = vmatprep.subr.mxu0 0.0
        %1015 = vmatpush2.msra.mxu0 0.0
        %1016 = vmatprep.subr.mxu0 0.0
        %1017 = vmatpush2.msra.mxu0 0.0
        %1018 = vmatprep.subr.mxu0 0.0
        %1019 = vmatpush2.msra.mxu0 0.0
        %1020 = vmatprep.subr.mxu0 0.0
        %1021 = vmatpush2.msra.mxu0 0.0
        %1022 = vmatprep.subr.mxu0 0.0
        %1023 = vmatpush2.msra.mxu0 0.0
        %1024 = vmatprep.mubr.f32.mxu0 0.0
        %1025 = vmatmul.mubr.f32.gmra.mxu0 %v958
        %v1026 = vpop.f32.mrf.mxu0
        %v1027 = vadd.f32 0.0, %v1026
        %v1028 = vpop.f32.mrf.mxu0
        %1029 = vdwg.mxu0
        %1030 = vrot.lane.b32.xlu0 %v860, 120
        %v1031 = vpop.permute.xlu0 %1030
        %1032 = vrot.lane.b32.xlu0 %v860, 88
        %v1033 = vpop.permute.xlu0 %1032
        %v1034 = vsel %vm868, %v1031, 0
        %v1036 = vsel %vm868, %v1033, 0
        %1038 = vmatprep.subr.mxu0 0.0
        %1039 = vmatpush1.xpose.msra.mxu0 0.0
        %1040 = vmatprep.subr.mxu0 0.0
        %1041 = vmatpush1.xpose.msra.mxu0 0.0
        %1042 = vmatprep.subr.mxu0 0.0
        %1043 = vmatpush1.xpose.msra.mxu0 0.0
        %1044 = vmatprep.subr.mxu0 0.0
        %1045 = vmatpush1.xpose.msra.mxu0 0.0
        %1046 = vmatprep.subr.mxu0 0.0
        %1047 = vmatpush1.xpose.msra.mxu0 0.0
        %1048 = vmatprep.subr.mxu0 0.0
        %1049 = vmatpush1.xpose.msra.mxu0 0.0
        %1050 = vmatprep.subr.mxu0 0.0
        %1051 = vmatpush1.xpose.msra.mxu0 0.0
        %1052 = vmatprep.subr.mxu0 0.0
        %1053 = vmatpush1.xpose.msra.mxu0 0.0
        %1054 = vmatprep.subr.mxu0 0.0
        %1055 = vmatpush1.xpose.msra.mxu0 0.0
        %1056 = vmatprep.subr.mxu0 0.0
        %1057 = vmatpush1.xpose.msra.mxu0 0.0
        %1058 = vmatprep.subr.mxu0 0.0
        %1059 = vmatpush1.xpose.msra.mxu0 0.0
        %1060 = vmatprep.subr.mxu0 0.0
        %1061 = vmatpush1.xpose.msra.mxu0 0.0
        %1062 = vmatprep.subr.mxu0 0.0
        %1063 = vmatpush1.xpose.msra.mxu0 0.0
        %1064 = vmatprep.subr.mxu0 0.0
        %1065 = vmatpush1.xpose.msra.mxu0 0.0
        %1066 = vmatprep.subr.mxu0 0.0
        %1067 = vmatpush1.xpose.msra.mxu0 0.0
        %1068 = vmatprep.subr.mxu0 0.0
        %1069 = vmatpush1.xpose.msra.mxu0 %v1036
        %1070 = vmatprep.subr.mxu0 0.0
        %1071 = vmatpush2.xpose.msra.mxu0 0.0
        %1072 = vmatprep.subr.mxu0 0.0
        %1073 = vmatpush2.xpose.msra.mxu0 0.0
        %1074 = vmatprep.subr.mxu0 0.0
        %1075 = vmatpush2.xpose.msra.mxu0 0.0
        %1076 = vmatprep.subr.mxu0 0.0
        %1077 = vmatpush2.xpose.msra.mxu0 0.0
        %1078 = vmatprep.subr.mxu0 0.0
        %1079 = vmatpush2.xpose.msra.mxu0 0.0
        %1080 = vmatprep.subr.mxu0 0.0
        %1081 = vmatpush2.xpose.msra.mxu0 0.0
        %1082 = vmatprep.subr.mxu0 0.0
        %1083 = vmatpush2.xpose.msra.mxu0 0.0
        %1084 = vmatprep.subr.mxu0 0.0
        %1085 = vmatpush2.xpose.msra.mxu0 0.0
        %1086 = vmatprep.subr.mxu0 0.0
        %1087 = vmatpush2.xpose.msra.mxu0 0.0
        %1088 = vmatprep.subr.mxu0 0.0
        %1089 = vmatpush2.xpose.msra.mxu0 0.0
        %1090 = vmatprep.subr.mxu0 0.0
        %1091 = vmatpush2.xpose.msra.mxu0 0.0
        %1092 = vmatprep.subr.mxu0 0.0
        %1093 = vmatpush2.xpose.msra.mxu0 0.0
        %1094 = vmatprep.subr.mxu0 0.0
        %1095 = vmatpush2.xpose.msra.mxu0 0.0
        %1096 = vmatprep.subr.mxu0 0.0
        %1097 = vmatpush2.xpose.msra.mxu0 0.0
        %1098 = vmatprep.subr.mxu0 0.0
        %1099 = vmatpush2.xpose.msra.mxu0 0.0
        %1100 = vmatprep.subr.mxu0 0.0
        %1101 = vmatpush2.xpose.msra.mxu0 0.0
        %1102 = vmatprep.mubr.f32.mxu0 0.0
        %1103 = vmatmul.mubr.f32.gmra.mxu0 %v1034
        %v1104 = vpop.f32.mrf.mxu0
        %v1105 = vadd.f32 %v794, %v1104
        %v1106 = vpop.f32.mrf.mxu0
        %1107 = vdwg.mxu0
        %v1108 = vsel %vm868, %v1105, -inf
        %1109 = vmax.xlane.f32.xlu0 %v1108
        %v1110 = vpop.xlane.xlu0 %1109
        %v1111 = vsub.f32 %v1105, %v1110
        %v1112 = vmul.f32 %v1111, 1.442695
        %v1113 = vpow.pop %v1112
        %v1114 = vsel %vm868, %v1113, 0.0
        %1115 = vadd.xlane.f32.xlu0 %v1114
        %v1116 = vpop.xlane.xlu0 %1115
        %v1117 = vrcp.pop %v1116
        %v1118 = vmul.f32 %v1113, %v1117
        %1119 = vrot.lane.b32.xlu0 %v860, 56
        %v1120 = vpop.permute.xlu0 %1119
        %v1123 = vsel %vm868, %v1118, 0
        %1125 = vmatprep.subr.mxu0 0.0
        %1126 = vmatpush1.msra.mxu0 0.0
        %1127 = vmatprep.subr.mxu0 0.0
        %1128 = vmatpush1.msra.mxu0 0.0
        %1129 = vmatprep.subr.mxu0 0.0
        %1130 = vmatpush1.msra.mxu0 0.0
        %1131 = vmatprep.subr.mxu0 0.0
        %1132 = vmatpush1.msra.mxu0 0.0
        %1133 = vmatprep.subr.mxu0 0.0
        %1134 = vmatpush1.msra.mxu0 0.0
        %1135 = vmatprep.subr.mxu0 0.0
        %1136 = vmatpush1.msra.mxu0 0.0
        %1137 = vmatprep.subr.mxu0 0.0
        %1138 = vmatpush1.msra.mxu0 0.0
        %1139 = vmatprep.subr.mxu0 0.0
        %1140 = vmatpush1.msra.mxu0 0.0
        %1141 = vmatprep.subr.mxu0 0.0
        %1142 = vmatpush1.msra.mxu0 0.0
        %1143 = vmatprep.subr.mxu0 0.0
        %1144 = vmatpush1.msra.mxu0 0.0
        %1145 = vmatprep.subr.mxu0 0.0
        %1146 = vmatpush1.msra.mxu0 0.0
        %1147 = vmatprep.subr.mxu0 0.0
        %1148 = vmatpush1.msra.mxu0 0.0
        %1149 = vmatprep.subr.mxu0 0.0
        %1150 = vmatpush1.msra.mxu0 0.0
        %1151 = vmatprep.subr.mxu0 0.0
        %1152 = vmatpush1.msra.mxu0 0.0
        %1153 = vmatprep.subr.mxu0 0.0
        %1154 = vmatpush1.msra.mxu0 0.0
        %1155 = vmatprep.subr.mxu0 0.0
        %1156 = vmatpush1.msra.mxu0 %v1120
        %1157 = vmatprep.subr.mxu0 0.0
        %1158 = vmatpush2.msra.mxu0 0.0
        %1159 = vmatprep.subr.mxu0 0.0
        %1160 = vmatpush2.msra.mxu0 0.0
        %1161 = vmatprep.subr.mxu0 0.0
        %1162 = vmatpush2.msra.mxu0 0.0
        %1163 = vmatprep.subr.mxu0 0.0
        %1164 = vmatpush2.msra.mxu0 0.0
        %1165 = vmatprep.subr.mxu0 0.0
        %1166 = vmatpush2.msra.mxu0 0.0
        %1167 = vmatprep.subr.mxu0 0.0
        %1168 = vmatpush2.msra.mxu0 0.0
        %1169 = vmatprep.subr.mxu0 0.0
        %1170 = vmatpush2.msra.mxu0 0.0
        %1171 = vmatprep.subr.mxu0 0.0
        %1172 = vmatpush2.msra.mxu0 0.0
        %1173 = vmatprep.subr.mxu0 0.0
        %1174 = vmatpush2.msra.mxu0 0.0
        %1175 = vmatprep.subr.mxu0 0.0
        %1176 = vmatpush2.msra.mxu0 0.0
        %1177 = vmatprep.subr.mxu0 0.0
        %1178 = vmatpush2.msra.mxu0 0.0
        %1179 = vmatprep.subr.mxu0 0.0
        %1180 = vmatpush2.msra.mxu0 0.0
        %1181 = vmatprep.subr.mxu0 0.0
        %1182 = vmatpush2.msra.mxu0 0.0
        %1183 = vmatprep.subr.mxu0 0.0
        %1184 = vmatpush2.msra.mxu0 0.0
        %1185 = vmatprep.subr.mxu0 0.0
        %1186 = vmatpush2.msra.mxu0 0.0
        %1187 = vmatprep.subr.mxu0 0.0
        %1188 = vmatpush2.msra.mxu0 0.0
        %1189 = vmatprep.mubr.f32.mxu0 0.0
        %1190 = vmatmul.mubr.f32.gmra.mxu0 %v1123
        %v1191 = vpop.f32.mrf.mxu0
        %v1192 = vadd.f32 0.0, %v1191
        %v1193 = vpop.f32.mrf.mxu0
        %1194 = vdwg.mxu0
        %1195 = vrot.lane.b32.xlu0 %v860, 112
        %v1196 = vpop.permute.xlu0 %1195
        %1197 = vrot.lane.b32.xlu0 %v860, 80
        %v1198 = vpop.permute.xlu0 %1197
        %v1199 = vsel %vm868, %v1196, 0
        %v1201 = vsel %vm868, %v1198, 0
        %1203 = vmatprep.subr.mxu0 0.0
        %1204 = vmatpush1.xpose.msra.mxu0 0.0
        %1205 = vmatprep.subr.mxu0 0.0
        %1206 = vmatpush1.xpose.msra.mxu0 0.0
        %1207 = vmatprep.subr.mxu0 0.0
        %1208 = vmatpush1.xpose.msra.mxu0 0.0
        %1209 = vmatprep.subr.mxu0 0.0
        %1210 = vmatpush1.xpose.msra.mxu0 0.0
        %1211 = vmatprep.subr.mxu0 0.0
        %1212 = vmatpush1.xpose.msra.mxu0 0.0
        %1213 = vmatprep.subr.mxu0 0.0
        %1214 = vmatpush1.xpose.msra.mxu0 0.0
        %1215 = vmatprep.subr.mxu0 0.0
        %1216 = vmatpush1.xpose.msra.mxu0 0.0
        %1217 = vmatprep.subr.mxu0 0.0
        %1218 = vmatpush1.xpose.msra.mxu0 0.0
        %1219 = vmatprep.subr.mxu0 0.0
        %1220 = vmatpush1.xpose.msra.mxu0 0.0
        %1221 = vmatprep.subr.mxu0 0.0
        %1222 = vmatpush1.xpose.msra.mxu0 0.0
        %1223 = vmatprep.subr.mxu0 0.0
        %1224 = vmatpush1.xpose.msra.mxu0 0.0
        %1225 = vmatprep.subr.mxu0 0.0
        %1226 = vmatpush1.xpose.msra.mxu0 0.0
        %1227 = vmatprep.subr.mxu0 0.0
        %1228 = vmatpush1.xpose.msra.mxu0 0.0
        %1229 = vmatprep.subr.mxu0 0.0
        %1230 = vmatpush1.xpose.msra.mxu0 0.0
        %1231 = vmatprep.subr.mxu0 0.0
        %1232 = vmatpush1.xpose.msra.mxu0 0.0
        %1233 = vmatprep.subr.mxu0 0.0
        %1234 = vmatpush1.xpose.msra.mxu0 %v1201
        %1235 = vmatprep.subr.mxu0 0.0
        %1236 = vmatpush2.xpose.msra.mxu0 0.0
        %1237 = vmatprep.subr.mxu0 0.0
        %1238 = vmatpush2.xpose.msra.mxu0 0.0
        %1239 = vmatprep.subr.mxu0 0.0
        %1240 = vmatpush2.xpose.msra.mxu0 0.0
        %1241 = vmatprep.subr.mxu0 0.0
        %1242 = vmatpush2.xpose.msra.mxu0 0.0
        %1243 = vmatprep.subr.mxu0 0.0
        %1244 = vmatpush2.xpose.msra.mxu0 0.0
        %1245 = vmatprep.subr.mxu0 0.0
        %1246 = vmatpush2.xpose.msra.mxu0 0.0
        %1247 = vmatprep.subr.mxu0 0.0
        %1248 = vmatpush2.xpose.msra.mxu0 0.0
        %1249 = vmatprep.subr.mxu0 0.0
        %1250 = vmatpush2.xpose.msra.mxu0 0.0
        %1251 = vmatprep.subr.mxu0 0.0
        %1252 = vmatpush2.xpose.msra.mxu0 0.0
        %1253 = vmatprep.subr.mxu0 0.0
        %1254 = vmatpush2.xpose.msra.mxu0 0.0
        %1255 = vmatprep.subr.mxu0 0.0
        %1256 = vmatpush2.xpose.msra.mxu0 0.0
        %1257 = vmatprep.subr.mxu0 0.0
        %1258 = vmatpush2.xpose.msra.mxu0 0.0
        %1259 = vmatprep.subr.mxu0 0.0
        %1260 = vmatpush2.xpose.msra.mxu0 0.0
        %1261 = vmatprep.subr.mxu0 0.0
        %1262 = vmatpush2.xpose.msra.mxu0 0.0
        %1263 = vmatprep.subr.mxu0 0.0
        %1264 = vmatpush2.xpose.msra.mxu0 0.0
        %1265 = vmatprep.subr.mxu0 0.0
        %1266 = vmatpush2.xpose.msra.mxu0 0.0
        %1267 = vmatprep.mubr.f32.mxu0 0.0
        %1268 = vmatmul.mubr.f32.gmra.mxu0 %v1199
        %v1269 = vpop.f32.mrf.mxu0
        %v1270 = vadd.f32 %v794, %v1269
        %v1271 = vpop.f32.mrf.mxu0
        %1272 = vdwg.mxu0
        %v1273 = vsel %vm868, %v1270, -inf
        %1274 = vmax.xlane.f32.xlu0 %v1273
        %v1275 = vpop.xlane.xlu0 %1274
        %v1276 = vsub.f32 %v1270, %v1275
        %v1277 = vmul.f32 %v1276, 1.442695
        %v1278 = vpow.pop %v1277
        %v1279 = vsel %vm868, %v1278, 0.0
        %1280 = vadd.xlane.f32.xlu0 %v1279
        %v1281 = vpop.xlane.xlu0 %1280
        %v1282 = vrcp.pop %v1281
        %v1283 = vmul.f32 %v1278, %v1282
        %1284 = vrot.lane.b32.xlu0 %v860, 48
        %v1285 = vpop.permute.xlu0 %1284
        %v1288 = vsel %vm868, %v1283, 0
        %1290 = vmatprep.subr.mxu0 0.0
        %1291 = vmatpush1.msra.mxu0 0.0
        %1292 = vmatprep.subr.mxu0 0.0
        %1293 = vmatpush1.msra.mxu0 0.0
        %1294 = vmatprep.subr.mxu0 0.0
        %1295 = vmatpush1.msra.mxu0 0.0
        %1296 = vmatprep.subr.mxu0 0.0
        %1297 = vmatpush1.msra.mxu0 0.0
        %1298 = vmatprep.subr.mxu0 0.0
        %1299 = vmatpush1.msra.mxu0 0.0
        %1300 = vmatprep.subr.mxu0 0.0
        %1301 = vmatpush1.msra.mxu0 0.0
        %1302 = vmatprep.subr.mxu0 0.0
        %1303 = vmatpush1.msra.mxu0 0.0
        %1304 = vmatprep.subr.mxu0 0.0
        %1305 = vmatpush1.msra.mxu0 0.0
        %1306 = vmatprep.subr.mxu0 0.0
        %1307 = vmatpush1.msra.mxu0 0.0
        %1308 = vmatprep.subr.mxu0 0.0
        %1309 = vmatpush1.msra.mxu0 0.0
        %1310 = vmatprep.subr.mxu0 0.0
        %1311 = vmatpush1.msra.mxu0 0.0
        %1312 = vmatprep.subr.mxu0 0.0
        %1313 = vmatpush1.msra.mxu0 0.0
        %1314 = vmatprep.subr.mxu0 0.0
        %1315 = vmatpush1.msra.mxu0 0.0
        %1316 = vmatprep.subr.mxu0 0.0
        %1317 = vmatpush1.msra.mxu0 0.0
        %1318 = vmatprep.subr.mxu0 0.0
        %1319 = vmatpush1.msra.mxu0 0.0
        %1320 = vmatprep.subr.mxu0 0.0
        %1321 = vmatpush1.msra.mxu0 %v1285
        %1322 = vmatprep.subr.mxu0 0.0
        %1323 = vmatpush2.msra.mxu0 0.0
        %1324 = vmatprep.subr.mxu0 0.0
        %1325 = vmatpush2.msra.mxu0 0.0
        %1326 = vmatprep.subr.mxu0 0.0
        %1327 = vmatpush2.msra.mxu0 0.0
        %1328 = vmatprep.subr.mxu0 0.0
        %1329 = vmatpush2.msra.mxu0 0.0
        %1330 = vmatprep.subr.mxu0 0.0
        %1331 = vmatpush2.msra.mxu0 0.0
        %1332 = vmatprep.subr.mxu0 0.0
        %1333 = vmatpush2.msra.mxu0 0.0
        %1334 = vmatprep.subr.mxu0 0.0
        %1335 = vmatpush2.msra.mxu0 0.0
        %1336 = vmatprep.subr.mxu0 0.0
        %1337 = vmatpush2.msra.mxu0 0.0
        %1338 = vmatprep.subr.mxu0 0.0
        %1339 = vmatpush2.msra.mxu0 0.0
        %1340 = vmatprep.subr.mxu0 0.0
        %1341 = vmatpush2.msra.mxu0 0.0
        %1342 = vmatprep.subr.mxu0 0.0
        %1343 = vmatpush2.msra.mxu0 0.0
        %1344 = vmatprep.subr.mxu0 0.0
        %1345 = vmatpush2.msra.mxu0 0.0
        %1346 = vmatprep.subr.mxu0 0.0
        %1347 = vmatpush2.msra.mxu0 0.0
        %1348 = vmatprep.subr.mxu0 0.0
        %1349 = vmatpush2.msra.mxu0 0.0
        %1350 = vmatprep.subr.mxu0 0.0
        %1351 = vmatpush2.msra.mxu0 0.0
        %1352 = vmatprep.subr.mxu0 0.0
        %1353 = vmatpush2.msra.mxu0 0.0
        %1354 = vmatprep.mubr.f32.mxu0 0.0
        %1355 = vmatmul.mubr.f32.gmra.mxu0 %v1288
        %v1356 = vpop.f32.mrf.mxu0
        %v1357 = vadd.f32 0.0, %v1356
        %v1358 = vpop.f32.mrf.mxu0
        %1359 = vdwg.mxu0
        %1360 = vrot.lane.b32.xlu0 %v860, 104
        %v1361 = vpop.permute.xlu0 %1360
        %1362 = vrot.lane.b32.xlu0 %v860, 72
        %v1363 = vpop.permute.xlu0 %1362
        %v1364 = vsel %vm868, %v1361, 0
        %v1366 = vsel %vm868, %v1363, 0
        %1368 = vmatprep.subr.mxu0 0.0
        %1369 = vmatpush1.xpose.msra.mxu0 0.0
        %1370 = vmatprep.subr.mxu0 0.0
        %1371 = vmatpush1.xpose.msra.mxu0 0.0
        %1372 = vmatprep.subr.mxu0 0.0
        %1373 = vmatpush1.xpose.msra.mxu0 0.0
        %1374 = vmatprep.subr.mxu0 0.0
        %1375 = vmatpush1.xpose.msra.mxu0 0.0
        %1376 = vmatprep.subr.mxu0 0.0
        %1377 = vmatpush1.xpose.msra.mxu0 0.0
        %1378 = vmatprep.subr.mxu0 0.0
        %1379 = vmatpush1.xpose.msra.mxu0 0.0
        %1380 = vmatprep.subr.mxu0 0.0
        %1381 = vmatpush1.xpose.msra.mxu0 0.0
        %1382 = vmatprep.subr.mxu0 0.0
        %1383 = vmatpush1.xpose.msra.mxu0 0.0
        %1384 = vmatprep.subr.mxu0 0.0
        %1385 = vmatpush1.xpose.msra.mxu0 0.0
        %1386 = vmatprep.subr.mxu0 0.0
        %1387 = vmatpush1.xpose.msra.mxu0 0.0
        %1388 = vmatprep.subr.mxu0 0.0
        %1389 = vmatpush1.xpose.msra.mxu0 0.0
        %1390 = vmatprep.subr.mxu0 0.0
        %1391 = vmatpush1.xpose.msra.mxu0 0.0
        %1392 = vmatprep.subr.mxu0 0.0
        %1393 = vmatpush1.xpose.msra.mxu0 0.0
        %1394 = vmatprep.subr.mxu0 0.0
        %1395 = vmatpush1.xpose.msra.mxu0 0.0
        %1396 = vmatprep.subr.mxu0 0.0
        %1397 = vmatpush1.xpose.msra.mxu0 0.0
        %1398 = vmatprep.subr.mxu0 0.0
        %1399 = vmatpush1.xpose.msra.mxu0 %v1366
        %1400 = vmatprep.subr.mxu0 0.0
        %1401 = vmatpush2.xpose.msra.mxu0 0.0
        %1402 = vmatprep.subr.mxu0 0.0
        %1403 = vmatpush2.xpose.msra.mxu0 0.0
        %1404 = vmatprep.subr.mxu0 0.0
        %1405 = vmatpush2.xpose.msra.mxu0 0.0
        %1406 = vmatprep.subr.mxu0 0.0
        %1407 = vmatpush2.xpose.msra.mxu0 0.0
        %1408 = vmatprep.subr.mxu0 0.0
        %1409 = vmatpush2.xpose.msra.mxu0 0.0
        %1410 = vmatprep.subr.mxu0 0.0
        %1411 = vmatpush2.xpose.msra.mxu0 0.0
        %1412 = vmatprep.subr.mxu0 0.0
        %1413 = vmatpush2.xpose.msra.mxu0 0.0
        %1414 = vmatprep.subr.mxu0 0.0
        %1415 = vmatpush2.xpose.msra.mxu0 0.0
        %1416 = vmatprep.subr.mxu0 0.0
        %1417 = vmatpush2.xpose.msra.mxu0 0.0
        %1418 = vmatprep.subr.mxu0 0.0
        %1419 = vmatpush2.xpose.msra.mxu0 0.0
        %1420 = vmatprep.subr.mxu0 0.0
        %1421 = vmatpush2.xpose.msra.mxu0 0.0
        %1422 = vmatprep.subr.mxu0 0.0
        %1423 = vmatpush2.xpose.msra.mxu0 0.0
        %1424 = vmatprep.subr.mxu0 0.0
        %1425 = vmatpush2.xpose.msra.mxu0 0.0
        %1426 = vmatprep.subr.mxu0 0.0
        %1427 = vmatpush2.xpose.msra.mxu0 0.0
        %1428 = vmatprep.subr.mxu0 0.0
        %1429 = vmatpush2.xpose.msra.mxu0 0.0
        %1430 = vmatprep.subr.mxu0 0.0
        %1431 = vmatpush2.xpose.msra.mxu0 0.0
        %1432 = vmatprep.mubr.f32.mxu0 0.0
        %1433 = vmatmul.mubr.f32.gmra.mxu0 %v1364
        %v1434 = vpop.f32.mrf.mxu0
        %v1435 = vadd.f32 %v794, %v1434
        %v1436 = vpop.f32.mrf.mxu0
        %1437 = vdwg.mxu0
        %v1438 = vsel %vm868, %v1435, -inf
        %1439 = vmax.xlane.f32.xlu0 %v1438
        %v1440 = vpop.xlane.xlu0 %1439
        %v1441 = vsub.f32 %v1435, %v1440
        %v1442 = vmul.f32 %v1441, 1.442695
        %v1443 = vpow.pop %v1442
        %v1444 = vsel %vm868, %v1443, 0.0
        %1445 = vadd.xlane.f32.xlu0 %v1444
        %v1446 = vpop.xlane.xlu0 %1445
        %v1447 = vrcp.pop %v1446
        %v1448 = vmul.f32 %v1443, %v1447
        %1449 = vrot.lane.b32.xlu0 %v860, 40
        %v1450 = vpop.permute.xlu0 %1449
        %v1453 = vsel %vm868, %v1448, 0
        %1455 = vmatprep.subr.mxu0 0.0
        %1456 = vmatpush1.msra.mxu0 0.0
        %1457 = vmatprep.subr.mxu0 0.0
        %1458 = vmatpush1.msra.mxu0 0.0
        %1459 = vmatprep.subr.mxu0 0.0
        %1460 = vmatpush1.msra.mxu0 0.0
        %1461 = vmatprep.subr.mxu0 0.0
        %1462 = vmatpush1.msra.mxu0 0.0
        %1463 = vmatprep.subr.mxu0 0.0
        %1464 = vmatpush1.msra.mxu0 0.0
        %1465 = vmatprep.subr.mxu0 0.0
        %1466 = vmatpush1.msra.mxu0 0.0
        %1467 = vmatprep.subr.mxu0 0.0
        %1468 = vmatpush1.msra.mxu0 0.0
        %1469 = vmatprep.subr.mxu0 0.0
        %1470 = vmatpush1.msra.mxu0 0.0
        %1471 = vmatprep.subr.mxu0 0.0
        %1472 = vmatpush1.msra.mxu0 0.0
        %1473 = vmatprep.subr.mxu0 0.0
        %1474 = vmatpush1.msra.mxu0 0.0
        %1475 = vmatprep.subr.mxu0 0.0
        %1476 = vmatpush1.msra.mxu0 0.0
        %1477 = vmatprep.subr.mxu0 0.0
        %1478 = vmatpush1.msra.mxu0 0.0
        %1479 = vmatprep.subr.mxu0 0.0
        %1480 = vmatpush1.msra.mxu0 0.0
        %1481 = vmatprep.subr.mxu0 0.0
        %1482 = vmatpush1.msra.mxu0 0.0
        %1483 = vmatprep.subr.mxu0 0.0
        %1484 = vmatpush1.msra.mxu0 0.0
        %1485 = vmatprep.subr.mxu0 0.0
        %1486 = vmatpush1.msra.mxu0 %v1450
        %1487 = vmatprep.subr.mxu0 0.0
        %1488 = vmatpush2.msra.mxu0 0.0
        %1489 = vmatprep.subr.mxu0 0.0
        %1490 = vmatpush2.msra.mxu0 0.0
        %1491 = vmatprep.subr.mxu0 0.0
        %1492 = vmatpush2.msra.mxu0 0.0
        %1493 = vmatprep.subr.mxu0 0.0
        %1494 = vmatpush2.msra.mxu0 0.0
        %1495 = vmatprep.subr.mxu0 0.0
        %1496 = vmatpush2.msra.mxu0 0.0
        %1497 = vmatprep.subr.mxu0 0.0
        %1498 = vmatpush2.msra.mxu0 0.0
        %1499 = vmatprep.subr.mxu0 0.0
        %1500 = vmatpush2.msra.mxu0 0.0
        %1501 = vmatprep.subr.mxu0 0.0
        %1502 = vmatpush2.msra.mxu0 0.0
        %1503 = vmatprep.subr.mxu0 0.0
        %1504 = vmatpush2.msra.mxu0 0.0
        %1505 = vmatprep.subr.mxu0 0.0
        %1506 = vmatpush2.msra.mxu0 0.0
        %1507 = vmatprep.subr.mxu0 0.0
        %1508 = vmatpush2.msra.mxu0 0.0
        %1509 = vmatprep.subr.mxu0 0.0
        %1510 = vmatpush2.msra.mxu0 0.0
        %1511 = vmatprep.subr.mxu0 0.0
        %1512 = vmatpush2.msra.mxu0 0.0
        %1513 = vmatprep.subr.mxu0 0.0
        %1514 = vmatpush2.msra.mxu0 0.0
        %1515 = vmatprep.subr.mxu0 0.0
        %1516 = vmatpush2.msra.mxu0 0.0
        %1517 = vmatprep.subr.mxu0 0.0
        %1518 = vmatpush2.msra.mxu0 0.0
        %1519 = vmatprep.mubr.f32.mxu0 0.0
        %1520 = vmatmul.mubr.f32.gmra.mxu0 %v1453
        %v1521 = vpop.f32.mrf.mxu0
        %v1522 = vadd.f32 0.0, %v1521
        %v1523 = vpop.f32.mrf.mxu0
        %1524 = vdwg.mxu0
        %1526 = vrot.lane.b32.xlu0 %v1192, 8
        %v1527 = vpop.permute.xlu0 %1526
        %1530 = vrot.lane.b32.xlu0 %v1357, 16
        %v1531 = vpop.permute.xlu0 %1530
        %1534 = vrot.lane.b32.xlu0 %v1522, 24
        %v1535 = vpop.permute.xlu0 %1534
        %v1537 = vsel %vm868, %v1027, %v1527
        %vm1538 = vcmask 130048
        %v1539 = vsel %vm1538, %v1537, %v1531
        %vm1540 = vcmask 195584
        %v1541 = vsel %vm1540, %v1539, %v1535
        %v1542 = vpack.c.bf16 %v1541, %v1541
        %v1543 = vld [vmem:[#allocation8] sm:$0xf]
        %v1544 = vld [vmem:[#allocation8 + $0x4] sm:$0xf]
        %v1545 = vld [vmem:[#allocation8 + $0x8] sm:$0xf]
        %v1546 = vld [vmem:[#allocation8 + $0xc] sm:$0xf]
        %v1547 = vld [vmem:[#allocation10] sm:$0x1]
        %v1549 = vlaneseq
        %v1550 = vshrl.u32 %v1549, 7
        %v1551 = vsub.s32 0, %v1550
        %v1552 = vrot.slane %v1547, %v1551
        %v1558 = vunpack.c.l.b16 %v1543
        %v1559 = vunpack.c.l.b16 %v1544
        %v1560 = vunpack.c.l.b16 %v1545
        %v1561 = vunpack.c.l.b16 %v1546
        %v1562 = vpack.c.b16 %v1559, %v1558
        %v1563 = vpack.c.b16 %v1561, %v1560
        %v1567 = vsel %vm821, %v1542, 0
        %1569 = vmatprep.subr.bf16.mxu0 0
        %1570 = vmatpush1.bf16.msra.mxu0 0
        %1571 = vmatprep.subr.bf16.mxu0 0
        %1572 = vmatpush1.bf16.msra.mxu0 0
        %1573 = vmatprep.subr.bf16.mxu0 0
        %1574 = vmatpush1.bf16.msra.mxu0 0
        %1575 = vmatprep.subr.bf16.mxu0 0
        %1576 = vmatpush1.bf16.msra.mxu0 0
        %1577 = vmatprep.subr.bf16.mxu0 0
        %1578 = vmatpush1.bf16.msra.mxu0 0
        %1579 = vmatprep.subr.bf16.mxu0 0
        %1580 = vmatpush1.bf16.msra.mxu0 0
        %1581 = vmatprep.subr.bf16.mxu0 0
        %1582 = vmatpush1.bf16.msra.mxu0 %v1563
        %1583 = vmatprep.subr.bf16.mxu0 0
        %1584 = vmatpush1.bf16.msra.mxu0 %v1562
        %1585 = vmatprep.subr.bf16.mxu0 0
        %1586 = vmatpush2.bf16.msra.mxu0 0
        %1587 = vmatprep.subr.bf16.mxu0 0
        %1588 = vmatpush2.bf16.msra.mxu0 0
        %1589 = vmatprep.subr.bf16.mxu0 0
        %1590 = vmatpush2.bf16.msra.mxu0 0
        %1591 = vmatprep.subr.bf16.mxu0 0
        %1592 = vmatpush2.bf16.msra.mxu0 0
        %1593 = vmatprep.subr.bf16.mxu0 0
        %1594 = vmatpush2.bf16.msra.mxu0 0
        %1595 = vmatprep.subr.bf16.mxu0 0
        %1596 = vmatpush2.bf16.msra.mxu0 0
        %1597 = vmatprep.subr.bf16.mxu0 0
        %1598 = vmatpush2.bf16.msra.mxu0 0
        %1599 = vmatprep.subr.bf16.mxu0 0
        %1600 = vmatpush2.bf16.msra.mxu0 0
        %1601 = vmatprep.mubr.bf16.mxu0 0
        %1602 = vmatmul.mubr.bf16.gmra.mxu0 %v1567
        %v1603 = vpop.f32.mrf.mxu0
        %v1604 = vadd.f32 %v1552, %v1603
        %v1605 = vpop.f32.mrf.mxu0
        %v1606 = vpop.f32.mrf.mxu0
        %v1607 = vpop.f32.mrf.mxu0
        %1608 = vdwg.mxu0
        %v1609 = vadd.f32 %v791, %v1604
        %v1610 = vsel %vm821, %v1609, 0.0
        %1611 = vadd.xlane.f32.xlu0 %v1610
        %v1612 = vpop.xlane.xlu0 %1611
        %v1613 = vrcp.pop 32.0
        %v1614 = vmul.f32 %v1612, %v1613
        %v1615 = vsub.f32 %v1609, %v1614
        %v1616 = vmul.f32 %v1615, %v1615
        %v1617 = vsel %vm821, %v1616, 0.0
        %1618 = vadd.xlane.f32.xlu0 %v1617
        %v1619 = vpop.xlane.xlu0 %1618
        %v1620 = vmul.f32 %v1619, %v1613
        %v1621 = vadd.f32 %v1620, 1e-05
        %v1622 = vrsqrt.pop %v1621
        %v1623 = vmul.f32 %v1615, %v1622
        %v1624 = vlaneseq
        %v1625 = vshrl.u32 %v1624, 7
        %v1626 = vsub.s32 0, %v1625
        %v1627 = vrot.slane %v795, %v1626
        %v1628 = vmul.f32 %v1623, %v1627
        %v1629 = vlaneseq
        %v1630 = vshrl.u32 %v1629, 7
        %v1631 = vsub.s32 0, %v1630
        %v1632 = vrot.slane %v796, %v1631
        %v1633 = vadd.f32 %v1628, %v1632
        %v1634 = vpack.c.bf16 %v1633, %v1633
        %v1635 = vld [vmem:[#allocation11] sm:$0xf]
        %v1636 = vld [vmem:[#allocation11 + $0x4] sm:$0xf]
        %v1637 = vld [vmem:[#allocation11 + $0x8] sm:$0xf]
        %v1638 = vld [vmem:[#allocation11 + $0xc] sm:$0xf]
        %v1639 = vld [vmem:[#allocation13] sm:$0x1]
        %v1641 = vlaneseq
        %v1642 = vshrl.u32 %v1641, 7
        %v1643 = vsub.s32 0, %v1642
        %v1644 = vrot.slane %v1639, %v1643
        %v1650 = vunpack.c.l.b16 %v1635
        %v1651 = vunpack.c.l.b16 %v1636
        %v1652 = vunpack.c.l.b16 %v1637
        %v1653 = vunpack.c.l.b16 %v1638
        %v1654 = vpack.c.b16 %v1651, %v1650
        %v1655 = vpack.c.b16 %v1653, %v1652
        %v1659 = vsel %vm821, %v1634, 0
        %1661 = vmatprep.subr.bf16.mxu0 0
        %1662 = vmatpush1.bf16.msra.mxu0 0
        %1663 = vmatprep.subr.bf16.mxu0 0
        %1664 = vmatpush1.bf16.msra.mxu0 0
        %1665 = vmatprep.subr.bf16.mxu0 0
        %1666 = vmatpush1.bf16.msra.mxu0 0
        %1667 = vmatprep.subr.bf16.mxu0 0
        %1668 = vmatpush1.bf16.msra.mxu0 0
        %1669 = vmatprep.subr.bf16.mxu0 0
        %1670 = vmatpush1.bf16.msra.mxu0 0
        %1671 = vmatprep.subr.bf16.mxu0 0
        %1672 = vmatpush1.bf16.msra.mxu0 0
        %1673 = vmatprep.subr.bf16.mxu0 0
        %1674 = vmatpush1.bf16.msra.mxu0 %v1655
        %1675 = vmatprep.subr.bf16.mxu0 0
        %1676 = vmatpush1.bf16.msra.mxu0 %v1654
        %1677 = vmatprep.subr.bf16.mxu0 0
        %1678 = vmatpush2.bf16.msra.mxu0 0
        %1679 = vmatprep.subr.bf16.mxu0 0
        %1680 = vmatpush2.bf16.msra.mxu0 0
        %1681 = vmatprep.subr.bf16.mxu0 0
        %1682 = vmatpush2.bf16.msra.mxu0 0
        %1683 = vmatprep.subr.bf16.mxu0 0
        %1684 = vmatpush2.bf16.msra.mxu0 0
        %1685 = vmatprep.subr.bf16.mxu0 0
        %1686 = vmatpush2.bf16.msra.mxu0 0
        %1687 = vmatprep.subr.bf16.mxu0 0
        %1688 = vmatpush2.bf16.msra.mxu0 0
        %1689 = vmatprep.subr.bf16.mxu0 0
        %1690 = vmatpush2.bf16.msra.mxu0 0
        %1691 = vmatprep.subr.bf16.mxu0 0
        %1692 = vmatpush2.bf16.msra.mxu0 0
        %1693 = vmatprep.mubr.bf16.mxu0 0
        %1694 = vmatmul.mubr.bf16.gmra.mxu0 %v1659
        %v1695 = vpop.f32.mrf.mxu0
        %v1696 = vadd.f32 %v1644, %v1695
        %v1697 = vpop.f32.mrf.mxu0
        %v1698 = vpop.f32.mrf.mxu0
        %v1699 = vpop.f32.mrf.mxu0
        %1700 = vdwg.mxu0
        %v1701 = vpack.c.bf16 %v793, %v792
        %v1702 = vld [vmem:[%s9] sm:$0xf]
        %v1703 = vld [vmem:[%s9 + $0x4] sm:$0xf]
        %v1704 = vld [vmem:[%s9 + $0x8] sm:$0xf]
        %v1705 = vld [vmem:[%s9 + $0xc] sm:$0xf]
        %v1706 = vld [vmem:[#allocation14] sm:$0x1]
        %v1708 = vlaneseq
        %v1709 = vshrl.u32 %v1708, 7
        %v1710 = vsub.s32 0, %v1709
        %v1711 = vrot.slane %v1706, %v1710
        %v1717 = vunpack.c.l.b16 %v1702
        %v1718 = vunpack.c.l.b16 %v1703
        %v1719 = vunpack.c.l.b16 %v1704
        %v1720 = vunpack.c.l.b16 %v1705
        %v1721 = vpack.c.b16 %v1718, %v1717
        %v1722 = vpack.c.b16 %v1720, %v1719
        %v1726 = vsel %vm821, %v1701, 0
        %1728 = vmatprep.subr.bf16.mxu0 0
        %1729 = vmatpush1.bf16.msra.mxu0 0
        %1730 = vmatprep.subr.bf16.mxu0 0
        %1731 = vmatpush1.bf16.msra.mxu0 0
        %1732 = vmatprep.subr.bf16.mxu0 0
        %1733 = vmatpush1.bf16.msra.mxu0 0
        %1734 = vmatprep.subr.bf16.mxu0 0
        %1735 = vmatpush1.bf16.msra.mxu0 0
        %1736 = vmatprep.subr.bf16.mxu0 0
        %1737 = vmatpush1.bf16.msra.mxu0 0
        %1738 = vmatprep.subr.bf16.mxu0 0
        %1739 = vmatpush1.bf16.msra.mxu0 0
        %1740 = vmatprep.subr.bf16.mxu0 0
        %1741 = vmatpush1.bf16.msra.mxu0 %v1722
        %1742 = vmatprep.subr.bf16.mxu0 0
        %1743 = vmatpush1.bf16.msra.mxu0 %v1721
        %1744 = vmatprep.subr.bf16.mxu0 0
        %1745 = vmatpush2.bf16.msra.mxu0 0
        %1746 = vmatprep.subr.bf16.mxu0 0
        %1747 = vmatpush2.bf16.msra.mxu0 0
        %1748 = vmatprep.subr.bf16.mxu0 0
        %1749 = vmatpush2.bf16.msra.mxu0 0
        %1750 = vmatprep.subr.bf16.mxu0 0
        %1751 = vmatpush2.bf16.msra.mxu0 0
        %1752 = vmatprep.subr.bf16.mxu0 0
        %1753 = vmatpush2.bf16.msra.mxu0 0
        %1754 = vmatprep.subr.bf16.mxu0 0
        %1755 = vmatpush2.bf16.msra.mxu0 0
        %1756 = vmatprep.subr.bf16.mxu0 0
        %1757 = vmatpush2.bf16.msra.mxu0 0
        %1758 = vmatprep.subr.bf16.mxu0 0
        %1759 = vmatpush2.bf16.msra.mxu0 0
        %1760 = vmatprep.mubr.bf16.mxu0 0
        %1761 = vmatmul.mubr.bf16.gmra.mxu0 %v1726
        %v1762 = vpop.f32.mrf.mxu0
        %v1763 = vadd.f32 %v1711, %v1762
        %v1764 = vpop.f32.mrf.mxu0
        %v1765 = vpop.f32.mrf.mxu0
        %v1766 = vadd.f32 %v1711, %v1765
        %v1767 = vpop.f32.mrf.mxu0
        %1768 = vdwg.mxu0
        %v1770 = vsel %vm868, %v1696, 0
        %v1773 = vsel %vm868, %v1763, 0
        %v1776 = vsel %vm868, %v1766, 0
        %1778 = vmatprep.subr.mxu0 0.0
        %1779 = vmatpush1.xpose.msra.mxu0 0.0
        %1780 = vmatprep.subr.mxu0 0.0
        %1781 = vmatpush1.xpose.msra.mxu0 0.0
        %1782 = vmatprep.subr.mxu0 0.0
        %1783 = vmatpush1.xpose.msra.mxu0 0.0
        %1784 = vmatprep.subr.mxu0 0.0
        %1785 = vmatpush1.xpose.msra.mxu0 0.0
        %1786 = vmatprep.subr.mxu0 0.0
        %1787 = vmatpush1.xpose.msra.mxu0 0.0
        %1788 = vmatprep.subr.mxu0 0.0
        %1789 = vmatpush1.xpose.msra.mxu0 0.0
        %1790 = vmatprep.subr.mxu0 0.0
        %1791 = vmatpush1.xpose.msra.mxu0 0.0
        %1792 = vmatprep.subr.mxu0 0.0
        %1793 = vmatpush1.xpose.msra.mxu0 0.0
        %1794 = vmatprep.subr.mxu0 0.0
        %1795 = vmatpush1.xpose.msra.mxu0 0.0
        %1796 = vmatprep.subr.mxu0 0.0
        %1797 = vmatpush1.xpose.msra.mxu0 0.0
        %1798 = vmatprep.subr.mxu0 0.0
        %1799 = vmatpush1.xpose.msra.mxu0 0.0
        %1800 = vmatprep.subr.mxu0 0.0
        %1801 = vmatpush1.xpose.msra.mxu0 0.0
        %1802 = vmatprep.subr.mxu0 0.0
        %1803 = vmatpush1.xpose.msra.mxu0 0.0
        %1804 = vmatprep.subr.mxu0 0.0
        %1805 = vmatpush1.xpose.msra.mxu0 0.0
        %1806 = vmatprep.subr.mxu0 0.0
        %1807 = vmatpush1.xpose.msra.mxu0 %v1776
        %1808 = vmatprep.subr.mxu0 0.0
        %1809 = vmatpush1.xpose.msra.mxu0 %v1773
        %1810 = vmatprep.subr.mxu0 0.0
        %1811 = vmatpush2.xpose.msra.mxu0 0.0
        %1812 = vmatprep.subr.mxu0 0.0
        %1813 = vmatpush2.xpose.msra.mxu0 0.0
        %1814 = vmatprep.subr.mxu0 0.0
        %1815 = vmatpush2.xpose.msra.mxu0 0.0
        %1816 = vmatprep.subr.mxu0 0.0
        %1817 = vmatpush2.xpose.msra.mxu0 0.0
        %1818 = vmatprep.subr.mxu0 0.0
        %1819 = vmatpush2.xpose.msra.mxu0 0.0
        %1820 = vmatprep.subr.mxu0 0.0
        %1821 = vmatpush2.xpose.msra.mxu0 0.0
        %1822 = vmatprep.subr.mxu0 0.0
        %1823 = vmatpush2.xpose.msra.mxu0 0.0
        %1824 = vmatprep.subr.mxu0 0.0
        %1825 = vmatpush2.xpose.msra.mxu0 0.0
        %1826 = vmatprep.subr.mxu0 0.0
        %1827 = vmatpush2.xpose.msra.mxu0 0.0
        %1828 = vmatprep.subr.mxu0 0.0
        %1829 = vmatpush2.xpose.msra.mxu0 0.0
        %1830 = vmatprep.subr.mxu0 0.0
        %1831 = vmatpush2.xpose.msra.mxu0 0.0
        %1832 = vmatprep.subr.mxu0 0.0
        %1833 = vmatpush2.xpose.msra.mxu0 0.0
        %1834 = vmatprep.subr.mxu0 0.0
        %1835 = vmatpush2.xpose.msra.mxu0 0.0
        %1836 = vmatprep.subr.mxu0 0.0
        %1837 = vmatpush2.xpose.msra.mxu0 0.0
        %1838 = vmatprep.subr.mxu0 0.0
        %1839 = vmatpush2.xpose.msra.mxu0 0.0
        %1840 = vmatprep.subr.mxu0 0.0
        %1841 = vmatpush2.xpose.msra.mxu0 0.0
        %1842 = vmatprep.mubr.f32.mxu0 0.0
        %1843 = vmatmul.mubr.f32.gmra.mxu0 %v1770
        %v1844 = vpop.f32.mrf.mxu0
        %v1845 = vadd.f32 0.0, %v1844
        %v1846 = vpop.f32.mrf.mxu0
        %1847 = vdwg.mxu0
        %v1848 = vsel %vm1538, %v1845, -inf
        %1849 = vmax.xlane.f32.xlu0 %v1848
        %v1850 = vpop.xlane.xlu0 %1849
        %v1851 = vsub.f32 %v1845, %v1850
        %v1852 = vmul.f32 %v1851, 1.442695
        %v1853 = vpow.pop %v1852
        %v1854 = vsel %vm1538, %v1853, 0.0
        %1855 = vadd.xlane.f32.xlu0 %v1854
        %v1856 = vpop.xlane.xlu0 %1855
        %v1857 = vrcp.pop %v1856
        %v1858 = vmul.f32 %v1853, %v1857
        %1859 = vrot.lane.b32.xlu0 %v1763, 96
        %v1860 = vpop.permute.xlu0 %1859
        %1861 = vrot.lane.b32.xlu0 %v1766, 96
        %v1862 = vpop.permute.xlu0 %1861
        %v1866 = vsel %vm1538, %v1858, 0
        %1868 = vmatprep.subr.mxu0 0.0
        %1869 = vmatpush1.msra.mxu0 0.0
        %1870 = vmatprep.subr.mxu0 0.0
        %1871 = vmatpush1.msra.mxu0 0.0
        %1872 = vmatprep.subr.mxu0 0.0
        %1873 = vmatpush1.msra.mxu0 0.0
        %1874 = vmatprep.subr.mxu0 0.0
        %1875 = vmatpush1.msra.mxu0 0.0
        %1876 = vmatprep.subr.mxu0 0.0
        %1877 = vmatpush1.msra.mxu0 0.0
        %1878 = vmatprep.subr.mxu0 0.0
        %1879 = vmatpush1.msra.mxu0 0.0
        %1880 = vmatprep.subr.mxu0 0.0
        %1881 = vmatpush1.msra.mxu0 0.0
        %1882 = vmatprep.subr.mxu0 0.0
        %1883 = vmatpush1.msra.mxu0 0.0
        %1884 = vmatprep.subr.mxu0 0.0
        %1885 = vmatpush1.msra.mxu0 0.0
        %1886 = vmatprep.subr.mxu0 0.0
        %1887 = vmatpush1.msra.mxu0 0.0
        %1888 = vmatprep.subr.mxu0 0.0
        %1889 = vmatpush1.msra.mxu0 0.0
        %1890 = vmatprep.subr.mxu0 0.0
        %1891 = vmatpush1.msra.mxu0 0.0
        %1892 = vmatprep.subr.mxu0 0.0
        %1893 = vmatpush1.msra.mxu0 0.0
        %1894 = vmatprep.subr.mxu0 0.0
        %1895 = vmatpush1.msra.mxu0 0.0
        %1896 = vmatprep.subr.mxu0 0.0
        %1897 = vmatpush1.msra.mxu0 %v1862
        %1898 = vmatprep.subr.mxu0 0.0
        %1899 = vmatpush1.msra.mxu0 %v1860
        %1900 = vmatprep.subr.mxu0 0.0
        %1901 = vmatpush2.msra.mxu0 0.0
        %1902 = vmatprep.subr.mxu0 0.0
        %1903 = vmatpush2.msra.mxu0 0.0
        %1904 = vmatprep.subr.mxu0 0.0
        %1905 = vmatpush2.msra.mxu0 0.0
        %1906 = vmatprep.subr.mxu0 0.0
        %1907 = vmatpush2.msra.mxu0 0.0
        %1908 = vmatprep.subr.mxu0 0.0
        %1909 = vmatpush2.msra.mxu0 0.0
        %1910 = vmatprep.subr.mxu0 0.0
        %1911 = vmatpush2.msra.mxu0 0.0
        %1912 = vmatprep.subr.mxu0 0.0
        %1913 = vmatpush2.msra.mxu0 0.0
        %1914 = vmatprep.subr.mxu0 0.0
        %1915 = vmatpush2.msra.mxu0 0.0
        %1916 = vmatprep.subr.mxu0 0.0
        %1917 = vmatpush2.msra.mxu0 0.0
        %1918 = vmatprep.subr.mxu0 0.0
        %1919 = vmatpush2.msra.mxu0 0.0
        %1920 = vmatprep.subr.mxu0 0.0
        %1921 = vmatpush2.msra.mxu0 0.0
        %1922 = vmatprep.subr.mxu0 0.0
        %1923 = vmatpush2.msra.mxu0 0.0
        %1924 = vmatprep.subr.mxu0 0.0
        %1925 = vmatpush2.msra.mxu0 0.0
        %1926 = vmatprep.subr.mxu0 0.0
        %1927 = vmatpush2.msra.mxu0 0.0
        %1928 = vmatprep.subr.mxu0 0.0
        %1929 = vmatpush2.msra.mxu0 0.0
        %1930 = vmatprep.subr.mxu0 0.0
        %1931 = vmatpush2.msra.mxu0 0.0
        %1932 = vmatprep.mubr.f32.mxu0 0.0
        %1933 = vmatmul.mubr.f32.gmra.mxu0 %v1866
        %v1934 = vpop.f32.mrf.mxu0
        %v1935 = vadd.f32 0.0, %v1934
        %v1936 = vpop.f32.mrf.mxu0
        %1937 = vdwg.mxu0
        %1938 = vrot.lane.b32.xlu0 %v1696, 120
        %v1939 = vpop.permute.xlu0 %1938
        %1940 = vrot.lane.b32.xlu0 %v1763, 120
        %v1941 = vpop.permute.xlu0 %1940
        %1942 = vrot.lane.b32.xlu0 %v1766, 120
        %v1943 = vpop.permute.xlu0 %1942
        %v1944 = vsel %vm868, %v1939, 0
        %v1946 = vsel %vm868, %v1941, 0
        %v1948 = vsel %vm868, %v1943, 0
        %1950 = vmatprep.subr.mxu0 0.0
        %1951 = vmatpush1.xpose.msra.mxu0 0.0
        %1952 = vmatprep.subr.mxu0 0.0
        %1953 = vmatpush1.xpose.msra.mxu0 0.0
        %1954 = vmatprep.subr.mxu0 0.0
        %1955 = vmatpush1.xpose.msra.mxu0 0.0
        %1956 = vmatprep.subr.mxu0 0.0
        %1957 = vmatpush1.xpose.msra.mxu0 0.0
        %1958 = vmatprep.subr.mxu0 0.0
        %1959 = vmatpush1.xpose.msra.mxu0 0.0
        %1960 = vmatprep.subr.mxu0 0.0
        %1961 = vmatpush1.xpose.msra.mxu0 0.0
        %1962 = vmatprep.subr.mxu0 0.0
        %1963 = vmatpush1.xpose.msra.mxu0 0.0
        %1964 = vmatprep.subr.mxu0 0.0
        %1965 = vmatpush1.xpose.msra.mxu0 0.0
        %1966 = vmatprep.subr.mxu0 0.0
        %1967 = vmatpush1.xpose.msra.mxu0 0.0
        %1968 = vmatprep.subr.mxu0 0.0
        %1969 = vmatpush1.xpose.msra.mxu0 0.0
        %1970 = vmatprep.subr.mxu0 0.0
        %1971 = vmatpush1.xpose.msra.mxu0 0.0
        %1972 = vmatprep.subr.mxu0 0.0
        %1973 = vmatpush1.xpose.msra.mxu0 0.0
        %1974 = vmatprep.subr.mxu0 0.0
        %1975 = vmatpush1.xpose.msra.mxu0 0.0
        %1976 = vmatprep.subr.mxu0 0.0
        %1977 = vmatpush1.xpose.msra.mxu0 0.0
        %1978 = vmatprep.subr.mxu0 0.0
        %1979 = vmatpush1.xpose.msra.mxu0 %v1948
        %1980 = vmatprep.subr.mxu0 0.0
        %1981 = vmatpush1.xpose.msra.mxu0 %v1946
        %1982 = vmatprep.subr.mxu0 0.0
        %1983 = vmatpush2.xpose.msra.mxu0 0.0
        %1984 = vmatprep.subr.mxu0 0.0
        %1985 = vmatpush2.xpose.msra.mxu0 0.0
        %1986 = vmatprep.subr.mxu0 0.0
        %1987 = vmatpush2.xpose.msra.mxu0 0.0
        %1988 = vmatprep.subr.mxu0 0.0
        %1989 = vmatpush2.xpose.msra.mxu0 0.0
        %1990 = vmatprep.subr.mxu0 0.0
        %1991 = vmatpush2.xpose.msra.mxu0 0.0
        %1992 = vmatprep.subr.mxu0 0.0
        %1993 = vmatpush2.xpose.msra.mxu0 0.0
        %1994 = vmatprep.subr.mxu0 0.0
        %1995 = vmatpush2.xpose.msra.mxu0 0.0
        %1996 = vmatprep.subr.mxu0 0.0
        %1997 = vmatpush2.xpose.msra.mxu0 0.0
        %1998 = vmatprep.subr.mxu0 0.0
        %1999 = vmatpush2.xpose.msra.mxu0 0.0
        %2000 = vmatprep.subr.mxu0 0.0
        %2001 = vmatpush2.xpose.msra.mxu0 0.0
        %2002 = vmatprep.subr.mxu0 0.0
        %2003 = vmatpush2.xpose.msra.mxu0 0.0
        %2004 = vmatprep.subr.mxu0 0.0
        %2005 = vmatpush2.xpose.msra.mxu0 0.0
        %2006 = vmatprep.subr.mxu0 0.0
        %2007 = vmatpush2.xpose.msra.mxu0 0.0
        %2008 = vmatprep.subr.mxu0 0.0
        %2009 = vmatpush2.xpose.msra.mxu0 0.0
        %2010 = vmatprep.subr.mxu0 0.0
        %2011 = vmatpush2.xpose.msra.mxu0 0.0
        %2012 = vmatprep.subr.mxu0 0.0
        %2013 = vmatpush2.xpose.msra.mxu0 0.0
        %2014 = vmatprep.mubr.f32.mxu0 0.0
        %2015 = vmatmul.mubr.f32.gmra.mxu0 %v1944
        %v2016 = vpop.f32.mrf.mxu0
        %v2017 = vadd.f32 0.0, %v2016
        %v2018 = vpop.f32.mrf.mxu0
        %2019 = vdwg.mxu0
        %v2020 = vsel %vm1538, %v2017, -inf
        %2021 = vmax.xlane.f32.xlu0 %v2020
        %v2022 = vpop.xlane.xlu0 %2021
        %v2023 = vsub.f32 %v2017, %v2022
        %v2024 = vmul.f32 %v2023, 1.442695
        %v2025 = vpow.pop %v2024
        %v2026 = vsel %vm1538, %v2025, 0.0
        %2027 = vadd.xlane.f32.xlu0 %v2026
        %v2028 = vpop.xlane.xlu0 %2027
        %v2029 = vrcp.pop %v2028
        %v2030 = vmul.f32 %v2025, %v2029
        %2031 = vrot.lane.b32.xlu0 %v1763, 88
        %v2032 = vpop.permute.xlu0 %2031
        %2033 = vrot.lane.b32.xlu0 %v1766, 88
        %v2034 = vpop.permute.xlu0 %2033
        %v2038 = vsel %vm1538, %v2030, 0
        %2040 = vmatprep.subr.mxu0 0.0
        %2041 = vmatpush1.msra.mxu0 0.0
        %2042 = vmatprep.subr.mxu0 0.0
        %2043 = vmatpush1.msra.mxu0 0.0
        %2044 = vmatprep.subr.mxu0 0.0
        %2045 = vmatpush1.msra.mxu0 0.0
        %2046 = vmatprep.subr.mxu0 0.0
        %2047 = vmatpush1.msra.mxu0 0.0
        %2048 = vmatprep.subr.mxu0 0.0
        %2049 = vmatpush1.msra.mxu0 0.0
        %2050 = vmatprep.subr.mxu0 0.0
        %2051 = vmatpush1.msra.mxu0 0.0
        %2052 = vmatprep.subr.mxu0 0.0
        %2053 = vmatpush1.msra.mxu0 0.0
        %2054 = vmatprep.subr.mxu0 0.0
        %2055 = vmatpush1.msra.mxu0 0.0
        %2056 = vmatprep.subr.mxu0 0.0
        %2057 = vmatpush1.msra.mxu0 0.0
        %2058 = vmatprep.subr.mxu0 0.0
        %2059 = vmatpush1.msra.mxu0 0.0
        %2060 = vmatprep.subr.mxu0 0.0
        %2061 = vmatpush1.msra.mxu0 0.0
        %2062 = vmatprep.subr.mxu0 0.0
        %2063 = vmatpush1.msra.mxu0 0.0
        %2064 = vmatprep.subr.mxu0 0.0
        %2065 = vmatpush1.msra.mxu0 0.0
        %2066 = vmatprep.subr.mxu0 0.0
        %2067 = vmatpush1.msra.mxu0 0.0
        %2068 = vmatprep.subr.mxu0 0.0
        %2069 = vmatpush1.msra.mxu0 %v2034
        %2070 = vmatprep.subr.mxu0 0.0
        %2071 = vmatpush1.msra.mxu0 %v2032
        %2072 = vmatprep.subr.mxu0 0.0
        %2073 = vmatpush2.msra.mxu0 0.0
        %2074 = vmatprep.subr.mxu0 0.0
        %2075 = vmatpush2.msra.mxu0 0.0
        %2076 = vmatprep.subr.mxu0 0.0
        %2077 = vmatpush2.msra.mxu0 0.0
        %2078 = vmatprep.subr.mxu0 0.0
        %2079 = vmatpush2.msra.mxu0 0.0
        %2080 = vmatprep.subr.mxu0 0.0
        %2081 = vmatpush2.msra.mxu0 0.0
        %2082 = vmatprep.subr.mxu0 0.0
        %2083 = vmatpush2.msra.mxu0 0.0
        %2084 = vmatprep.subr.mxu0 0.0
        %2085 = vmatpush2.msra.mxu0 0.0
        %2086 = vmatprep.subr.mxu0 0.0
        %2087 = vmatpush2.msra.mxu0 0.0
        %2088 = vmatprep.subr.mxu0 0.0
        %2089 = vmatpush2.msra.mxu0 0.0
        %2090 = vmatprep.subr.mxu0 0.0
        %2091 = vmatpush2.msra.mxu0 0.0
        %2092 = vmatprep.subr.mxu0 0.0
        %2093 = vmatpush2.msra.mxu0 0.0
        %2094 = vmatprep.subr.mxu0 0.0
        %2095 = vmatpush2.msra.mxu0 0.0
        %2096 = vmatprep.subr.mxu0 0.0
        %2097 = vmatpush2.msra.mxu0 0.0
        %2098 = vmatprep.subr.mxu0 0.0
        %2099 = vmatpush2.msra.mxu0 0.0
        %2100 = vmatprep.subr.mxu0 0.0
        %2101 = vmatpush2.msra.mxu0 0.0
        %2102 = vmatprep.subr.mxu0 0.0
        %2103 = vmatpush2.msra.mxu0 0.0
        %2104 = vmatprep.mubr.f32.mxu0 0.0
        %2105 = vmatmul.mubr.f32.gmra.mxu0 %v2038
        %v2106 = vpop.f32.mrf.mxu0
        %v2107 = vadd.f32 0.0, %v2106
        %v2108 = vpop.f32.mrf.mxu0
        %2109 = vdwg.mxu0
        %2110 = vrot.lane.b32.xlu0 %v1696, 112
        %v2111 = vpop.permute.xlu0 %2110
        %2112 = vrot.lane.b32.xlu0 %v1763, 112
        %v2113 = vpop.permute.xlu0 %2112
        %2114 = vrot.lane.b32.xlu0 %v1766, 112
        %v2115 = vpop.permute.xlu0 %2114
        %v2116 = vsel %vm868, %v2111, 0
        %v2118 = vsel %vm868, %v2113, 0
        %v2120 = vsel %vm868, %v2115, 0
        %2122 = vmatprep.subr.mxu0 0.0
        %2123 = vmatpush1.xpose.msra.mxu0 0.0
        %2124 = vmatprep.subr.mxu0 0.0
        %2125 = vmatpush1.xpose.msra.mxu0 0.0
        %2126 = vmatprep.subr.mxu0 0.0
        %2127 = vmatpush1.xpose.msra.mxu0 0.0
        %2128 = vmatprep.subr.mxu0 0.0
        %2129 = vmatpush1.xpose.msra.mxu0 0.0
        %2130 = vmatprep.subr.mxu0 0.0
        %2131 = vmatpush1.xpose.msra.mxu0 0.0
        %2132 = vmatprep.subr.mxu0 0.0
        %2133 = vmatpush1.xpose.msra.mxu0 0.0
        %2134 = vmatprep.subr.mxu0 0.0
        %2135 = vmatpush1.xpose.msra.mxu0 0.0
        %2136 = vmatprep.subr.mxu0 0.0
        %2137 = vmatpush1.xpose.msra.mxu0 0.0
        %2138 = vmatprep.subr.mxu0 0.0
        %2139 = vmatpush1.xpose.msra.mxu0 0.0
        %2140 = vmatprep.subr.mxu0 0.0
        %2141 = vmatpush1.xpose.msra.mxu0 0.0
        %2142 = vmatprep.subr.mxu0 0.0
        %2143 = vmatpush1.xpose.msra.mxu0 0.0
        %2144 = vmatprep.subr.mxu0 0.0
        %2145 = vmatpush1.xpose.msra.mxu0 0.0
        %2146 = vmatprep.subr.mxu0 0.0
        %2147 = vmatpush1.xpose.msra.mxu0 0.0
        %2148 = vmatprep.subr.mxu0 0.0
        %2149 = vmatpush1.xpose.msra.mxu0 0.0
        %2150 = vmatprep.subr.mxu0 0.0
        %2151 = vmatpush1.xpose.msra.mxu0 %v2120
        %2152 = vmatprep.subr.mxu0 0.0
        %2153 = vmatpush1.xpose.msra.mxu0 %v2118
        %2154 = vmatprep.subr.mxu0 0.0
        %2155 = vmatpush2.xpose.msra.mxu0 0.0
        %2156 = vmatprep.subr.mxu0 0.0
        %2157 = vmatpush2.xpose.msra.mxu0 0.0
        %2158 = vmatprep.subr.mxu0 0.0
        %2159 = vmatpush2.xpose.msra.mxu0 0.0
        %2160 = vmatprep.subr.mxu0 0.0
        %2161 = vmatpush2.xpose.msra.mxu0 0.0
        %2162 = vmatprep.subr.mxu0 0.0
        %2163 = vmatpush2.xpose.msra.mxu0 0.0
        %2164 = vmatprep.subr.mxu0 0.0
        %2165 = vmatpush2.xpose.msra.mxu0 0.0
        %2166 = vmatprep.subr.mxu0 0.0
        %2167 = vmatpush2.xpose.msra.mxu0 0.0
        %2168 = vmatprep.subr.mxu0 0.0
        %2169 = vmatpush2.xpose.msra.mxu0 0.0
        %2170 = vmatprep.subr.mxu0 0.0
        %2171 = vmatpush2.xpose.msra.mxu0 0.0
        %2172 = vmatprep.subr.mxu0 0.0
        %2173 = vmatpush2.xpose.msra.mxu0 0.0
        %2174 = vmatprep.subr.mxu0 0.0
        %2175 = vmatpush2.xpose.msra.mxu0 0.0
        %2176 = vmatprep.subr.mxu0 0.0
        %2177 = vmatpush2.xpose.msra.mxu0 0.0
        %2178 = vmatprep.subr.mxu0 0.0
        %2179 = vmatpush2.xpose.msra.mxu0 0.0
        %2180 = vmatprep.subr.mxu0 0.0
        %2181 = vmatpush2.xpose.msra.mxu0 0.0
        %2182 = vmatprep.subr.mxu0 0.0
        %2183 = vmatpush2.xpose.msra.mxu0 0.0
        %2184 = vmatprep.subr.mxu0 0.0
        %2185 = vmatpush2.xpose.msra.mxu0 0.0
        %2186 = vmatprep.mubr.f32.mxu0 0.0
        %2187 = vmatmul.mubr.f32.gmra.mxu0 %v2116
        %v2188 = vpop.f32.mrf.mxu0
        %v2189 = vadd.f32 0.0, %v2188
        %v2190 = vpop.f32.mrf.mxu0
        %2191 = vdwg.mxu0
        %v2192 = vsel %vm1538, %v2189, -inf
        %2193 = vmax.xlane.f32.xlu0 %v2192
        %v2194 = vpop.xlane.xlu0 %2193
        %v2195 = vsub.f32 %v2189, %v2194
        %v2196 = vmul.f32 %v2195, 1.442695
        %v2197 = vpow.pop %v2196
        %v2198 = vsel %vm1538, %v2197, 0.0
        %2199 = vadd.xlane.f32.xlu0 %v2198
        %v2200 = vpop.xlane.xlu0 %2199
        %v2201 = vrcp.pop %v2200
        %v2202 = vmul.f32 %v2197, %v2201
        %2203 = vrot.lane.b32.xlu0 %v1763, 80
        %v2204 = vpop.permute.xlu0 %2203
        %2205 = vrot.lane.b32.xlu0 %v1766, 80
        %v2206 = vpop.permute.xlu0 %2205
        %v2210 = vsel %vm1538, %v2202, 0
        %2212 = vmatprep.subr.mxu0 0.0
        %2213 = vmatpush1.msra.mxu0 0.0
        %2214 = vmatprep.subr.mxu0 0.0
        %2215 = vmatpush1.msra.mxu0 0.0
        %2216 = vmatprep.subr.mxu0 0.0
        %2217 = vmatpush1.msra.mxu0 0.0
        %2218 = vmatprep.subr.mxu0 0.0
        %2219 = vmatpush1.msra.mxu0 0.0
        %2220 = vmatprep.subr.mxu0 0.0
        %2221 = vmatpush1.msra.mxu0 0.0
        %2222 = vmatprep.subr.mxu0 0.0
        %2223 = vmatpush1.msra.mxu0 0.0
        %2224 = vmatprep.subr.mxu0 0.0
        %2225 = vmatpush1.msra.mxu0 0.0
        %2226 = vmatprep.subr.mxu0 0.0
        %2227 = vmatpush1.msra.mxu0 0.0
        %2228 = vmatprep.subr.mxu0 0.0
        %2229 = vmatpush1.msra.mxu0 0.0
        %2230 = vmatprep.subr.mxu0 0.0
        %2231 = vmatpush1.msra.mxu0 0.0
        %2232 = vmatprep.subr.mxu0 0.0
        %2233 = vmatpush1.msra.mxu0 0.0
        %2234 = vmatprep.subr.mxu0 0.0
        %2235 = vmatpush1.msra.mxu0 0.0
        %2236 = vmatprep.subr.mxu0 0.0
        %2237 = vmatpush1.msra.mxu0 0.0
        %2238 = vmatprep.subr.mxu0 0.0
        %2239 = vmatpush1.msra.mxu0 0.0
        %2240 = vmatprep.subr.mxu0 0.0
        %2241 = vmatpush1.msra.mxu0 %v2206
        %2242 = vmatprep.subr.mxu0 0.0
        %2243 = vmatpush1.msra.mxu0 %v2204
        %2244 = vmatprep.subr.mxu0 0.0
        %2245 = vmatpush2.msra.mxu0 0.0
        %2246 = vmatprep.subr.mxu0 0.0
        %2247 = vmatpush2.msra.mxu0 0.0
        %2248 = vmatprep.subr.mxu0 0.0
        %2249 = vmatpush2.msra.mxu0 0.0
        %2250 = vmatprep.subr.mxu0 0.0
        %2251 = vmatpush2.msra.mxu0 0.0
        %2252 = vmatprep.subr.mxu0 0.0
        %2253 = vmatpush2.msra.mxu0 0.0
        %2254 = vmatprep.subr.mxu0 0.0
        %2255 = vmatpush2.msra.mxu0 0.0
        %2256 = vmatprep.subr.mxu0 0.0
        %2257 = vmatpush2.msra.mxu0 0.0
        %2258 = vmatprep.subr.mxu0 0.0
        %2259 = vmatpush2.msra.mxu0 0.0
        %2260 = vmatprep.subr.mxu0 0.0
        %2261 = vmatpush2.msra.mxu0 0.0
        %2262 = vmatprep.subr.mxu0 0.0
        %2263 = vmatpush2.msra.mxu0 0.0
        %2264 = vmatprep.subr.mxu0 0.0
        %2265 = vmatpush2.msra.mxu0 0.0
        %2266 = vmatprep.subr.mxu0 0.0
        %2267 = vmatpush2.msra.mxu0 0.0
        %2268 = vmatprep.subr.mxu0 0.0
        %2269 = vmatpush2.msra.mxu0 0.0
        %2270 = vmatprep.subr.mxu0 0.0
        %2271 = vmatpush2.msra.mxu0 0.0
        %2272 = vmatprep.subr.mxu0 0.0
        %2273 = vmatpush2.msra.mxu0 0.0
        %2274 = vmatprep.subr.mxu0 0.0
        %2275 = vmatpush2.msra.mxu0 0.0
        %2276 = vmatprep.mubr.f32.mxu0 0.0
        %2277 = vmatmul.mubr.f32.gmra.mxu0 %v2210
        %v2278 = vpop.f32.mrf.mxu0
        %v2279 = vadd.f32 0.0, %v2278
        %v2280 = vpop.f32.mrf.mxu0
        %2281 = vdwg.mxu0
        %2282 = vrot.lane.b32.xlu0 %v1696, 104
        %v2283 = vpop.permute.xlu0 %2282
        %2284 = vrot.lane.b32.xlu0 %v1763, 104
        %v2285 = vpop.permute.xlu0 %2284
        %2286 = vrot.lane.b32.xlu0 %v1766, 104
        %v2287 = vpop.permute.xlu0 %2286
        %v2288 = vsel %vm868, %v2283, 0
        %v2290 = vsel %vm868, %v2285, 0
        %v2292 = vsel %vm868, %v2287, 0
        %2294 = vmatprep.subr.mxu0 0.0
        %2295 = vmatpush1.xpose.msra.mxu0 0.0
        %2296 = vmatprep.subr.mxu0 0.0
        %2297 = vmatpush1.xpose.msra.mxu0 0.0
        %2298 = vmatprep.subr.mxu0 0.0
        %2299 = vmatpush1.xpose.msra.mxu0 0.0
        %2300 = vmatprep.subr.mxu0 0.0
        %2301 = vmatpush1.xpose.msra.mxu0 0.0
        %2302 = vmatprep.subr.mxu0 0.0
        %2303 = vmatpush1.xpose.msra.mxu0 0.0
        %2304 = vmatprep.subr.mxu0 0.0
        %2305 = vmatpush1.xpose.msra.mxu0 0.0
        %2306 = vmatprep.subr.mxu0 0.0
        %2307 = vmatpush1.xpose.msra.mxu0 0.0
        %2308 = vmatprep.subr.mxu0 0.0
        %2309 = vmatpush1.xpose.msra.mxu0 0.0
        %2310 = vmatprep.subr.mxu0 0.0
        %2311 = vmatpush1.xpose.msra.mxu0 0.0
        %2312 = vmatprep.subr.mxu0 0.0
        %2313 = vmatpush1.xpose.msra.mxu0 0.0
        %2314 = vmatprep.subr.mxu0 0.0
        %2315 = vmatpush1.xpose.msra.mxu0 0.0
        %2316 = vmatprep.subr.mxu0 0.0
        %2317 = vmatpush1.xpose.msra.mxu0 0.0
        %2318 = vmatprep.subr.mxu0 0.0
        %2319 = vmatpush1.xpose.msra.mxu0 0.0
        %2320 = vmatprep.subr.mxu0 0.0
        %2321 = vmatpush1.xpose.msra.mxu0 0.0
        %2322 = vmatprep.subr.mxu0 0.0
        %2323 = vmatpush1.xpose.msra.mxu0 %v2292
        %2324 = vmatprep.subr.mxu0 0.0
        %2325 = vmatpush1.xpose.msra.mxu0 %v2290
        %2326 = vmatprep.subr.mxu0 0.0
        %2327 = vmatpush2.xpose.msra.mxu0 0.0
        %2328 = vmatprep.subr.mxu0 0.0
        %2329 = vmatpush2.xpose.msra.mxu0 0.0
        %2330 = vmatprep.subr.mxu0 0.0
        %2331 = vmatpush2.xpose.msra.mxu0 0.0
        %2332 = vmatprep.subr.mxu0 0.0
        %2333 = vmatpush2.xpose.msra.mxu0 0.0
        %2334 = vmatprep.subr.mxu0 0.0
        %2335 = vmatpush2.xpose.msra.mxu0 0.0
        %2336 = vmatprep.subr.mxu0 0.0
        %2337 = vmatpush2.xpose.msra.mxu0 0.0
        %2338 = vmatprep.subr.mxu0 0.0
        %2339 = vmatpush2.xpose.msra.mxu0 0.0
        %2340 = vmatprep.subr.mxu0 0.0
        %2341 = vmatpush2.xpose.msra.mxu0 0.0
        %2342 = vmatprep.subr.mxu0 0.0
        %2343 = vmatpush2.xpose.msra.mxu0 0.0
        %2344 = vmatprep.subr.mxu0 0.0
        %2345 = vmatpush2.xpose.msra.mxu0 0.0
        %2346 = vmatprep.subr.mxu0 0.0
        %2347 = vmatpush2.xpose.msra.mxu0 0.0
        %2348 = vmatprep.subr.mxu0 0.0
        %2349 = vmatpush2.xpose.msra.mxu0 0.0
        %2350 = vmatprep.subr.mxu0 0.0
        %2351 = vmatpush2.xpose.msra.mxu0 0.0
        %2352 = vmatprep.subr.mxu0 0.0
        %2353 = vmatpush2.xpose.msra.mxu0 0.0
        %2354 = vmatprep.subr.mxu0 0.0
        %2355 = vmatpush2.xpose.msra.mxu0 0.0
        %2356 = vmatprep.subr.mxu0 0.0
        %2357 = vmatpush2.xpose.msra.mxu0 0.0
        %2358 = vmatprep.mubr.f32.mxu0 0.0
        %2359 = vmatmul.mubr.f32.gmra.mxu0 %v2288
        %v2360 = vpop.f32.mrf.mxu0
        %v2361 = vadd.f32 0.0, %v2360
        %v2362 = vpop.f32.mrf.mxu0
        %2363 = vdwg.mxu0
        %v2364 = vsel %vm1538, %v2361, -inf
        %2365 = vmax.xlane.f32.xlu0 %v2364
        %v2366 = vpop.xlane.xlu0 %2365
        %v2367 = vsub.f32 %v2361, %v2366
        %v2368 = vmul.f32 %v2367, 1.442695
        %v2369 = vpow.pop %v2368
        %v2370 = vsel %vm1538, %v2369, 0.0
        %2371 = vadd.xlane.f32.xlu0 %v2370
        %v2372 = vpop.xlane.xlu0 %2371
        %v2373 = vrcp.pop %v2372
        %v2374 = vmul.f32 %v2369, %v2373
        %2375 = vrot.lane.b32.xlu0 %v1763, 72
        %v2376 = vpop.permute.xlu0 %2375
        %2377 = vrot.lane.b32.xlu0 %v1766, 72
        %v2378 = vpop.permute.xlu0 %2377
        %v2382 = vsel %vm1538, %v2374, 0
        %2384 = vmatprep.subr.mxu0 0.0
        %2385 = vmatpush1.msra.mxu0 0.0
        %2386 = vmatprep.subr.mxu0 0.0
        %2387 = vmatpush1.msra.mxu0 0.0
        %2388 = vmatprep.subr.mxu0 0.0
        %2389 = vmatpush1.msra.mxu0 0.0
        %2390 = vmatprep.subr.mxu0 0.0
        %2391 = vmatpush1.msra.mxu0 0.0
        %2392 = vmatprep.subr.mxu0 0.0
        %2393 = vmatpush1.msra.mxu0 0.0
        %2394 = vmatprep.subr.mxu0 0.0
        %2395 = vmatpush1.msra.mxu0 0.0
        %2396 = vmatprep.subr.mxu0 0.0
        %2397 = vmatpush1.msra.mxu0 0.0
        %2398 = vmatprep.subr.mxu0 0.0
        %2399 = vmatpush1.msra.mxu0 0.0
        %2400 = vmatprep.subr.mxu0 0.0
        %2401 = vmatpush1.msra.mxu0 0.0
        %2402 = vmatprep.subr.mxu0 0.0
        %2403 = vmatpush1.msra.mxu0 0.0
        %2404 = vmatprep.subr.mxu0 0.0
        %2405 = vmatpush1.msra.mxu0 0.0
        %2406 = vmatprep.subr.mxu0 0.0
        %2407 = vmatpush1.msra.mxu0 0.0
        %2408 = vmatprep.subr.mxu0 0.0
        %2409 = vmatpush1.msra.mxu0 0.0
        %2410 = vmatprep.subr.mxu0 0.0
        %2411 = vmatpush1.msra.mxu0 0.0
        %2412 = vmatprep.subr.mxu0 0.0
        %2413 = vmatpush1.msra.mxu0 %v2378
        %2414 = vmatprep.subr.mxu0 0.0
        %2415 = vmatpush1.msra.mxu0 %v2376
        %2416 = vmatprep.subr.mxu0 0.0
        %2417 = vmatpush2.msra.mxu0 0.0
        %2418 = vmatprep.subr.mxu0 0.0
        %2419 = vmatpush2.msra.mxu0 0.0
        %2420 = vmatprep.subr.mxu0 0.0
        %2421 = vmatpush2.msra.mxu0 0.0
        %2422 = vmatprep.subr.mxu0 0.0
        %2423 = vmatpush2.msra.mxu0 0.0
        %2424 = vmatprep.subr.mxu0 0.0
        %2425 = vmatpush2.msra.mxu0 0.0
        %2426 = vmatprep.subr.mxu0 0.0
        %2427 = vmatpush2.msra.mxu0 0.0
        %2428 = vmatprep.subr.mxu0 0.0
        %2429 = vmatpush2.msra.mxu0 0.0
        %2430 = vmatprep.subr.mxu0 0.0
        %2431 = vmatpush2.msra.mxu0 0.0
        %2432 = vmatprep.subr.mxu0 0.0
        %2433 = vmatpush2.msra.mxu0 0.0
        %2434 = vmatprep.subr.mxu0 0.0
        %2435 = vmatpush2.msra.mxu0 0.0
        %2436 = vmatprep.subr.mxu0 0.0
        %2437 = vmatpush2.msra.mxu0 0.0
        %2438 = vmatprep.subr.mxu0 0.0
        %2439 = vmatpush2.msra.mxu0 0.0
        %2440 = vmatprep.subr.mxu0 0.0
        %2441 = vmatpush2.msra.mxu0 0.0
        %2442 = vmatprep.subr.mxu0 0.0
        %2443 = vmatpush2.msra.mxu0 0.0
        %2444 = vmatprep.subr.mxu0 0.0
        %2445 = vmatpush2.msra.mxu0 0.0
        %2446 = vmatprep.subr.mxu0 0.0
        %2447 = vmatpush2.msra.mxu0 0.0
        %2448 = vmatprep.mubr.f32.mxu0 0.0
        %2449 = vmatmul.mubr.f32.gmra.mxu0 %v2382
        %v2450 = vpop.f32.mrf.mxu0
        %v2451 = vadd.f32 0.0, %v2450
        %v2452 = vpop.f32.mrf.mxu0
        %2453 = vdwg.mxu0
        %2455 = vrot.lane.b32.xlu0 %v2107, 8
        %v2456 = vpop.permute.xlu0 %2455
        %2459 = vrot.lane.b32.xlu0 %v2279, 16
        %v2460 = vpop.permute.xlu0 %2459
        %2463 = vrot.lane.b32.xlu0 %v2451, 24
        %v2464 = vpop.permute.xlu0 %2463
        %v2466 = vsel %vm868, %v1935, %v2456
        %v2467 = vsel %vm1538, %v2466, %v2460
        %v2468 = vsel %vm1540, %v2467, %v2464
        %v2469 = vpack.c.bf16 %v2468, %v2468
        %v2470 = vld [vmem:[#allocation16] sm:$0xf]
        %v2471 = vld [vmem:[#allocation16 + $0x4] sm:$0xf]
        %v2472 = vld [vmem:[#allocation16 + $0x8] sm:$0xf]
        %v2473 = vld [vmem:[#allocation16 + $0xc] sm:$0xf]
        %v2474 = vld [vmem:[%s12] sm:$0x1]
        %v2476 = vlaneseq
        %v2477 = vshrl.u32 %v2476, 7
        %v2478 = vsub.s32 0, %v2477
        %v2479 = vrot.slane %v2474, %v2478
        %v2485 = vunpack.c.l.b16 %v2470
        %v2486 = vunpack.c.l.b16 %v2471
        %v2487 = vunpack.c.l.b16 %v2472
        %v2488 = vunpack.c.l.b16 %v2473
        %v2489 = vpack.c.b16 %v2486, %v2485
        %v2490 = vpack.c.b16 %v2488, %v2487
        %v2494 = vsel %vm821, %v2469, 0
        %2496 = vmatprep.subr.bf16.mxu0 0
        %2497 = vmatpush1.bf16.msra.mxu0 0
        %2498 = vmatprep.subr.bf16.mxu0 0
        %2499 = vmatpush1.bf16.msra.mxu0 0
        %2500 = vmatprep.subr.bf16.mxu0 0
        %2501 = vmatpush1.bf16.msra.mxu0 0
        %2502 = vmatprep.subr.bf16.mxu0 0
        %2503 = vmatpush1.bf16.msra.mxu0 0
        %2504 = vmatprep.subr.bf16.mxu0 0
        %2505 = vmatpush1.bf16.msra.mxu0 0
        %2506 = vmatprep.subr.bf16.mxu0 0
        %2507 = vmatpush1.bf16.msra.mxu0 0
        %2508 = vmatprep.subr.bf16.mxu0 0
        %2509 = vmatpush1.bf16.msra.mxu0 %v2490
        %2510 = vmatprep.subr.bf16.mxu0 0
        %2511 = vmatpush1.bf16.msra.mxu0 %v2489
        %2512 = vmatprep.subr.bf16.mxu0 0
        %2513 = vmatpush2.bf16.msra.mxu0 0
        %2514 = vmatprep.subr.bf16.mxu0 0
        %2515 = vmatpush2.bf16.msra.mxu0 0
        %2516 = vmatprep.subr.bf16.mxu0 0
        %2517 = vmatpush2.bf16.msra.mxu0 0
        %2518 = vmatprep.subr.bf16.mxu0 0
        %2519 = vmatpush2.bf16.msra.mxu0 0
        %2520 = vmatprep.subr.bf16.mxu0 0
        %2521 = vmatpush2.bf16.msra.mxu0 0
        %2522 = vmatprep.subr.bf16.mxu0 0
        %2523 = vmatpush2.bf16.msra.mxu0 0
        %2524 = vmatprep.subr.bf16.mxu0 0
        %2525 = vmatpush2.bf16.msra.mxu0 0
        %2526 = vmatprep.subr.bf16.mxu0 0
        %2527 = vmatpush2.bf16.msra.mxu0 0
        %2528 = vmatprep.mubr.bf16.mxu0 0
        %2529 = vmatmul.mubr.bf16.gmra.mxu0 %v2494
        %v2530 = vpop.f32.mrf.mxu0
        %v2531 = vadd.f32 %v2479, %v2530
        %v2532 = vpop.f32.mrf.mxu0
        %v2533 = vpop.f32.mrf.mxu0
        %v2534 = vpop.f32.mrf.mxu0
        %2535 = vdwg.mxu0
        %v2536 = vadd.f32 %v1633, %v2531
        %v2537 = vsel %vm821, %v2536, 0.0
        %2538 = vadd.xlane.f32.xlu0 %v2537
        %v2539 = vpop.xlane.xlu0 %2538
        %v2540 = vmul.f32 %v2539, %v1613
        %v2541 = vsub.f32 %v2536, %v2540
        %v2542 = vmul.f32 %v2541, %v2541
        %v2543 = vsel %vm821, %v2542, 0.0
        %2544 = vadd.xlane.f32.xlu0 %v2543
        %v2545 = vpop.xlane.xlu0 %2544
        %v2546 = vmul.f32 %v2545, %v1613
        %v2547 = vadd.f32 %v2546, 1e-05
        %v2548 = vrsqrt.pop %v2547
        %v2549 = vmul.f32 %v2541, %v2548
        %v2550 = vlaneseq
        %v2551 = vshrl.u32 %v2550, 7
        %v2552 = vsub.s32 1, %v2551
        %v2553 = vrot.slane %v795, %v2552
        %v2554 = vmul.f32 %v2549, %v2553
        %v2555 = vlaneseq
        %v2556 = vshrl.u32 %v2555, 7
        %v2557 = vsub.s32 1, %v2556
        %v2558 = vrot.slane %v796, %v2557
        %v2559 = vadd.f32 %v2554, %v2558
        %v2560 = vpack.c.bf16 %v2559, %v2559
        %v2561 = vld [vmem:[#allocation17] sm:$0xf]
        %v2562 = vld [vmem:[#allocation17 + $0x4] sm:$0xf]
        %v2563 = vld [vmem:[#allocation17 + $0x8] sm:$0xf]
        %v2564 = vld [vmem:[#allocation17 + $0xc] sm:$0xf]
        %v2565 = vld [vmem:[#allocation19] sm:$0x1]
        %v2567 = vlaneseq
        %v2568 = vshrl.u32 %v2567, 7
        %v2569 = vsub.s32 0, %v2568
        %v2570 = vrot.slane %v2565, %v2569
        %v2576 = vunpack.c.l.b16 %v2561
        %v2577 = vunpack.c.l.b16 %v2562
        %v2578 = vunpack.c.l.b16 %v2563
        %v2579 = vunpack.c.l.b16 %v2564
        %v2580 = vpack.c.b16 %v2577, %v2576
        %v2581 = vpack.c.b16 %v2579, %v2578
        %v2585 = vsel %vm821, %v2560, 0
        %2587 = vmatprep.subr.bf16.mxu0 0
        %2588 = vmatpush1.bf16.msra.mxu0 0
        %2589 = vmatprep.subr.bf16.mxu0 0
        %2590 = vmatpush1.bf16.msra.mxu0 0
        %2591 = vmatprep.subr.bf16.mxu0 0
        %2592 = vmatpush1.bf16.msra.mxu0 0
        %2593 = vmatprep.subr.bf16.mxu0 0
        %2594 = vmatpush1.bf16.msra.mxu0 0
        %2595 = vmatprep.subr.bf16.mxu0 0
        %2596 = vmatpush1.bf16.msra.mxu0 0
        %2597 = vmatprep.subr.bf16.mxu0 0
        %2598 = vmatpush1.bf16.msra.mxu0 0
        %2599 = vmatprep.subr.bf16.mxu0 0
        %2600 = vmatpush1.bf16.msra.mxu0 %v2581
        %2601 = vmatprep.subr.bf16.mxu0 0
        %2602 = vmatpush1.bf16.msra.mxu0 %v2580
        %2603 = vmatprep.subr.bf16.mxu0 0
        %2604 = vmatpush2.bf16.msra.mxu0 0
        %2605 = vmatprep.subr.bf16.mxu0 0
        %2606 = vmatpush2.bf16.msra.mxu0 0
        %2607 = vmatprep.subr.bf16.mxu0 0
        %2608 = vmatpush2.bf16.msra.mxu0 0
        %2609 = vmatprep.subr.bf16.mxu0 0
        %2610 = vmatpush2.bf16.msra.mxu0 0
        %2611 = vmatprep.subr.bf16.mxu0 0
        %2612 = vmatpush2.bf16.msra.mxu0 0
        %2613 = vmatprep.subr.bf16.mxu0 0
        %2614 = vmatpush2.bf16.msra.mxu0 0
        %2615 = vmatprep.subr.bf16.mxu0 0
        %2616 = vmatpush2.bf16.msra.mxu0 0
        %2617 = vmatprep.subr.bf16.mxu0 0
        %2618 = vmatpush2.bf16.msra.mxu0 0
        %2619 = vmatprep.mubr.bf16.mxu0 0
        %2620 = vmatmul.mubr.bf16.gmra.mxu0 %v2585
        %v2621 = vpop.f32.mrf.mxu0
        %v2622 = vadd.f32 %v2570, %v2621
        %v2623 = vpop.f32.mrf.mxu0
        %v2624 = vpop.f32.mrf.mxu0
        %v2625 = vpop.f32.mrf.mxu0
        %2626 = vdwg.mxu0
        %v2627 = vmax.f32 %v2622, 0.0
        %v2628 = vpack.c.bf16 %v2627, %v2627
        %v2629 = vld [vmem:[%s15] sm:$0xf]
        %v2630 = vld [vmem:[%s15 + $0x4] sm:$0xf]
        %v2631 = vld [vmem:[%s15 + $0x8] sm:$0xf]
        %v2632 = vld [vmem:[%s15 + $0xc] sm:$0xf]
        %v2633 = vld [vmem:[%s15 + $0x10] sm:$0xf]
        %v2634 = vld [vmem:[%s15 + $0x14] sm:$0xf]
        %v2635 = vld [vmem:[%s15 + $0x18] sm:$0xf]
        %v2636 = vld [vmem:[%s15 + $0x1c] sm:$0xf]
        %v2637 = vld [vmem:[%s16] sm:$0x1]
        %v2639 = vlaneseq
        %v2640 = vshrl.u32 %v2639, 7
        %v2641 = vsub.s32 0, %v2640
        %v2642 = vrot.slane %v2637, %v2641
        %v2652 = vunpack.c.l.b16 %v2629
        %v2653 = vunpack.c.l.b16 %v2630
        %v2654 = vunpack.c.l.b16 %v2631
        %v2655 = vunpack.c.l.b16 %v2632
        %v2656 = vunpack.c.l.b16 %v2633
        %v2657 = vunpack.c.l.b16 %v2634
        %v2658 = vunpack.c.l.b16 %v2635
        %v2659 = vunpack.c.l.b16 %v2636
        %v2660 = vpack.c.b16 %v2653, %v2652
        %v2661 = vpack.c.b16 %v2655, %v2654
        %v2662 = vpack.c.b16 %v2657, %v2656
        %v2663 = vpack.c.b16 %v2659, %v2658
        %vm2668 = vcmask 523264
        %v2670 = vsel %vm2668, %v2628, 0
        %2672 = vmatprep.subr.bf16.mxu0 0
        %2673 = vmatpush1.bf16.msra.mxu0 0
        %2674 = vmatprep.subr.bf16.mxu0 0
        %2675 = vmatpush1.bf16.msra.mxu0 0
        %2676 = vmatprep.subr.bf16.mxu0 0
        %2677 = vmatpush1.bf16.msra.mxu0 0
        %2678 = vmatprep.subr.bf16.mxu0 0
        %2679 = vmatpush1.bf16.msra.mxu0 0
        %2680 = vmatprep.subr.bf16.mxu0 0
        %2681 = vmatpush1.bf16.msra.mxu0 %v2663
        %2682 = vmatprep.subr.bf16.mxu0 0
        %2683 = vmatpush1.bf16.msra.mxu0 %v2662
        %2684 = vmatprep.subr.bf16.mxu0 0
        %2685 = vmatpush1.bf16.msra.mxu0 %v2661
        %2686 = vmatprep.subr.bf16.mxu0 0
        %2687 = vmatpush1.bf16.msra.mxu0 %v2660
        %2688 = vmatprep.subr.bf16.mxu0 0
        %2689 = vmatpush2.bf16.msra.mxu0 0
        %2690 = vmatprep.subr.bf16.mxu0 0
        %2691 = vmatpush2.bf16.msra.mxu0 0
        %2692 = vmatprep.subr.bf16.mxu0 0
        %2693 = vmatpush2.bf16.msra.mxu0 0
        %2694 = vmatprep.subr.bf16.mxu0 0
        %2695 = vmatpush2.bf16.msra.mxu0 0
        %2696 = vmatprep.subr.bf16.mxu0 0
        %2697 = vmatpush2.bf16.msra.mxu0 0
        %2698 = vmatprep.subr.bf16.mxu0 0
        %2699 = vmatpush2.bf16.msra.mxu0 0
        %2700 = vmatprep.subr.bf16.mxu0 0
        %2701 = vmatpush2.bf16.msra.mxu0 0
        %2702 = vmatprep.subr.bf16.mxu0 0
        %2703 = vmatpush2.bf16.msra.mxu0 0
        %2704 = vmatprep.mubr.bf16.mxu0 0
        %2705 = vmatmul.mubr.bf16.gmra.mxu0 %v2670
        %v2706 = vpop.f32.mrf.mxu0
        %v2707 = vadd.f32 %v2642, %v2706
        %v2708 = vpop.f32.mrf.mxu0
        %v2709 = vpop.f32.mrf.mxu0
        %v2710 = vpop.f32.mrf.mxu0
        %2711 = vdwg.mxu0
        %v2712 = vadd.f32 %v2559, %v2707
        %v2713 = vsel %vm821, %v2712, 0.0
        %2714 = vadd.xlane.f32.xlu0 %v2713
        %v2715 = vpop.xlane.xlu0 %2714
        %v2716 = vmul.f32 %v2715, %v1613
        %v2717 = vsub.f32 %v2712, %v2716
        %v2718 = vmul.f32 %v2717, %v2717
        %v2719 = vsel %vm821, %v2718, 0.0
        %2720 = vadd.xlane.f32.xlu0 %v2719
        %v2721 = vpop.xlane.xlu0 %2720
        %v2722 = vmul.f32 %v2721, %v1613
        %v2723 = vadd.f32 %v2722, 1e-05
        %v2724 = vrsqrt.pop %v2723
        %v2725 = vmul.f32 %v2717, %v2724
        %v2726 = vlaneseq
        %v2727 = vshrl.u32 %v2726, 7
        %v2728 = vsub.s32 2, %v2727
        %v2729 = vrot.slane %v795, %v2728
        %v2730 = vmul.f32 %v2725, %v2729
        %v2731 = vlaneseq
        %v2732 = vshrl.u32 %v2731, 7
        %v2733 = vsub.s32 2, %v2732
        %v2734 = vrot.slane %v796, %v2733
        %v2735 = vadd.f32 %v2730, %v2734
        %2736 = vst.msk [vmem:[%s780] sm:$0xff] %vm821, %v2735
        %s2737 = sand.u32 %s463, 1
        %s2738 = scalar_lea.sflag [#allocation4], %s2737
        %s2739 = sand.u32 %s463, 1
        %s2740 = smul.addr %s2739, 8
        %s2741 = scalar_lea.vmem [#allocation20], %s2740
        // Predicated region
        $region141: #{tpu_custom_call.1} parent=95 // pred_check
          %p2742 = pneg %p473
        $region142: #{tpu_custom_call.1} parent=95 // pred_check_branch
          %2744 = sbr.rel (%p2742) target = $region144
        $region143: #{tpu_custom_call.1} parent=95 // pred_region
          %s2746 = ssub.s32 128, 128
          %2747 = vsyncadd %s2738, %s2746
          %s2748 = smul.addr %s41, 128
          %s2749 = scalar_lea.hbm %s19, %s2748
          %s2751 = sshll.u32 %s2741, 4
          %s2752 = int_to_ptr.vmem [resolvable:$true] %s2751
          %2754 = dma.vmem_to_hbm [thread:$0]  %s2752, 128, %s2749, %s2738
        $region144: #{tpu_custom_call.1} parent=95 // pred_fallthru
          _
      $region96: #{tpu_custom_call.1} parent=5 // pred_fallthru
        _
      %p2755 = scmp.le.s32.totalorder 2, %s36
      // Predicated region
      $region145: #{tpu_custom_call.1} parent=5 // pred_check
        %p2756 = pneg %p2755
      $region146: #{tpu_custom_call.1} parent=5 // pred_check_branch
        %2758 = sbr.rel (%p2756) target = $region148
      $region147: #{tpu_custom_call.1} parent=5 // pred_region
        %s2759 = ssub.s32 %s36, 2
        // Predicated region
        $region149: #{tpu_custom_call.1} parent=147 // pred_check
          %p2760 = pneg %p479
        $region150: #{tpu_custom_call.1} parent=147 // pred_check_branch
          %2762 = sbr.rel (%p2760) target = $region152
        $region151: #{tpu_custom_call.1} parent=147 // pred_region
          %s2763 = sand.u32 %s464, 1
          %s2764 = scalar_lea.sflag [#allocation4], %s2763
          %s2765 = sand.u32 %s464, 1
          %s2766 = smul.addr %s2765, 8
          %s2767 = scalar_lea.vmem [#allocation20], %s2766
          %2768 = dma.done %s2764, 128
        $region152: #{tpu_custom_call.1} parent=147 // pred_fallthru
          _
      $region148: #{tpu_custom_call.1} parent=5 // pred_fallthru
        _
    $region6: #{tpu_custom_call.1} parent=1 // loop_footer
      %s40 = sadd.s32 1, %s36
    $region7: #{tpu_custom_call.1} parent=1 // loop_footer_branch
      %35 = sbr.rel target = $region3
    $region8: #{tpu_custom_call.1} parent=1 // loop_exit
      _
    %2769 = vsyncpa [#allocation3], 1
    %s2770 = scalar_lea.sflag [#allocation3], 1
    %2771 = vsyncpa %s2770, 1
    %2772 = vsyncpa [#allocation6], 1
    %2773 = vsyncpa [#allocation9], 1
    %2774 = vsyncpa [#allocation12], 1
    %2775 = vsyncpa [#allocation15], 1
    %2776 = vsyncpa [#allocation18], 1
    %2777 = vsyncpa [#allocation4], 1
    %s2778 = scalar_lea.sflag [#allocation4], 1
    %2779 = vsyncpa %s2778, 1

</llo_original>
